<compile_context>
chip_gen: v7x
topology: tpu7x:2x2x1
jax: 0.10.0
libtpu: 0.0.40
codegen_flags: <defaults>
</compile_context>

<pallas_src>
import math
from functools import partial

import jax
import jax.numpy as jnp
from jax.experimental import pallas as pl
from jax.experimental.pallas import tpu as pltpu


# ---------------------------------------------------------------------------
# Fused kernel: one batch element end-to-end (channel-last: (T, C))
# ---------------------------------------------------------------------------

def _convblock_kernel(
        x_ref,                                        # (1, T, C_in)  NLC input
        # pre Block_Unit (c_in -> c_hid)
        pw1, pb1, pw2, pb2, pwa, pba,
        # Smoother (MHA + conv0/conv1); MHA weights are full (E,E)
        wq, bq, wk, bk, wv, bv, wo, bo, wc0, bc0, wc1, bc1,
        # post Block_Unit (c_hid -> c_out)
        qw1, qb1, qw2, qb2, qwa, qba,
        o_ref,                                        # (1, T, C_out) NLC output
        *, nhead, pre_adjust, post_adjust):
    f32, bf16 = jnp.float32, jnp.bfloat16

    def conv3(h, w_ref, b_ref, relu):
        """Conv1d(k=3, stride=1, pad=1), channel-last.

        h: (T, Cin) f32; w_ref: (3, Cin, Cout) bf16 (tap k multiplies x[t+k-1]);
        b_ref: (1, Cout) f32.  Halo rows via pltpu.roll + boundary mask; the
        three taps accumulate as three MXU dots (no lane-axis concat).
        """
        T, C = h.shape
        row = jax.lax.broadcasted_iota(jnp.int32, (T, C), 0)
        h_prev = jnp.where(row == 0, 0.0, pltpu.roll(h, 1, axis=0))          # x[t-1]
        h_next = jnp.where(row == T - 1, 0.0, pltpu.roll(h, T - 1, axis=0))  # x[t+1]
        y = (jnp.dot(h_prev.astype(bf16), w_ref[0], preferred_element_type=f32)
             + jnp.dot(h.astype(bf16),      w_ref[1], preferred_element_type=f32)
             + jnp.dot(h_next.astype(bf16), w_ref[2], preferred_element_type=f32)
             + b_ref[...])
        return jnp.maximum(y, 0.0) if relu else y

    def linear(h, w_ref, b_ref):
        """1x1 conv == per-timestep linear."""
        return jnp.dot(h.astype(bf16), w_ref[...],
                       preferred_element_type=f32) + b_ref[...]

    def block_unit(h, w1, b1, w2, b2, wa, ba, adjust):
        """conv3 -> relu -> conv3, plus (optionally 1x1-adjusted) residual."""
        out = conv3(conv3(h, w1, b1, relu=True), w2, b2, relu=False)
        res = linear(h, wa, ba) if adjust else h
        return out + res                      # dropout == identity (eval mode)

    def attention(h):
        """Multi-head self-attention + residual (torch.nn.MultiheadAttention)."""
        T, E = h.shape
        hd = E // nhead
        scale = 1.0 / math.sqrt(hd)
        hb = h.astype(bf16)
        # Merged full-E projections: one (T,E)x(E,E) matmul each.
        q = (jnp.dot(hb, wq[...], preferred_element_type=f32) + bq[...]) * scale
        k = jnp.dot(hb, wk[...], preferred_element_type=f32) + bk[...]
        v = jnp.dot(hb, wv[...], preferred_element_type=f32) + bv[...]
        # Split heads only for the score / context contractions.
        qh = jnp.transpose(q.reshape(T, nhead, hd), (1, 0, 2)).astype(bf16)  # (H,T,hd)
        kh = jnp.transpose(k.reshape(T, nhead, hd), (1, 0, 2)).astype(bf16)
        vh = jnp.transpose(v.reshape(T, nhead, hd), (1, 0, 2)).astype(bf16)
        s = jnp.einsum('htd,hsd->hts', qh, kh, preferred_element_type=f32)   # (H,T,T)
        s = s - jnp.max(s, axis=-1, keepdims=True)
        p = jnp.exp(s)
        p = p * pl.reciprocal(jnp.sum(p, axis=-1, keepdims=True), approx=True)
        ctx = jnp.einsum('hts,hsd->htd', p.astype(bf16), vh,
                         preferred_element_type=f32)                         # (H,T,hd)
        ctx = jnp.transpose(ctx, (1, 0, 2)).reshape(T, E)                    # concat heads
        proj = jnp.dot(ctx.astype(bf16), wo[...],
                       preferred_element_type=f32) + bo[...]                 # one matmul
        return h + proj                       # residual; attn dropout == identity

    x = x_ref[0].astype(f32)                                        # (T, C_in)
    h = block_unit(x, pw1, pb1, pw2, pb2, pwa, pba, pre_adjust)     # pre_block
    h = attention(h)                                                # smoother: MHA
    h = h + conv3(conv3(h, wc0, bc0, relu=True), wc1, bc1, relu=False)  # smoother convs
    h = block_unit(h, qw1, qb1, qw2, qb2, qwa, qba, post_adjust)    # post_block
    o_ref[0] = h.astype(o_ref.dtype)                                # channel-last store


# ---------------------------------------------------------------------------
# pallas_call wrapper (PyTorch-style NCL in / NCL out; layout change in XLA)
# ---------------------------------------------------------------------------

def _vmem_limit_bytes():
    # ~75% of physical VMEM, capped at 100 MiB:
    #   v5e/v6e (128 MiB) -> ~96-100 MiB; v7x (64 MiB) -> 48 MiB.
    try:
        cap = pltpu.get_tpu_info().vmem_capacity_bytes
        return int(min(cap * 3 // 4, 100 * 1024 * 1024))
    except Exception:
        return 48 * 1024 * 1024


def conv_block_forward(x_ncl, flat_params, *, nhead=8):
    """x_ncl: (B, C_in, T) f32 NCL (PyTorch layout). Returns (B, C_out, T)."""
    B, C_in, T = x_ncl.shape
    C_hid = flat_params[0].shape[-1]        # pw1: (3, C_in, C_hid)
    C_out = flat_params[-2].shape[-1]       # qwa: (C_hid, C_out)

    x_nlc = jnp.transpose(x_ncl, (0, 2, 1))  # one layout change in XLA, not in-kernel

    def full_spec(a):                        # whole array resident in VMEM
        nd = a.ndim
        return pl.BlockSpec(a.shape, lambda i, _n=nd: (0,) * _n)

    kernel = partial(_convblock_kernel, nhead=nhead,
                     pre_adjust=(C_in != C_hid),
                     post_adjust=(C_hid != C_out))

    out_nlc = pl.pallas_call(
        kernel,
        out_shape=jax.ShapeDtypeStruct((B, T, C_out), x_ncl.dtype),
        grid=(B,),
        in_specs=[pl.BlockSpec((1, T, C_in), lambda i: (i, 0, 0))]
                + [full_spec(a) for a in flat_params],
        out_specs=pl.BlockSpec((1, T, C_out), lambda i: (i, 0, 0)),
        compiler_params=pltpu.CompilerParams(
            dimension_semantics=("parallel",),
            vmem_limit_bytes=_vmem_limit_bytes()),
    )(x_nlc, *flat_params)

    return jnp.transpose(out_nlc, (0, 2, 1))  # back to NCL


# ---------------------------------------------------------------------------
# Deterministic parameter construction (weight_norm folded into effective W)
# Layouts: conv3 weights (3, Cin, Cout); 1x1/MHA weights (Cin, Cout) == W^T;
# all weights bf16, all biases (1, Cout) f32.
# ---------------------------------------------------------------------------

def _init_params(key, c_in, c_hid, c_out, nhead=8, d_hid=256, std=0.01):
    assert c_hid % nhead == 0, "embed dim must be divisible by nhead"
    ks = iter(jax.random.split(key, 24))

    def w(shape):   # MXU weight
        return (std * jax.random.normal(next(ks), shape, jnp.float32)
                ).astype(jnp.bfloat16)

    def b(shape):   # bias (f32)
        return std * jax.random.normal(next(ks), shape, jnp.float32)

    def block_unit(ci, co):
        return [w((3, ci, co)), b((1, co)),      # conv_block1
                w((3, co, co)), b((1, co)),      # conv_block2
                w((ci, co)),    b((1, co))]      # adjust_dim_layer (1x1)

    E = c_hid
    smoother = [w((E, E)), b((1, E)),            # Wq^T, bq
                w((E, E)), b((1, E)),            # Wk^T, bk
                w((E, E)), b((1, E)),            # Wv^T, bv
                w((E, E)), b((1, E)),            # Wo^T, bo
                w((3, E, d_hid)), b((1, d_hid)), # conv0
                w((3, d_hid, E)), b((1, E))]     # conv1
    return block_unit(c_in, c_hid) + smoother + block_unit(c_hid, c_out)


# ---------------------------------------------------------------------------

if __name__ == "__main__":
    B, C_IN, C_HID, C_OUT, T = 2, 4, 32, 4, 16          # c_hid % nhead(8) == 0
    NHEAD, D_HID = 8, 256

    root = jax.random.PRNGKey(0)
    k_x, k_p = jax.random.split(root)
    x = jax.random.normal(k_x, (B, C_IN, T), jnp.float32)   # NCL, like PyTorch
    flat_params = _init_params(k_p, C_IN, C_HID, C_OUT, nhead=NHEAD, d_hid=D_HID)

    fwd = jax.jit(partial(conv_block_forward, nhead=NHEAD))
    out = fwd(x, flat_params)
    jax.block_until_ready(out)

    assert out.shape == (B, C_OUT, T), out.shape
    assert out.dtype == jnp.float32
    assert bool(jnp.all(jnp.isfinite(out)))
    print("KERNEL_OK")
</pallas_src>

<mosaic_0001>
module attributes {stable_mosaic.version = 11 : i64} {
  func.func @_convblock_kernel(%arg0: i32, %arg1: memref<1x16x4xf32, #tpu.memory_space<vmem>>, %arg2: memref<3x4x32xbf16, #tpu.memory_space<vmem>>, %arg3: memref<1x32xf32, #tpu.memory_space<vmem>>, %arg4: memref<3x32x32xbf16, #tpu.memory_space<vmem>>, %arg5: memref<1x32xf32, #tpu.memory_space<vmem>>, %arg6: memref<4x32xbf16, #tpu.memory_space<vmem>>, %arg7: memref<1x32xf32, #tpu.memory_space<vmem>>, %arg8: memref<32x32xbf16, #tpu.memory_space<vmem>>, %arg9: memref<1x32xf32, #tpu.memory_space<vmem>>, %arg10: memref<32x32xbf16, #tpu.memory_space<vmem>>, %arg11: memref<1x32xf32, #tpu.memory_space<vmem>>, %arg12: memref<32x32xbf16, #tpu.memory_space<vmem>>, %arg13: memref<1x32xf32, #tpu.memory_space<vmem>>, %arg14: memref<32x32xbf16, #tpu.memory_space<vmem>>, %arg15: memref<1x32xf32, #tpu.memory_space<vmem>>, %arg16: memref<3x32x256xbf16, #tpu.memory_space<vmem>>, %arg17: memref<1x256xf32, #tpu.memory_space<vmem>>, %arg18: memref<3x256x32xbf16, #tpu.memory_space<vmem>>, %arg19: memref<1x32xf32, #tpu.memory_space<vmem>>, %arg20: memref<3x32x4xbf16, #tpu.memory_space<vmem>>, %arg21: memref<1x4xf32, #tpu.memory_space<vmem>>, %arg22: memref<3x4x4xbf16, #tpu.memory_space<vmem>>, %arg23: memref<1x4xf32, #tpu.memory_space<vmem>>, %arg24: memref<32x4xbf16, #tpu.memory_space<vmem>>, %arg25: memref<1x4xf32, #tpu.memory_space<vmem>>, %arg26: memref<1x16x4xf32, #tpu.memory_space<vmem>>) attributes {dimension_semantics = [#tpu.dimension_semantics<parallel>], iteration_bounds = array<i64: 2>, scalar_prefetch = 0 : i64, scratch_operands = 0 : i64, tpu.core_type = #tpu.core_type<tc>, window_params = [{transform_indices = @transform_0, window_bounds = array<i64: 1, 16, 4>}, {pipeline_mode = #tpu.pipeline_mode<synchronous>, transform_indices = @transform_1, window_bounds = array<i64: 3, 4, 32>}, {pipeline_mode = #tpu.pipeline_mode<synchronous>, transform_indices = @transform_2, window_bounds = array<i64: 1, 32>}, {pipeline_mode = #tpu.pipeline_mode<synchronous>, transform_indices = @transform_3, window_bounds = array<i64: 3, 32, 32>}, {pipeline_mode = #tpu.pipeline_mode<synchronous>, transform_indices = @transform_4, window_bounds = array<i64: 1, 32>}, {pipeline_mode = #tpu.pipeline_mode<synchronous>, transform_indices = @transform_5, window_bounds = array<i64: 4, 32>}, {pipeline_mode = #tpu.pipeline_mode<synchronous>, transform_indices = @transform_6, window_bounds = array<i64: 1, 32>}, {pipeline_mode = #tpu.pipeline_mode<synchronous>, transform_indices = @transform_7, window_bounds = array<i64: 32, 32>}, {pipeline_mode = #tpu.pipeline_mode<synchronous>, transform_indices = @transform_8, window_bounds = array<i64: 1, 32>}, {pipeline_mode = #tpu.pipeline_mode<synchronous>, transform_indices = @transform_9, window_bounds = array<i64: 32, 32>}, {pipeline_mode = #tpu.pipeline_mode<synchronous>, transform_indices = @transform_10, window_bounds = array<i64: 1, 32>}, {pipeline_mode = #tpu.pipeline_mode<synchronous>, transform_indices = @transform_11, window_bounds = array<i64: 32, 32>}, {pipeline_mode = #tpu.pipeline_mode<synchronous>, transform_indices = @transform_12, window_bounds = array<i64: 1, 32>}, {pipeline_mode = #tpu.pipeline_mode<synchronous>, transform_indices = @transform_13, window_bounds = array<i64: 32, 32>}, {pipeline_mode = #tpu.pipeline_mode<synchronous>, transform_indices = @transform_14, window_bounds = array<i64: 1, 32>}, {pipeline_mode = #tpu.pipeline_mode<synchronous>, transform_indices = @transform_15, window_bounds = array<i64: 3, 32, 256>}, {pipeline_mode = #tpu.pipeline_mode<synchronous>, transform_indices = @transform_16, window_bounds = array<i64: 1, 256>}, {pipeline_mode = #tpu.pipeline_mode<synchronous>, transform_indices = @transform_17, window_bounds = array<i64: 3, 256, 32>}, {pipeline_mode = #tpu.pipeline_mode<synchronous>, transform_indices = @transform_18, window_bounds = array<i64: 1, 32>}, {pipeline_mode = #tpu.pipeline_mode<synchronous>, transform_indices = @transform_19, window_bounds = array<i64: 3, 32, 4>}, {pipeline_mode = #tpu.pipeline_mode<synchronous>, transform_indices = @transform_20, window_bounds = array<i64: 1, 4>}, {pipeline_mode = #tpu.pipeline_mode<synchronous>, transform_indices = @transform_21, window_bounds = array<i64: 3, 4, 4>}, {pipeline_mode = #tpu.pipeline_mode<synchronous>, transform_indices = @transform_22, window_bounds = array<i64: 1, 4>}, {pipeline_mode = #tpu.pipeline_mode<synchronous>, transform_indices = @transform_23, window_bounds = array<i64: 32, 4>}, {pipeline_mode = #tpu.pipeline_mode<synchronous>, transform_indices = @transform_24, window_bounds = array<i64: 1, 4>}, {transform_indices = @transform_25, window_bounds = array<i64: 1, 16, 4>}]} {
    %c0 = arith.constant 0 : index
    %c0_0 = arith.constant 0 : index
    %c0_1 = arith.constant 0 : index
    %0 = vector.load %arg1[%c0, %c0_0, %c0_1] : memref<1x16x4xf32, #tpu.memory_space<vmem>>, vector<1x16x4xf32>
    %1 = vector.shape_cast %0 : vector<1x16x4xf32> to vector<16x4xf32>
    %2 = tpu.iota {dimensions = array<i32: 0>} : vector<16x4xi32>
    %c0_i32 = arith.constant 0 : i32
    %3 = vector.broadcast %c0_i32 : i32 to vector<16x4xi32>
    %4 = arith.cmpi eq, %2, %3 : vector<16x4xi32>
    %c1_i32 = arith.constant 1 : i32
    %5 = tpu.dynamic_rotate %1 by %c1_i32 dim 0 : vector<16x4xf32>, i32 -> vector<16x4xf32>
    %cst = arith.constant 0.000000e+00 : f32
    %6 = vector.broadcast %cst : f32 to vector<16x4xf32>
    %7 = arith.select %4, %6, %5 : vector<16x4xi1>, vector<16x4xf32>
    %c15_i32 = arith.constant 15 : i32
    %8 = vector.broadcast %c15_i32 : i32 to vector<16x4xi32>
    %9 = arith.cmpi eq, %2, %8 : vector<16x4xi32>
    %c15_i32_2 = arith.constant 15 : i32
    %10 = tpu.dynamic_rotate %1 by %c15_i32_2 dim 0 : vector<16x4xf32>, i32 -> vector<16x4xf32>
    %cst_3 = arith.constant 0.000000e+00 : f32
    %11 = vector.broadcast %cst_3 : f32 to vector<16x4xf32>
    %12 = arith.select %9, %11, %10 : vector<16x4xi1>, vector<16x4xf32>
    %13 = arith.truncf %7 : vector<16x4xf32> to vector<16x4xbf16>
    %c0_4 = arith.constant 0 : index
    %c0_5 = arith.constant 0 : index
    %c0_6 = arith.constant 0 : index
    %14 = vector.load %arg2[%c0_4, %c0_5, %c0_6] : memref<3x4x32xbf16, #tpu.memory_space<vmem>>, vector<1x4x32xbf16>
    %15 = vector.shape_cast %14 : vector<1x4x32xbf16> to vector<4x32xbf16>
    %cst_7 = arith.constant dense<0.000000e+00> : vector<16x32xf32>
    %16 = tpu.matmul %13, %15, %cst_7 {dimension_numbers = #tpu.dot_dimension_numbers<[1], [0], [0], [1], [0, 0, 1, 1], [], []>} : vector<16x4xbf16>, vector<4x32xbf16>, vector<16x32xf32> -> vector<16x32xf32>
    %17 = arith.truncf %1 : vector<16x4xf32> to vector<16x4xbf16>
    %c1 = arith.constant 1 : index
    %c0_8 = arith.constant 0 : index
    %c0_9 = arith.constant 0 : index
    %18 = vector.load %arg2[%c1, %c0_8, %c0_9] : memref<3x4x32xbf16, #tpu.memory_space<vmem>>, vector<1x4x32xbf16>
    %19 = vector.shape_cast %18 : vector<1x4x32xbf16> to vector<4x32xbf16>
    %cst_10 = arith.constant dense<0.000000e+00> : vector<16x32xf32>
    %20 = tpu.matmul %17, %19, %cst_10 {dimension_numbers = #tpu.dot_dimension_numbers<[1], [0], [0], [1], [0, 0, 1, 1], [], []>} : vector<16x4xbf16>, vector<4x32xbf16>, vector<16x32xf32> -> vector<16x32xf32>
    %21 = arith.addf %16, %20 : vector<16x32xf32>
    %22 = arith.truncf %12 : vector<16x4xf32> to vector<16x4xbf16>
    %c2 = arith.constant 2 : index
    %c0_11 = arith.constant 0 : index
    %c0_12 = arith.constant 0 : index
    %23 = vector.load %arg2[%c2, %c0_11, %c0_12] : memref<3x4x32xbf16, #tpu.memory_space<vmem>>, vector<1x4x32xbf16>
    %24 = vector.shape_cast %23 : vector<1x4x32xbf16> to vector<4x32xbf16>
    %cst_13 = arith.constant dense<0.000000e+00> : vector<16x32xf32>
    %25 = tpu.matmul %22, %24, %cst_13 {dimension_numbers = #tpu.dot_dimension_numbers<[1], [0], [0], [1], [0, 0, 1, 1], [], []>} : vector<16x4xbf16>, vector<4x32xbf16>, vector<16x32xf32> -> vector<16x32xf32>
    %26 = arith.addf %21, %25 : vector<16x32xf32>
    %c0_14 = arith.constant 0 : index
    %c0_15 = arith.constant 0 : index
    %27 = vector.load %arg3[%c0_14, %c0_15] : memref<1x32xf32, #tpu.memory_space<vmem>>, vector<1x32xf32>
    %28 = vector.broadcast %27 : vector<1x32xf32> to vector<16x32xf32>
    %29 = arith.addf %26, %28 : vector<16x32xf32>
    %cst_16 = arith.constant 0.000000e+00 : f32
    %30 = vector.broadcast %cst_16 : f32 to vector<16x32xf32>
    %31 = arith.maximumf %29, %30 : vector<16x32xf32>
    %32 = tpu.iota {dimensions = array<i32: 0>} : vector<16x32xi32>
    %c0_i32_17 = arith.constant 0 : i32
    %33 = vector.broadcast %c0_i32_17 : i32 to vector<16x32xi32>
    %34 = arith.cmpi eq, %32, %33 : vector<16x32xi32>
    %c1_i32_18 = arith.constant 1 : i32
    %35 = tpu.dynamic_rotate %31 by %c1_i32_18 dim 0 : vector<16x32xf32>, i32 -> vector<16x32xf32>
    %cst_19 = arith.constant 0.000000e+00 : f32
    %36 = vector.broadcast %cst_19 : f32 to vector<16x32xf32>
    %37 = arith.select %34, %36, %35 : vector<16x32xi1>, vector<16x32xf32>
    %c15_i32_20 = arith.constant 15 : i32
    %38 = vector.broadcast %c15_i32_20 : i32 to vector<16x32xi32>
    %39 = arith.cmpi eq, %32, %38 : vector<16x32xi32>
    %c15_i32_21 = arith.constant 15 : i32
    %40 = tpu.dynamic_rotate %31 by %c15_i32_21 dim 0 : vector<16x32xf32>, i32 -> vector<16x32xf32>
    %cst_22 = arith.constant 0.000000e+00 : f32
    %41 = vector.broadcast %cst_22 : f32 to vector<16x32xf32>
    %42 = arith.select %39, %41, %40 : vector<16x32xi1>, vector<16x32xf32>
    %43 = arith.truncf %37 : vector<16x32xf32> to vector<16x32xbf16>
    %c0_23 = arith.constant 0 : index
    %c0_24 = arith.constant 0 : index
    %c0_25 = arith.constant 0 : index
    %44 = vector.load %arg4[%c0_23, %c0_24, %c0_25] : memref<3x32x32xbf16, #tpu.memory_space<vmem>>, vector<1x32x32xbf16>
    %45 = vector.shape_cast %44 : vector<1x32x32xbf16> to vector<32x32xbf16>
    %cst_26 = arith.constant dense<0.000000e+00> : vector<16x32xf32>
    %46 = tpu.matmul %43, %45, %cst_26 {dimension_numbers = #tpu.dot_dimension_numbers<[1], [0], [0], [1], [0, 0, 1, 1], [], []>} : vector<16x32xbf16>, vector<32x32xbf16>, vector<16x32xf32> -> vector<16x32xf32>
    %47 = arith.truncf %31 : vector<16x32xf32> to vector<16x32xbf16>
    %c1_27 = arith.constant 1 : index
    %c0_28 = arith.constant 0 : index
    %c0_29 = arith.constant 0 : index
    %48 = vector.load %arg4[%c1_27, %c0_28, %c0_29] : memref<3x32x32xbf16, #tpu.memory_space<vmem>>, vector<1x32x32xbf16>
    %49 = vector.shape_cast %48 : vector<1x32x32xbf16> to vector<32x32xbf16>
    %cst_30 = arith.constant dense<0.000000e+00> : vector<16x32xf32>
    %50 = tpu.matmul %47, %49, %cst_30 {dimension_numbers = #tpu.dot_dimension_numbers<[1], [0], [0], [1], [0, 0, 1, 1], [], []>} : vector<16x32xbf16>, vector<32x32xbf16>, vector<16x32xf32> -> vector<16x32xf32>
    %51 = arith.addf %46, %50 : vector<16x32xf32>
    %52 = arith.truncf %42 : vector<16x32xf32> to vector<16x32xbf16>
    %c2_31 = arith.constant 2 : index
    %c0_32 = arith.constant 0 : index
    %c0_33 = arith.constant 0 : index
    %53 = vector.load %arg4[%c2_31, %c0_32, %c0_33] : memref<3x32x32xbf16, #tpu.memory_space<vmem>>, vector<1x32x32xbf16>
    %54 = vector.shape_cast %53 : vector<1x32x32xbf16> to vector<32x32xbf16>
    %cst_34 = arith.constant dense<0.000000e+00> : vector<16x32xf32>
    %55 = tpu.matmul %52, %54, %cst_34 {dimension_numbers = #tpu.dot_dimension_numbers<[1], [0], [0], [1], [0, 0, 1, 1], [], []>} : vector<16x32xbf16>, vector<32x32xbf16>, vector<16x32xf32> -> vector<16x32xf32>
    %56 = arith.addf %51, %55 : vector<16x32xf32>
    %c0_35 = arith.constant 0 : index
    %c0_36 = arith.constant 0 : index
    %57 = vector.load %arg5[%c0_35, %c0_36] : memref<1x32xf32, #tpu.memory_space<vmem>>, vector<1x32xf32>
    %58 = vector.broadcast %57 : vector<1x32xf32> to vector<16x32xf32>
    %59 = arith.addf %56, %58 : vector<16x32xf32>
    %60 = arith.truncf %1 : vector<16x4xf32> to vector<16x4xbf16>
    %c0_37 = arith.constant 0 : index
    %c0_38 = arith.constant 0 : index
    %61 = vector.load %arg6[%c0_37, %c0_38] : memref<4x32xbf16, #tpu.memory_space<vmem>>, vector<4x32xbf16>
    %cst_39 = arith.constant dense<0.000000e+00> : vector<16x32xf32>
    %62 = tpu.matmul %60, %61, %cst_39 {dimension_numbers = #tpu.dot_dimension_numbers<[1], [0], [0], [1], [0, 0, 1, 1], [], []>} : vector<16x4xbf16>, vector<4x32xbf16>, vector<16x32xf32> -> vector<16x32xf32>
    %c0_40 = arith.constant 0 : index
    %c0_41 = arith.constant 0 : index
    %63 = vector.load %arg7[%c0_40, %c0_41] : memref<1x32xf32, #tpu.memory_space<vmem>>, vector<1x32xf32>
    %64 = vector.broadcast %63 : vector<1x32xf32> to vector<16x32xf32>
    %65 = arith.addf %62, %64 : vector<16x32xf32>
    %66 = arith.addf %59, %65 : vector<16x32xf32>
    %67 = arith.truncf %66 : vector<16x32xf32> to vector<16x32xbf16>
    %c0_42 = arith.constant 0 : index
    %c0_43 = arith.constant 0 : index
    %68 = vector.load %arg8[%c0_42, %c0_43] : memref<32x32xbf16, #tpu.memory_space<vmem>>, vector<32x32xbf16>
    %cst_44 = arith.constant dense<0.000000e+00> : vector<16x32xf32>
    %69 = tpu.matmul %67, %68, %cst_44 {dimension_numbers = #tpu.dot_dimension_numbers<[1], [0], [0], [1], [0, 0, 1, 1], [], []>} : vector<16x32xbf16>, vector<32x32xbf16>, vector<16x32xf32> -> vector<16x32xf32>
    %c0_45 = arith.constant 0 : index
    %c0_46 = arith.constant 0 : index
    %70 = vector.load %arg9[%c0_45, %c0_46] : memref<1x32xf32, #tpu.memory_space<vmem>>, vector<1x32xf32>
    %71 = vector.broadcast %70 : vector<1x32xf32> to vector<16x32xf32>
    %72 = arith.addf %69, %71 : vector<16x32xf32>
    %cst_47 = arith.constant 5.000000e-01 : f32
    %73 = vector.broadcast %cst_47 : f32 to vector<16x32xf32>
    %74 = arith.mulf %72, %73 : vector<16x32xf32>
    %c0_48 = arith.constant 0 : index
    %c0_49 = arith.constant 0 : index
    %75 = vector.load %arg10[%c0_48, %c0_49] : memref<32x32xbf16, #tpu.memory_space<vmem>>, vector<32x32xbf16>
    %cst_50 = arith.constant dense<0.000000e+00> : vector<16x32xf32>
    %76 = tpu.matmul %67, %75, %cst_50 {dimension_numbers = #tpu.dot_dimension_numbers<[1], [0], [0], [1], [0, 0, 1, 1], [], []>} : vector<16x32xbf16>, vector<32x32xbf16>, vector<16x32xf32> -> vector<16x32xf32>
    %c0_51 = arith.constant 0 : index
    %c0_52 = arith.constant 0 : index
    %77 = vector.load %arg11[%c0_51, %c0_52] : memref<1x32xf32, #tpu.memory_space<vmem>>, vector<1x32xf32>
    %78 = vector.broadcast %77 : vector<1x32xf32> to vector<16x32xf32>
    %79 = arith.addf %76, %78 : vector<16x32xf32>
    %c0_53 = arith.constant 0 : index
    %c0_54 = arith.constant 0 : index
    %80 = vector.load %arg12[%c0_53, %c0_54] : memref<32x32xbf16, #tpu.memory_space<vmem>>, vector<32x32xbf16>
    %cst_55 = arith.constant dense<0.000000e+00> : vector<16x32xf32>
    %81 = tpu.matmul %67, %80, %cst_55 {dimension_numbers = #tpu.dot_dimension_numbers<[1], [0], [0], [1], [0, 0, 1, 1], [], []>} : vector<16x32xbf16>, vector<32x32xbf16>, vector<16x32xf32> -> vector<16x32xf32>
    %c0_56 = arith.constant 0 : index
    %c0_57 = arith.constant 0 : index
    %82 = vector.load %arg13[%c0_56, %c0_57] : memref<1x32xf32, #tpu.memory_space<vmem>>, vector<1x32xf32>
    %83 = vector.broadcast %82 : vector<1x32xf32> to vector<16x32xf32>
    %84 = arith.addf %81, %83 : vector<16x32xf32>
    %85 = vector.shape_cast %74 : vector<16x32xf32> to vector<16x8x4xf32>
    %86 = tpu.transpose %85, [1, 0, 2] : vector<16x8x4xf32> -> vector<8x16x4xf32>
    %87 = arith.truncf %86 : vector<8x16x4xf32> to vector<8x16x4xbf16>
    %88 = vector.shape_cast %79 : vector<16x32xf32> to vector<16x8x4xf32>
    %89 = tpu.transpose %88, [1, 0, 2] : vector<16x8x4xf32> -> vector<8x16x4xf32>
    %90 = arith.truncf %89 : vector<8x16x4xf32> to vector<8x16x4xbf16>
    %91 = vector.shape_cast %84 : vector<16x32xf32> to vector<16x8x4xf32>
    %92 = tpu.transpose %91, [1, 0, 2] : vector<16x8x4xf32> -> vector<8x16x4xf32>
    %93 = arith.truncf %92 : vector<8x16x4xf32> to vector<8x16x4xbf16>
    "tpu.trace_start"() <{level = 10 : i32, message = "htd,hsd->hts"}> : () -> ()
    %cst_58 = arith.constant dense<0.000000e+00> : vector<8x16x16xf32>
    %94 = tpu.matmul %87, %90, %cst_58 {dimension_numbers = #tpu.dot_dimension_numbers<[2], [2], [1], [1], [0, 0, 0, 1, 1, 1], [0], [0]>} : vector<8x16x4xbf16>, vector<8x16x4xbf16>, vector<8x16x16xf32> -> vector<8x16x16xf32>
    "tpu.trace_stop"() : () -> ()
    %cst_59 = arith.constant dense<0xFF800000> : vector<8x16xf32>
    %95 = vector.multi_reduction <maximumf>, %94, %cst_59 [2] : vector<8x16x16xf32> to vector<8x16xf32>
    %96 = vector.shape_cast %95 : vector<8x16xf32> to vector<8x16x1xf32>
    %97 = vector.broadcast %96 : vector<8x16x1xf32> to vector<8x16x16xf32>
    %98 = arith.subf %94, %97 : vector<8x16x16xf32>
    %99 = math.exp %98 : vector<8x16x16xf32>
    %cst_60 = arith.constant dense<0.000000e+00> : vector<8x16xf32>
    %100 = vector.multi_reduction <add>, %99, %cst_60 [2] : vector<8x16x16xf32> to vector<8x16xf32>
    %101 = vector.shape_cast %100 : vector<8x16xf32> to vector<8x16x1xf32>
    %102 = tpu.reciprocal %101 {approx = true} : vector<8x16x1xf32> -> vector<8x16x1xf32>
    %103 = vector.broadcast %102 : vector<8x16x1xf32> to vector<8x16x16xf32>
    %104 = arith.mulf %99, %103 : vector<8x16x16xf32>
    %105 = arith.truncf %104 : vector<8x16x16xf32> to vector<8x16x16xbf16>
    "tpu.trace_start"() <{level = 10 : i32, message = "hts,hsd->htd"}> : () -> ()
    %cst_61 = arith.constant dense<0.000000e+00> : vector<8x16x4xf32>
    %106 = tpu.matmul %105, %93, %cst_61 {dimension_numbers = #tpu.dot_dimension_numbers<[2], [1], [1], [2], [0, 0, 0, 1, 1, 2], [0], [0]>} : vector<8x16x16xbf16>, vector<8x16x4xbf16>, vector<8x16x4xf32> -> vector<8x16x4xf32>
    "tpu.trace_stop"() : () -> ()
    %107 = tpu.transpose %106, [1, 0, 2] : vector<8x16x4xf32> -> vector<16x8x4xf32>
    %108 = vector.shape_cast %107 : vector<16x8x4xf32> to vector<16x32xf32>
    %109 = arith.truncf %108 : vector<16x32xf32> to vector<16x32xbf16>
    %c0_62 = arith.constant 0 : index
    %c0_63 = arith.constant 0 : index
    %110 = vector.load %arg14[%c0_62, %c0_63] : memref<32x32xbf16, #tpu.memory_space<vmem>>, vector<32x32xbf16>
    %cst_64 = arith.constant dense<0.000000e+00> : vector<16x32xf32>
    %111 = tpu.matmul %109, %110, %cst_64 {dimension_numbers = #tpu.dot_dimension_numbers<[1], [0], [0], [1], [0, 0, 1, 1], [], []>} : vector<16x32xbf16>, vector<32x32xbf16>, vector<16x32xf32> -> vector<16x32xf32>
    %c0_65 = arith.constant 0 : index
    %c0_66 = arith.constant 0 : index
    %112 = vector.load %arg15[%c0_65, %c0_66] : memref<1x32xf32, #tpu.memory_space<vmem>>, vector<1x32xf32>
    %113 = vector.broadcast %112 : vector<1x32xf32> to vector<16x32xf32>
    %114 = arith.addf %111, %113 : vector<16x32xf32>
    %115 = arith.addf %66, %114 : vector<16x32xf32>
    %116 = tpu.iota {dimensions = array<i32: 0>} : vector<16x32xi32>
    %c0_i32_67 = arith.constant 0 : i32
    %117 = vector.broadcast %c0_i32_67 : i32 to vector<16x32xi32>
    %118 = arith.cmpi eq, %116, %117 : vector<16x32xi32>
    %c1_i32_68 = arith.constant 1 : i32
    %119 = tpu.dynamic_rotate %115 by %c1_i32_68 dim 0 : vector<16x32xf32>, i32 -> vector<16x32xf32>
    %cst_69 = arith.constant 0.000000e+00 : f32
    %120 = vector.broadcast %cst_69 : f32 to vector<16x32xf32>
    %121 = arith.select %118, %120, %119 : vector<16x32xi1>, vector<16x32xf32>
    %c15_i32_70 = arith.constant 15 : i32
    %122 = vector.broadcast %c15_i32_70 : i32 to vector<16x32xi32>
    %123 = arith.cmpi eq, %116, %122 : vector<16x32xi32>
    %c15_i32_71 = arith.constant 15 : i32
    %124 = tpu.dynamic_rotate %115 by %c15_i32_71 dim 0 : vector<16x32xf32>, i32 -> vector<16x32xf32>
    %cst_72 = arith.constant 0.000000e+00 : f32
    %125 = vector.broadcast %cst_72 : f32 to vector<16x32xf32>
    %126 = arith.select %123, %125, %124 : vector<16x32xi1>, vector<16x32xf32>
    %127 = arith.truncf %121 : vector<16x32xf32> to vector<16x32xbf16>
    %c0_73 = arith.constant 0 : index
    %c0_74 = arith.constant 0 : index
    %c0_75 = arith.constant 0 : index
    %128 = vector.load %arg16[%c0_73, %c0_74, %c0_75] : memref<3x32x256xbf16, #tpu.memory_space<vmem>>, vector<1x32x256xbf16>
    %129 = vector.shape_cast %128 : vector<1x32x256xbf16> to vector<32x256xbf16>
    %cst_76 = arith.constant dense<0.000000e+00> : vector<16x256xf32>
    %130 = tpu.matmul %127, %129, %cst_76 {dimension_numbers = #tpu.dot_dimension_numbers<[1], [0], [0], [1], [0, 0, 1, 1], [], []>} : vector<16x32xbf16>, vector<32x256xbf16>, vector<16x256xf32> -> vector<16x256xf32>
    %131 = arith.truncf %115 : vector<16x32xf32> to vector<16x32xbf16>
    %c1_77 = arith.constant 1 : index
    %c0_78 = arith.constant 0 : index
    %c0_79 = arith.constant 0 : index
    %132 = vector.load %arg16[%c1_77, %c0_78, %c0_79] : memref<3x32x256xbf16, #tpu.memory_space<vmem>>, vector<1x32x256xbf16>
    %133 = vector.shape_cast %132 : vector<1x32x256xbf16> to vector<32x256xbf16>
    %cst_80 = arith.constant dense<0.000000e+00> : vector<16x256xf32>
    %134 = tpu.matmul %131, %133, %cst_80 {dimension_numbers = #tpu.dot_dimension_numbers<[1], [0], [0], [1], [0, 0, 1, 1], [], []>} : vector<16x32xbf16>, vector<32x256xbf16>, vector<16x256xf32> -> vector<16x256xf32>
    %135 = arith.addf %130, %134 : vector<16x256xf32>
    %136 = arith.truncf %126 : vector<16x32xf32> to vector<16x32xbf16>
    %c2_81 = arith.constant 2 : index
    %c0_82 = arith.constant 0 : index
    %c0_83 = arith.constant 0 : index
    %137 = vector.load %arg16[%c2_81, %c0_82, %c0_83] : memref<3x32x256xbf16, #tpu.memory_space<vmem>>, vector<1x32x256xbf16>
    %138 = vector.shape_cast %137 : vector<1x32x256xbf16> to vector<32x256xbf16>
    %cst_84 = arith.constant dense<0.000000e+00> : vector<16x256xf32>
    %139 = tpu.matmul %136, %138, %cst_84 {dimension_numbers = #tpu.dot_dimension_numbers<[1], [0], [0], [1], [0, 0, 1, 1], [], []>} : vector<16x32xbf16>, vector<32x256xbf16>, vector<16x256xf32> -> vector<16x256xf32>
    %140 = arith.addf %135, %139 : vector<16x256xf32>
    %c0_85 = arith.constant 0 : index
    %c0_86 = arith.constant 0 : index
    %141 = vector.load %arg17[%c0_85, %c0_86] : memref<1x256xf32, #tpu.memory_space<vmem>>, vector<1x256xf32>
    %142 = vector.broadcast %141 : vector<1x256xf32> to vector<16x256xf32>
    %143 = arith.addf %140, %142 : vector<16x256xf32>
    %cst_87 = arith.constant 0.000000e+00 : f32
    %144 = vector.broadcast %cst_87 : f32 to vector<16x256xf32>
    %145 = arith.maximumf %143, %144 : vector<16x256xf32>
    %146 = tpu.iota {dimensions = array<i32: 0>} : vector<16x256xi32>
    %c0_i32_88 = arith.constant 0 : i32
    %147 = vector.broadcast %c0_i32_88 : i32 to vector<16x256xi32>
    %148 = arith.cmpi eq, %146, %147 : vector<16x256xi32>
    %c1_i32_89 = arith.constant 1 : i32
    %149 = tpu.dynamic_rotate %145 by %c1_i32_89 dim 0 : vector<16x256xf32>, i32 -> vector<16x256xf32>
    %cst_90 = arith.constant 0.000000e+00 : f32
    %150 = vector.broadcast %cst_90 : f32 to vector<16x256xf32>
    %151 = arith.select %148, %150, %149 : vector<16x256xi1>, vector<16x256xf32>
    %c15_i32_91 = arith.constant 15 : i32
    %152 = vector.broadcast %c15_i32_91 : i32 to vector<16x256xi32>
    %153 = arith.cmpi eq, %146, %152 : vector<16x256xi32>
    %c15_i32_92 = arith.constant 15 : i32
    %154 = tpu.dynamic_rotate %145 by %c15_i32_92 dim 0 : vector<16x256xf32>, i32 -> vector<16x256xf32>
    %cst_93 = arith.constant 0.000000e+00 : f32
    %155 = vector.broadcast %cst_93 : f32 to vector<16x256xf32>
    %156 = arith.select %153, %155, %154 : vector<16x256xi1>, vector<16x256xf32>
    %157 = arith.truncf %151 : vector<16x256xf32> to vector<16x256xbf16>
    %c0_94 = arith.constant 0 : index
    %c0_95 = arith.constant 0 : index
    %c0_96 = arith.constant 0 : index
    %158 = vector.load %arg18[%c0_94, %c0_95, %c0_96] : memref<3x256x32xbf16, #tpu.memory_space<vmem>>, vector<1x256x32xbf16>
    %159 = vector.shape_cast %158 : vector<1x256x32xbf16> to vector<256x32xbf16>
    %cst_97 = arith.constant dense<0.000000e+00> : vector<16x32xf32>
    %160 = tpu.matmul %157, %159, %cst_97 {dimension_numbers = #tpu.dot_dimension_numbers<[1], [0], [0], [1], [0, 0, 1, 1], [], []>} : vector<16x256xbf16>, vector<256x32xbf16>, vector<16x32xf32> -> vector<16x32xf32>
    %161 = arith.truncf %145 : vector<16x256xf32> to vector<16x256xbf16>
    %c1_98 = arith.constant 1 : index
    %c0_99 = arith.constant 0 : index
    %c0_100 = arith.constant 0 : index
    %162 = vector.load %arg18[%c1_98, %c0_99, %c0_100] : memref<3x256x32xbf16, #tpu.memory_space<vmem>>, vector<1x256x32xbf16>
    %163 = vector.shape_cast %162 : vector<1x256x32xbf16> to vector<256x32xbf16>
    %cst_101 = arith.constant dense<0.000000e+00> : vector<16x32xf32>
    %164 = tpu.matmul %161, %163, %cst_101 {dimension_numbers = #tpu.dot_dimension_numbers<[1], [0], [0], [1], [0, 0, 1, 1], [], []>} : vector<16x256xbf16>, vector<256x32xbf16>, vector<16x32xf32> -> vector<16x32xf32>
    %165 = arith.addf %160, %164 : vector<16x32xf32>
    %166 = arith.truncf %156 : vector<16x256xf32> to vector<16x256xbf16>
    %c2_102 = arith.constant 2 : index
    %c0_103 = arith.constant 0 : index
    %c0_104 = arith.constant 0 : index
    %167 = vector.load %arg18[%c2_102, %c0_103, %c0_104] : memref<3x256x32xbf16, #tpu.memory_space<vmem>>, vector<1x256x32xbf16>
    %168 = vector.shape_cast %167 : vector<1x256x32xbf16> to vector<256x32xbf16>
    %cst_105 = arith.constant dense<0.000000e+00> : vector<16x32xf32>
    %169 = tpu.matmul %166, %168, %cst_105 {dimension_numbers = #tpu.dot_dimension_numbers<[1], [0], [0], [1], [0, 0, 1, 1], [], []>} : vector<16x256xbf16>, vector<256x32xbf16>, vector<16x32xf32> -> vector<16x32xf32>
    %170 = arith.addf %165, %169 : vector<16x32xf32>
    %c0_106 = arith.constant 0 : index
    %c0_107 = arith.constant 0 : index
    %171 = vector.load %arg19[%c0_106, %c0_107] : memref<1x32xf32, #tpu.memory_space<vmem>>, vector<1x32xf32>
    %172 = vector.broadcast %171 : vector<1x32xf32> to vector<16x32xf32>
    %173 = arith.addf %170, %172 : vector<16x32xf32>
    %174 = arith.addf %115, %173 : vector<16x32xf32>
    %175 = tpu.iota {dimensions = array<i32: 0>} : vector<16x32xi32>
    %c0_i32_108 = arith.constant 0 : i32
    %176 = vector.broadcast %c0_i32_108 : i32 to vector<16x32xi32>
    %177 = arith.cmpi eq, %175, %176 : vector<16x32xi32>
    %c1_i32_109 = arith.constant 1 : i32
    %178 = tpu.dynamic_rotate %174 by %c1_i32_109 dim 0 : vector<16x32xf32>, i32 -> vector<16x32xf32>
    %cst_110 = arith.constant 0.000000e+00 : f32
    %179 = vector.broadcast %cst_110 : f32 to vector<16x32xf32>
    %180 = arith.select %177, %179, %178 : vector<16x32xi1>, vector<16x32xf32>
    %c15_i32_111 = arith.constant 15 : i32
    %181 = vector.broadcast %c15_i32_111 : i32 to vector<16x32xi32>
    %182 = arith.cmpi eq, %175, %181 : vector<16x32xi32>
    %c15_i32_112 = arith.constant 15 : i32
    %183 = tpu.dynamic_rotate %174 by %c15_i32_112 dim 0 : vector<16x32xf32>, i32 -> vector<16x32xf32>
    %cst_113 = arith.constant 0.000000e+00 : f32
    %184 = vector.broadcast %cst_113 : f32 to vector<16x32xf32>
    %185 = arith.select %182, %184, %183 : vector<16x32xi1>, vector<16x32xf32>
    %186 = arith.truncf %180 : vector<16x32xf32> to vector<16x32xbf16>
    %c0_114 = arith.constant 0 : index
    %c0_115 = arith.constant 0 : index
    %c0_116 = arith.constant 0 : index
    %187 = vector.load %arg20[%c0_114, %c0_115, %c0_116] : memref<3x32x4xbf16, #tpu.memory_space<vmem>>, vector<1x32x4xbf16>
    %188 = vector.shape_cast %187 : vector<1x32x4xbf16> to vector<32x4xbf16>
    %cst_117 = arith.constant dense<0.000000e+00> : vector<16x4xf32>
    %189 = tpu.matmul %186, %188, %cst_117 {dimension_numbers = #tpu.dot_dimension_numbers<[1], [0], [0], [1], [0, 0, 1, 1], [], []>} : vector<16x32xbf16>, vector<32x4xbf16>, vector<16x4xf32> -> vector<16x4xf32>
    %190 = arith.truncf %174 : vector<16x32xf32> to vector<16x32xbf16>
    %c1_118 = arith.constant 1 : index
    %c0_119 = arith.constant 0 : index
    %c0_120 = arith.constant 0 : index
    %191 = vector.load %arg20[%c1_118, %c0_119, %c0_120] : memref<3x32x4xbf16, #tpu.memory_space<vmem>>, vector<1x32x4xbf16>
    %192 = vector.shape_cast %191 : vector<1x32x4xbf16> to vector<32x4xbf16>
    %cst_121 = arith.constant dense<0.000000e+00> : vector<16x4xf32>
    %193 = tpu.matmul %190, %192, %cst_121 {dimension_numbers = #tpu.dot_dimension_numbers<[1], [0], [0], [1], [0, 0, 1, 1], [], []>} : vector<16x32xbf16>, vector<32x4xbf16>, vector<16x4xf32> -> vector<16x4xf32>
    %194 = arith.addf %189, %193 : vector<16x4xf32>
    %195 = arith.truncf %185 : vector<16x32xf32> to vector<16x32xbf16>
    %c2_122 = arith.constant 2 : index
    %c0_123 = arith.constant 0 : index
    %c0_124 = arith.constant 0 : index
    %196 = vector.load %arg20[%c2_122, %c0_123, %c0_124] : memref<3x32x4xbf16, #tpu.memory_space<vmem>>, vector<1x32x4xbf16>
    %197 = vector.shape_cast %196 : vector<1x32x4xbf16> to vector<32x4xbf16>
    %cst_125 = arith.constant dense<0.000000e+00> : vector<16x4xf32>
    %198 = tpu.matmul %195, %197, %cst_125 {dimension_numbers = #tpu.dot_dimension_numbers<[1], [0], [0], [1], [0, 0, 1, 1], [], []>} : vector<16x32xbf16>, vector<32x4xbf16>, vector<16x4xf32> -> vector<16x4xf32>
    %199 = arith.addf %194, %198 : vector<16x4xf32>
    %c0_126 = arith.constant 0 : index
    %c0_127 = arith.constant 0 : index
    %200 = vector.load %arg21[%c0_126, %c0_127] : memref<1x4xf32, #tpu.memory_space<vmem>>, vector<1x4xf32>
    %201 = vector.broadcast %200 : vector<1x4xf32> to vector<16x4xf32>
    %202 = arith.addf %199, %201 : vector<16x4xf32>
    %cst_128 = arith.constant 0.000000e+00 : f32
    %203 = vector.broadcast %cst_128 : f32 to vector<16x4xf32>
    %204 = arith.maximumf %202, %203 : vector<16x4xf32>
    %205 = tpu.iota {dimensions = array<i32: 0>} : vector<16x4xi32>
    %c0_i32_129 = arith.constant 0 : i32
    %206 = vector.broadcast %c0_i32_129 : i32 to vector<16x4xi32>
    %207 = arith.cmpi eq, %205, %206 : vector<16x4xi32>
    %c1_i32_130 = arith.constant 1 : i32
    %208 = tpu.dynamic_rotate %204 by %c1_i32_130 dim 0 : vector<16x4xf32>, i32 -> vector<16x4xf32>
    %cst_131 = arith.constant 0.000000e+00 : f32
    %209 = vector.broadcast %cst_131 : f32 to vector<16x4xf32>
    %210 = arith.select %207, %209, %208 : vector<16x4xi1>, vector<16x4xf32>
    %c15_i32_132 = arith.constant 15 : i32
    %211 = vector.broadcast %c15_i32_132 : i32 to vector<16x4xi32>
    %212 = arith.cmpi eq, %205, %211 : vector<16x4xi32>
    %c15_i32_133 = arith.constant 15 : i32
    %213 = tpu.dynamic_rotate %204 by %c15_i32_133 dim 0 : vector<16x4xf32>, i32 -> vector<16x4xf32>
    %cst_134 = arith.constant 0.000000e+00 : f32
    %214 = vector.broadcast %cst_134 : f32 to vector<16x4xf32>
    %215 = arith.select %212, %214, %213 : vector<16x4xi1>, vector<16x4xf32>
    %216 = arith.truncf %210 : vector<16x4xf32> to vector<16x4xbf16>
    %c0_135 = arith.constant 0 : index
    %c0_136 = arith.constant 0 : index
    %c0_137 = arith.constant 0 : index
    %217 = vector.load %arg22[%c0_135, %c0_136, %c0_137] : memref<3x4x4xbf16, #tpu.memory_space<vmem>>, vector<1x4x4xbf16>
    %218 = vector.shape_cast %217 : vector<1x4x4xbf16> to vector<4x4xbf16>
    %cst_138 = arith.constant dense<0.000000e+00> : vector<16x4xf32>
    %219 = tpu.matmul %216, %218, %cst_138 {dimension_numbers = #tpu.dot_dimension_numbers<[1], [0], [0], [1], [0, 0, 1, 1], [], []>} : vector<16x4xbf16>, vector<4x4xbf16>, vector<16x4xf32> -> vector<16x4xf32>
    %220 = arith.truncf %204 : vector<16x4xf32> to vector<16x4xbf16>
    %c1_139 = arith.constant 1 : index
    %c0_140 = arith.constant 0 : index
    %c0_141 = arith.constant 0 : index
    %221 = vector.load %arg22[%c1_139, %c0_140, %c0_141] : memref<3x4x4xbf16, #tpu.memory_space<vmem>>, vector<1x4x4xbf16>
    %222 = vector.shape_cast %221 : vector<1x4x4xbf16> to vector<4x4xbf16>
    %cst_142 = arith.constant dense<0.000000e+00> : vector<16x4xf32>
    %223 = tpu.matmul %220, %222, %cst_142 {dimension_numbers = #tpu.dot_dimension_numbers<[1], [0], [0], [1], [0, 0, 1, 1], [], []>} : vector<16x4xbf16>, vector<4x4xbf16>, vector<16x4xf32> -> vector<16x4xf32>
    %224 = arith.addf %219, %223 : vector<16x4xf32>
    %225 = arith.truncf %215 : vector<16x4xf32> to vector<16x4xbf16>
    %c2_143 = arith.constant 2 : index
    %c0_144 = arith.constant 0 : index
    %c0_145 = arith.constant 0 : index
    %226 = vector.load %arg22[%c2_143, %c0_144, %c0_145] : memref<3x4x4xbf16, #tpu.memory_space<vmem>>, vector<1x4x4xbf16>
    %227 = vector.shape_cast %226 : vector<1x4x4xbf16> to vector<4x4xbf16>
    %cst_146 = arith.constant dense<0.000000e+00> : vector<16x4xf32>
    %228 = tpu.matmul %225, %227, %cst_146 {dimension_numbers = #tpu.dot_dimension_numbers<[1], [0], [0], [1], [0, 0, 1, 1], [], []>} : vector<16x4xbf16>, vector<4x4xbf16>, vector<16x4xf32> -> vector<16x4xf32>
    %229 = arith.addf %224, %228 : vector<16x4xf32>
    %c0_147 = arith.constant 0 : index
    %c0_148 = arith.constant 0 : index
    %230 = vector.load %arg23[%c0_147, %c0_148] : memref<1x4xf32, #tpu.memory_space<vmem>>, vector<1x4xf32>
    %231 = vector.broadcast %230 : vector<1x4xf32> to vector<16x4xf32>
    %232 = arith.addf %229, %231 : vector<16x4xf32>
    %233 = arith.truncf %174 : vector<16x32xf32> to vector<16x32xbf16>
    %c0_149 = arith.constant 0 : index
    %c0_150 = arith.constant 0 : index
    %234 = vector.load %arg24[%c0_149, %c0_150] : memref<32x4xbf16, #tpu.memory_space<vmem>>, vector<32x4xbf16>
    %cst_151 = arith.constant dense<0.000000e+00> : vector<16x4xf32>
    %235 = tpu.matmul %233, %234, %cst_151 {dimension_numbers = #tpu.dot_dimension_numbers<[1], [0], [0], [1], [0, 0, 1, 1], [], []>} : vector<16x32xbf16>, vector<32x4xbf16>, vector<16x4xf32> -> vector<16x4xf32>
    %c0_152 = arith.constant 0 : index
    %c0_153 = arith.constant 0 : index
    %236 = vector.load %arg25[%c0_152, %c0_153] : memref<1x4xf32, #tpu.memory_space<vmem>>, vector<1x4xf32>
    %237 = vector.broadcast %236 : vector<1x4xf32> to vector<16x4xf32>
    %238 = arith.addf %235, %237 : vector<16x4xf32>
    %239 = arith.addf %232, %238 : vector<16x4xf32>
    %c0_154 = arith.constant 0 : index
    %c0_155 = arith.constant 0 : index
    %c0_156 = arith.constant 0 : index
    %240 = vector.load %arg26[%c0_154, %c0_155, %c0_156] : memref<1x16x4xf32, #tpu.memory_space<vmem>>, vector<1x16x4xf32>
    %241 = vector.shape_cast %240 : vector<1x16x4xf32> to vector<16x4xf32>
    %242 = vector.shape_cast %239 : vector<16x4xf32> to vector<1x16x4xf32>
    tpu.vector_store %arg26[%c0_154, %c0_155, %c0_156], %242 {strides = array<i32>} : memref<1x16x4xf32, #tpu.memory_space<vmem>>, vector<1x16x4xf32>,
    return
  }
  func.func @transform_0(%arg0: i32) -> (i32, i32, i32) {
    %c0_i32 = arith.constant 0 : i32
    %c0_i32_0 = arith.constant 0 : i32
    %c0_i32_1 = arith.constant 0 : i32
    return %arg0, %c0_i32, %c0_i32_0 : i32, i32, i32
  }
  func.func @transform_1(%arg0: i32) -> (i32, i32, i32) {
    %c0_i32 = arith.constant 0 : i32
    %c0_i32_0 = arith.constant 0 : i32
    %c0_i32_1 = arith.constant 0 : i32
    %c0_i32_2 = arith.constant 0 : i32
    return %c0_i32, %c0_i32_0, %c0_i32_1 : i32, i32, i32
  }
  func.func @transform_2(%arg0: i32) -> (i32, i32) {
    %c0_i32 = arith.constant 0 : i32
    %c0_i32_0 = arith.constant 0 : i32
    %c0_i32_1 = arith.constant 0 : i32
    return %c0_i32, %c0_i32_0 : i32, i32
  }
  func.func @transform_3(%arg0: i32) -> (i32, i32, i32) {
    %c0_i32 = arith.constant 0 : i32
    %c0_i32_0 = arith.constant 0 : i32
    %c0_i32_1 = arith.constant 0 : i32
    %c0_i32_2 = arith.constant 0 : i32
    return %c0_i32, %c0_i32_0, %c0_i32_1 : i32, i32, i32
  }
  func.func @transform_4(%arg0: i32) -> (i32, i32) {
    %c0_i32 = arith.constant 0 : i32
    %c0_i32_0 = arith.constant 0 : i32
    %c0_i32_1 = arith.constant 0 : i32
    return %c0_i32, %c0_i32_0 : i32, i32
  }
  func.func @transform_5(%arg0: i32) -> (i32, i32) {
    %c0_i32 = arith.constant 0 : i32
    %c0_i32_0 = arith.constant 0 : i32
    %c0_i32_1 = arith.constant 0 : i32
    return %c0_i32, %c0_i32_0 : i32, i32
  }
  func.func @transform_6(%arg0: i32) -> (i32, i32) {
    %c0_i32 = arith.constant 0 : i32
    %c0_i32_0 = arith.constant 0 : i32
    %c0_i32_1 = arith.constant 0 : i32
    return %c0_i32, %c0_i32_0 : i32, i32
  }
  func.func @transform_7(%arg0: i32) -> (i32, i32) {
    %c0_i32 = arith.constant 0 : i32
    %c0_i32_0 = arith.constant 0 : i32
    %c0_i32_1 = arith.constant 0 : i32
    return %c0_i32, %c0_i32_0 : i32, i32
  }
  func.func @transform_8(%arg0: i32) -> (i32, i32) {
    %c0_i32 = arith.constant 0 : i32
    %c0_i32_0 = arith.constant 0 : i32
    %c0_i32_1 = arith.constant 0 : i32
    return %c0_i32, %c0_i32_0 : i32, i32
  }
  func.func @transform_9(%arg0: i32) -> (i32, i32) {
    %c0_i32 = arith.constant 0 : i32
    %c0_i32_0 = arith.constant 0 : i32
    %c0_i32_1 = arith.constant 0 : i32
    return %c0_i32, %c0_i32_0 : i32, i32
  }
  func.func @transform_10(%arg0: i32) -> (i32, i32) {
    %c0_i32 = arith.constant 0 : i32
    %c0_i32_0 = arith.constant 0 : i32
    %c0_i32_1 = arith.constant 0 : i32
    return %c0_i32, %c0_i32_0 : i32, i32
  }
  func.func @transform_11(%arg0: i32) -> (i32, i32) {
    %c0_i32 = arith.constant 0 : i32
    %c0_i32_0 = arith.constant 0 : i32
    %c0_i32_1 = arith.constant 0 : i32
    return %c0_i32, %c0_i32_0 : i32, i32
  }
  func.func @transform_12(%arg0: i32) -> (i32, i32) {
    %c0_i32 = arith.constant 0 : i32
    %c0_i32_0 = arith.constant 0 : i32
    %c0_i32_1 = arith.constant 0 : i32
    return %c0_i32, %c0_i32_0 : i32, i32
  }
  func.func @transform_13(%arg0: i32) -> (i32, i32) {
    %c0_i32 = arith.constant 0 : i32
    %c0_i32_0 = arith.constant 0 : i32
    %c0_i32_1 = arith.constant 0 : i32
    return %c0_i32, %c0_i32_0 : i32, i32
  }
  func.func @transform_14(%arg0: i32) -> (i32, i32) {
    %c0_i32 = arith.constant 0 : i32
    %c0_i32_0 = arith.constant 0 : i32
    %c0_i32_1 = arith.constant 0 : i32
    return %c0_i32, %c0_i32_0 : i32, i32
  }
  func.func @transform_15(%arg0: i32) -> (i32, i32, i32) {
    %c0_i32 = arith.constant 0 : i32
    %c0_i32_0 = arith.constant 0 : i32
    %c0_i32_1 = arith.constant 0 : i32
    %c0_i32_2 = arith.constant 0 : i32
    return %c0_i32, %c0_i32_0, %c0_i32_1 : i32, i32, i32
  }
  func.func @transform_16(%arg0: i32) -> (i32, i32) {
    %c0_i32 = arith.constant 0 : i32
    %c0_i32_0 = arith.constant 0 : i32
    %c0_i32_1 = arith.constant 0 : i32
    return %c0_i32, %c0_i32_0 : i32, i32
  }
  func.func @transform_17(%arg0: i32) -> (i32, i32, i32) {
    %c0_i32 = arith.constant 0 : i32
    %c0_i32_0 = arith.constant 0 : i32
    %c0_i32_1 = arith.constant 0 : i32
    %c0_i32_2 = arith.constant 0 : i32
    return %c0_i32, %c0_i32_0, %c0_i32_1 : i32, i32, i32
  }
  func.func @transform_18(%arg0: i32) -> (i32, i32) {
    %c0_i32 = arith.constant 0 : i32
    %c0_i32_0 = arith.constant 0 : i32
    %c0_i32_1 = arith.constant 0 : i32
    return %c0_i32, %c0_i32_0 : i32, i32
  }
  func.func @transform_19(%arg0: i32) -> (i32, i32, i32) {
    %c0_i32 = arith.constant 0 : i32
    %c0_i32_0 = arith.constant 0 : i32
    %c0_i32_1 = arith.constant 0 : i32
    %c0_i32_2 = arith.constant 0 : i32
    return %c0_i32, %c0_i32_0, %c0_i32_1 : i32, i32, i32
  }
  func.func @transform_20(%arg0: i32) -> (i32, i32) {
    %c0_i32 = arith.constant 0 : i32
    %c0_i32_0 = arith.constant 0 : i32
    %c0_i32_1 = arith.constant 0 : i32
    return %c0_i32, %c0_i32_0 : i32, i32
  }
  func.func @transform_21(%arg0: i32) -> (i32, i32, i32) {
    %c0_i32 = arith.constant 0 : i32
    %c0_i32_0 = arith.constant 0 : i32
    %c0_i32_1 = arith.constant 0 : i32
    %c0_i32_2 = arith.constant 0 : i32
    return %c0_i32, %c0_i32_0, %c0_i32_1 : i32, i32, i32
  }
  func.func @transform_22(%arg0: i32) -> (i32, i32) {
    %c0_i32 = arith.constant 0 : i32
    %c0_i32_0 = arith.constant 0 : i32
    %c0_i32_1 = arith.constant 0 : i32
    return %c0_i32, %c0_i32_0 : i32, i32
  }
  func.func @transform_23(%arg0: i32) -> (i32, i32) {
    %c0_i32 = arith.constant 0 : i32
    %c0_i32_0 = arith.constant 0 : i32
    %c0_i32_1 = arith.constant 0 : i32
    return %c0_i32, %c0_i32_0 : i32, i32
  }
  func.func @transform_24(%arg0: i32) -> (i32, i32) {
    %c0_i32 = arith.constant 0 : i32
    %c0_i32_0 = arith.constant 0 : i32
    %c0_i32_1 = arith.constant 0 : i32
    return %c0_i32, %c0_i32_0 : i32, i32
  }
  func.func @transform_25(%arg0: i32) -> (i32, i32, i32) {
    %c0_i32 = arith.constant 0 : i32
    %c0_i32_0 = arith.constant 0 : i32
    %c0_i32_1 = arith.constant 0 : i32
    return %arg0, %c0_i32, %c0_i32_0 : i32, i32, i32
  }
}

</mosaic_0001>

<llo_original>
// kernel: conv_block_forward.1
$region0: #{conv_block_forward.1}
  #allocation0 [shape = 'u32[]', space=smem, size = 0x4, offset = 0x4, fixed_abs, tag = 'smem constant byte address 0x4 - core index']
  #allocation1 [shape = 'u32[144,128]{1,0:T(1,128)}', space=vmem, size = 0x12000, scoped, tag = 'internal scratch']
  %s0 = inlined_call_operand.vmem [shape: f32[2,16,4], index: 0, kind: input, shape index: {}]
  %s1 = inlined_call_operand.vmem [shape: bf16[3,4,32], index: 1, kind: input, shape index: {}]
  %s2 = inlined_call_operand.vmem [shape: f32[1,32], index: 2, kind: input, shape index: {}]
  %s3 = inlined_call_operand.vmem [shape: bf16[3,32,32], index: 3, kind: input, shape index: {}]
  %s4 = inlined_call_operand.vmem [shape: f32[1,32], index: 4, kind: input, shape index: {}]
  %s5 = inlined_call_operand.vmem [shape: bf16[4,32], index: 5, kind: input, shape index: {}]
  %s6 = inlined_call_operand.vmem [shape: f32[1,32], index: 6, kind: input, shape index: {}]
  %s7 = inlined_call_operand.vmem [shape: bf16[32,32], index: 7, kind: input, shape index: {}]
  %s8 = inlined_call_operand.vmem [shape: f32[1,32], index: 8, kind: input, shape index: {}]
  %s9 = inlined_call_operand.vmem [shape: bf16[32,32], index: 9, kind: input, shape index: {}]
  %s10 = inlined_call_operand.vmem [shape: f32[1,32], index: 10, kind: input, shape index: {}]
  %s11 = inlined_call_operand.vmem [shape: bf16[32,32], index: 11, kind: input, shape index: {}]
  %s12 = inlined_call_operand.vmem [shape: f32[1,32], index: 12, kind: input, shape index: {}]
  %s13 = inlined_call_operand.vmem [shape: bf16[32,32], index: 13, kind: input, shape index: {}]
  %s14 = inlined_call_operand.vmem [shape: f32[1,32], index: 14, kind: input, shape index: {}]
  %s15 = inlined_call_operand.vmem [shape: bf16[3,32,256], index: 15, kind: input, shape index: {}]
  %s16 = inlined_call_operand.vmem [shape: f32[1,256], index: 16, kind: input, shape index: {}]
  %s17 = inlined_call_operand.vmem [shape: bf16[3,256,32], index: 17, kind: input, shape index: {}]
  %s18 = inlined_call_operand.vmem [shape: f32[1,32], index: 18, kind: input, shape index: {}]
  %s19 = inlined_call_operand.vmem [shape: bf16[3,32,4], index: 19, kind: input, shape index: {}]
  %s20 = inlined_call_operand.vmem [shape: f32[1,4], index: 20, kind: input, shape index: {}]
  %s21 = inlined_call_operand.vmem [shape: bf16[3,4,4], index: 21, kind: input, shape index: {}]
  %s22 = inlined_call_operand.vmem [shape: f32[1,4], index: 22, kind: input, shape index: {}]
  %s23 = inlined_call_operand.vmem [shape: bf16[32,4], index: 23, kind: input, shape index: {}]
  %s24 = inlined_call_operand.vmem [shape: f32[1,4], index: 24, kind: input, shape index: {}]
  %s25 = inlined_call_operand.vmem [shape: f32[2,16,4], index: 25, kind: output, shape index: {}]
  %s26 = sld [smem:[#allocation0]]
  $region133: #{conv_block_forward.1} parent=0
    _
  %s28 = ssub.s32 1, %s26
  %s29 = scalar_select 0, %s28, %s26
  loop: start=0, step=1, limit=4
  $region2: #{conv_block_forward.1} parent=0 // loop_pre_header
    _
  $region3: #{conv_block_forward.1} parent=0 // loop_header
    %s31 = sphi 0, %s35
    %p32 = scmp.ge.s32.totalorder %s31, 4
    %s41 = sphi 0, %s43
    %s44 = sphi 0, %s41
    %s45 = sphi 0, %s44
    %s61 = sphi 0, %s45
    %s65 = sphi 0, %s65
    %s67 = sphi 0, %s65
    %s68 = sphi 0, %s67
    %s82 = sphi 0, %s68
    %s86 = sphi 0, %s86
    %s88 = sphi 0, %s86
    %s89 = sphi 0, %s88
    %s103 = sphi 0, %s89
    %s107 = sphi 0, %s107
    %s109 = sphi 0, %s107
    %s110 = sphi 0, %s109
    %s124 = sphi 0, %s110
    %s128 = sphi 0, %s128
    %s130 = sphi 0, %s128
    %s131 = sphi 0, %s130
    %s145 = sphi 0, %s131
    %s149 = sphi 0, %s149
    %s151 = sphi 0, %s149
    %s152 = sphi 0, %s151
    %s166 = sphi 0, %s152
    %s170 = sphi 0, %s170
    %s172 = sphi 0, %s170
    %s173 = sphi 0, %s172
    %s187 = sphi 0, %s173
    %s191 = sphi 0, %s191
    %s193 = sphi 0, %s191
    %s194 = sphi 0, %s193
    %s208 = sphi 0, %s194
    %s212 = sphi 0, %s212
    %s214 = sphi 0, %s212
    %s215 = sphi 0, %s214
    %s229 = sphi 0, %s215
    %s233 = sphi 0, %s233
    %s235 = sphi 0, %s233
    %s236 = sphi 0, %s235
    %s250 = sphi 0, %s236
    %s254 = sphi 0, %s254
    %s256 = sphi 0, %s254
    %s257 = sphi 0, %s256
    %s271 = sphi 0, %s257
    %s275 = sphi 0, %s275
    %s277 = sphi 0, %s275
    %s278 = sphi 0, %s277
    %s292 = sphi 0, %s278
    %s296 = sphi 0, %s296
    %s298 = sphi 0, %s296
    %s299 = sphi 0, %s298
    %s313 = sphi 0, %s299
    %s317 = sphi 0, %s317
    %s319 = sphi 0, %s317
    %s320 = sphi 0, %s319
    %s334 = sphi 0, %s320
    %s338 = sphi 0, %s338
    %s340 = sphi 0, %s338
    %s341 = sphi 0, %s340
    %s355 = sphi 0, %s341
    %s359 = sphi 0, %s359
    %s361 = sphi 0, %s359
    %s362 = sphi 0, %s361
    %s376 = sphi 0, %s362
    %s380 = sphi 0, %s380
    %s382 = sphi 0, %s380
    %s383 = sphi 0, %s382
    %s397 = sphi 0, %s383
    %s401 = sphi 0, %s401
    %s403 = sphi 0, %s401
    %s404 = sphi 0, %s403
    %s418 = sphi 0, %s404
    %s422 = sphi 0, %s422
    %s424 = sphi 0, %s422
    %s425 = sphi 0, %s424
    %s439 = sphi 0, %s425
    %s443 = sphi 0, %s443
    %s445 = sphi 0, %s443
    %s446 = sphi 0, %s445
    %s460 = sphi 0, %s446
    %s464 = sphi 0, %s464
    %s466 = sphi 0, %s464
    %s467 = sphi 0, %s466
    %s481 = sphi 0, %s467
    %s485 = sphi 0, %s485
    %s487 = sphi 0, %s485
    %s488 = sphi 0, %s487
    %s502 = sphi 0, %s488
    %s506 = sphi 0, %s506
    %s508 = sphi 0, %s506
    %s509 = sphi 0, %s508
    %s523 = sphi 0, %s509
    %s527 = sphi 0, %s527
    %s529 = sphi 0, %s527
    %s530 = sphi 0, %s529
    %s544 = sphi 0, %s530
    %s548 = sphi 0, %s548
    %s550 = sphi 0, %s548
    %s551 = sphi 0, %s550
    %s565 = sphi 0, %s551
    %s571 = sphi 0, %s573
    %s574 = sphi 0, %s571
    %s575 = sphi 0, %s574
    %s591 = sphi 0, %s575
  $region4: #{conv_block_forward.1} parent=0 // loop_header_branch
    %34 = sbr.rel (%p32) target = $region8
  $region5: #{conv_block_forward.1} parent=0 // loop_body
    %s36 = ssub.s32 %s31, 1
    %s37 = ssub.s32 %s31, 2
    %s38 = sadd.s32 %s31, 1
    %s39 = ssub.s32 %s31, %s38
    %p40 = scmp.eq.s32.totalorder %s39, 0
    %s42 = sadd.s32 %s41, 1
    %s43 = scalar_select %p40, %s41, %s42
    %p46 = pneg %p40
    %p47 = scmp.eq.s32.totalorder %s31, 1
    %p48 = por %p46, %p47
    %p49 = scmp.ne.s32.totalorder %s41, %s44
    %p50 = scmp.eq.s32.totalorder %s31, 0
    %p51 = por %p49, %p50
    %p52 = scmp.ne.s32.totalorder %s41, %s44
    %p53 = scmp.eq.s32.totalorder %s36, 1
    %p54 = por %p52, %p53
    %p55 = scmp.ne.s32.totalorder %s44, %s45
    %p56 = scmp.eq.s32.totalorder %s36, 0
    %p57 = por %p55, %p56
    %p58 = scmp.ne.s32.totalorder %s44, %s45
    %p59 = scmp.eq.s32.totalorder %s37, 1
    %p60 = por %p58, %p59
    %p62 = scmp.ne.s32.totalorder %s45, %s61
    %p63 = scmp.eq.s32.totalorder %s37, 0
    %p64 = por %p62, %p63
    %s66 = sadd.s32 %s65, 1
    %p69 = scmp.eq.s32.totalorder %s31, 1
    %p70 = scmp.ne.s32.totalorder %s65, %s67
    %p71 = scmp.eq.s32.totalorder %s31, 0
    %p72 = por %p70, %p71
    %p73 = scmp.ne.s32.totalorder %s65, %s67
    %p74 = scmp.eq.s32.totalorder %s36, 1
    %p75 = por %p73, %p74
    %p76 = scmp.ne.s32.totalorder %s67, %s68
    %p77 = scmp.eq.s32.totalorder %s36, 0
    %p78 = por %p76, %p77
    %p79 = scmp.ne.s32.totalorder %s67, %s68
    %p80 = scmp.eq.s32.totalorder %s37, 1
    %p81 = por %p79, %p80
    %p83 = scmp.ne.s32.totalorder %s68, %s82
    %p84 = scmp.eq.s32.totalorder %s37, 0
    %p85 = por %p83, %p84
    %s87 = sadd.s32 %s86, 1
    %p90 = scmp.eq.s32.totalorder %s31, 1
    %p91 = scmp.ne.s32.totalorder %s86, %s88
    %p92 = scmp.eq.s32.totalorder %s31, 0
    %p93 = por %p91, %p92
    %p94 = scmp.ne.s32.totalorder %s86, %s88
    %p95 = scmp.eq.s32.totalorder %s36, 1
    %p96 = por %p94, %p95
    %p97 = scmp.ne.s32.totalorder %s88, %s89
    %p98 = scmp.eq.s32.totalorder %s36, 0
    %p99 = por %p97, %p98
    %p100 = scmp.ne.s32.totalorder %s88, %s89
    %p101 = scmp.eq.s32.totalorder %s37, 1
    %p102 = por %p100, %p101
    %p104 = scmp.ne.s32.totalorder %s89, %s103
    %p105 = scmp.eq.s32.totalorder %s37, 0
    %p106 = por %p104, %p105
    %s108 = sadd.s32 %s107, 1
    %p111 = scmp.eq.s32.totalorder %s31, 1
    %p112 = scmp.ne.s32.totalorder %s107, %s109
    %p113 = scmp.eq.s32.totalorder %s31, 0
    %p114 = por %p112, %p113
    %p115 = scmp.ne.s32.totalorder %s107, %s109
    %p116 = scmp.eq.s32.totalorder %s36, 1
    %p117 = por %p115, %p116
    %p118 = scmp.ne.s32.totalorder %s109, %s110
    %p119 = scmp.eq.s32.totalorder %s36, 0
    %p120 = por %p118, %p119
    %p121 = scmp.ne.s32.totalorder %s109, %s110
    %p122 = scmp.eq.s32.totalorder %s37, 1
    %p123 = por %p121, %p122
    %p125 = scmp.ne.s32.totalorder %s110, %s124
    %p126 = scmp.eq.s32.totalorder %s37, 0
    %p127 = por %p125, %p126
    %s129 = sadd.s32 %s128, 1
    %p132 = scmp.eq.s32.totalorder %s31, 1
    %p133 = scmp.ne.s32.totalorder %s128, %s130
    %p134 = scmp.eq.s32.totalorder %s31, 0
    %p135 = por %p133, %p134
    %p136 = scmp.ne.s32.totalorder %s128, %s130
    %p137 = scmp.eq.s32.totalorder %s36, 1
    %p138 = por %p136, %p137
    %p139 = scmp.ne.s32.totalorder %s130, %s131
    %p140 = scmp.eq.s32.totalorder %s36, 0
    %p141 = por %p139, %p140
    %p142 = scmp.ne.s32.totalorder %s130, %s131
    %p143 = scmp.eq.s32.totalorder %s37, 1
    %p144 = por %p142, %p143
    %p146 = scmp.ne.s32.totalorder %s131, %s145
    %p147 = scmp.eq.s32.totalorder %s37, 0
    %p148 = por %p146, %p147
    %s150 = sadd.s32 %s149, 1
    %p153 = scmp.eq.s32.totalorder %s31, 1
    %p154 = scmp.ne.s32.totalorder %s149, %s151
    %p155 = scmp.eq.s32.totalorder %s31, 0
    %p156 = por %p154, %p155
    %p157 = scmp.ne.s32.totalorder %s149, %s151
    %p158 = scmp.eq.s32.totalorder %s36, 1
    %p159 = por %p157, %p158
    %p160 = scmp.ne.s32.totalorder %s151, %s152
    %p161 = scmp.eq.s32.totalorder %s36, 0
    %p162 = por %p160, %p161
    %p163 = scmp.ne.s32.totalorder %s151, %s152
    %p164 = scmp.eq.s32.totalorder %s37, 1
    %p165 = por %p163, %p164
    %p167 = scmp.ne.s32.totalorder %s152, %s166
    %p168 = scmp.eq.s32.totalorder %s37, 0
    %p169 = por %p167, %p168
    %s171 = sadd.s32 %s170, 1
    %p174 = scmp.eq.s32.totalorder %s31, 1
    %p175 = scmp.ne.s32.totalorder %s170, %s172
    %p176 = scmp.eq.s32.totalorder %s31, 0
    %p177 = por %p175, %p176
    %p178 = scmp.ne.s32.totalorder %s170, %s172
    %p179 = scmp.eq.s32.totalorder %s36, 1
    %p180 = por %p178, %p179
    %p181 = scmp.ne.s32.totalorder %s172, %s173
    %p182 = scmp.eq.s32.totalorder %s36, 0
    %p183 = por %p181, %p182
    %p184 = scmp.ne.s32.totalorder %s172, %s173
    %p185 = scmp.eq.s32.totalorder %s37, 1
    %p186 = por %p184, %p185
    %p188 = scmp.ne.s32.totalorder %s173, %s187
    %p189 = scmp.eq.s32.totalorder %s37, 0
    %p190 = por %p188, %p189
    %s192 = sadd.s32 %s191, 1
    %p195 = scmp.eq.s32.totalorder %s31, 1
    %p196 = scmp.ne.s32.totalorder %s191, %s193
    %p197 = scmp.eq.s32.totalorder %s31, 0
    %p198 = por %p196, %p197
    %p199 = scmp.ne.s32.totalorder %s191, %s193
    %p200 = scmp.eq.s32.totalorder %s36, 1
    %p201 = por %p199, %p200
    %p202 = scmp.ne.s32.totalorder %s193, %s194
    %p203 = scmp.eq.s32.totalorder %s36, 0
    %p204 = por %p202, %p203
    %p205 = scmp.ne.s32.totalorder %s193, %s194
    %p206 = scmp.eq.s32.totalorder %s37, 1
    %p207 = por %p205, %p206
    %p209 = scmp.ne.s32.totalorder %s194, %s208
    %p210 = scmp.eq.s32.totalorder %s37, 0
    %p211 = por %p209, %p210
    %s213 = sadd.s32 %s212, 1
    %p216 = scmp.eq.s32.totalorder %s31, 1
    %p217 = scmp.ne.s32.totalorder %s212, %s214
    %p218 = scmp.eq.s32.totalorder %s31, 0
    %p219 = por %p217, %p218
    %p220 = scmp.ne.s32.totalorder %s212, %s214
    %p221 = scmp.eq.s32.totalorder %s36, 1
    %p222 = por %p220, %p221
    %p223 = scmp.ne.s32.totalorder %s214, %s215
    %p224 = scmp.eq.s32.totalorder %s36, 0
    %p225 = por %p223, %p224
    %p226 = scmp.ne.s32.totalorder %s214, %s215
    %p227 = scmp.eq.s32.totalorder %s37, 1
    %p228 = por %p226, %p227
    %p230 = scmp.ne.s32.totalorder %s215, %s229
    %p231 = scmp.eq.s32.totalorder %s37, 0
    %p232 = por %p230, %p231
    %s234 = sadd.s32 %s233, 1
    %p237 = scmp.eq.s32.totalorder %s31, 1
    %p238 = scmp.ne.s32.totalorder %s233, %s235
    %p239 = scmp.eq.s32.totalorder %s31, 0
    %p240 = por %p238, %p239
    %p241 = scmp.ne.s32.totalorder %s233, %s235
    %p242 = scmp.eq.s32.totalorder %s36, 1
    %p243 = por %p241, %p242
    %p244 = scmp.ne.s32.totalorder %s235, %s236
    %p245 = scmp.eq.s32.totalorder %s36, 0
    %p246 = por %p244, %p245
    %p247 = scmp.ne.s32.totalorder %s235, %s236
    %p248 = scmp.eq.s32.totalorder %s37, 1
    %p249 = por %p247, %p248
    %p251 = scmp.ne.s32.totalorder %s236, %s250
    %p252 = scmp.eq.s32.totalorder %s37, 0
    %p253 = por %p251, %p252
    %s255 = sadd.s32 %s254, 1
    %p258 = scmp.eq.s32.totalorder %s31, 1
    %p259 = scmp.ne.s32.totalorder %s254, %s256
    %p260 = scmp.eq.s32.totalorder %s31, 0
    %p261 = por %p259, %p260
    %p262 = scmp.ne.s32.totalorder %s254, %s256
    %p263 = scmp.eq.s32.totalorder %s36, 1
    %p264 = por %p262, %p263
    %p265 = scmp.ne.s32.totalorder %s256, %s257
    %p266 = scmp.eq.s32.totalorder %s36, 0
    %p267 = por %p265, %p266
    %p268 = scmp.ne.s32.totalorder %s256, %s257
    %p269 = scmp.eq.s32.totalorder %s37, 1
    %p270 = por %p268, %p269
    %p272 = scmp.ne.s32.totalorder %s257, %s271
    %p273 = scmp.eq.s32.totalorder %s37, 0
    %p274 = por %p272, %p273
    %s276 = sadd.s32 %s275, 1
    %p279 = scmp.eq.s32.totalorder %s31, 1
    %p280 = scmp.ne.s32.totalorder %s275, %s277
    %p281 = scmp.eq.s32.totalorder %s31, 0
    %p282 = por %p280, %p281
    %p283 = scmp.ne.s32.totalorder %s275, %s277
    %p284 = scmp.eq.s32.totalorder %s36, 1
    %p285 = por %p283, %p284
    %p286 = scmp.ne.s32.totalorder %s277, %s278
    %p287 = scmp.eq.s32.totalorder %s36, 0
    %p288 = por %p286, %p287
    %p289 = scmp.ne.s32.totalorder %s277, %s278
    %p290 = scmp.eq.s32.totalorder %s37, 1
    %p291 = por %p289, %p290
    %p293 = scmp.ne.s32.totalorder %s278, %s292
    %p294 = scmp.eq.s32.totalorder %s37, 0
    %p295 = por %p293, %p294
    %s297 = sadd.s32 %s296, 1
    %p300 = scmp.eq.s32.totalorder %s31, 1
    %p301 = scmp.ne.s32.totalorder %s296, %s298
    %p302 = scmp.eq.s32.totalorder %s31, 0
    %p303 = por %p301, %p302
    %p304 = scmp.ne.s32.totalorder %s296, %s298
    %p305 = scmp.eq.s32.totalorder %s36, 1
    %p306 = por %p304, %p305
    %p307 = scmp.ne.s32.totalorder %s298, %s299
    %p308 = scmp.eq.s32.totalorder %s36, 0
    %p309 = por %p307, %p308
    %p310 = scmp.ne.s32.totalorder %s298, %s299
    %p311 = scmp.eq.s32.totalorder %s37, 1
    %p312 = por %p310, %p311
    %p314 = scmp.ne.s32.totalorder %s299, %s313
    %p315 = scmp.eq.s32.totalorder %s37, 0
    %p316 = por %p314, %p315
    %s318 = sadd.s32 %s317, 1
    %p321 = scmp.eq.s32.totalorder %s31, 1
    %p322 = scmp.ne.s32.totalorder %s317, %s319
    %p323 = scmp.eq.s32.totalorder %s31, 0
    %p324 = por %p322, %p323
    %p325 = scmp.ne.s32.totalorder %s317, %s319
    %p326 = scmp.eq.s32.totalorder %s36, 1
    %p327 = por %p325, %p326
    %p328 = scmp.ne.s32.totalorder %s319, %s320
    %p329 = scmp.eq.s32.totalorder %s36, 0
    %p330 = por %p328, %p329
    %p331 = scmp.ne.s32.totalorder %s319, %s320
    %p332 = scmp.eq.s32.totalorder %s37, 1
    %p333 = por %p331, %p332
    %p335 = scmp.ne.s32.totalorder %s320, %s334
    %p336 = scmp.eq.s32.totalorder %s37, 0
    %p337 = por %p335, %p336
    %s339 = sadd.s32 %s338, 1
    %p342 = scmp.eq.s32.totalorder %s31, 1
    %p343 = scmp.ne.s32.totalorder %s338, %s340
    %p344 = scmp.eq.s32.totalorder %s31, 0
    %p345 = por %p343, %p344
    %p346 = scmp.ne.s32.totalorder %s338, %s340
    %p347 = scmp.eq.s32.totalorder %s36, 1
    %p348 = por %p346, %p347
    %p349 = scmp.ne.s32.totalorder %s340, %s341
    %p350 = scmp.eq.s32.totalorder %s36, 0
    %p351 = por %p349, %p350
    %p352 = scmp.ne.s32.totalorder %s340, %s341
    %p353 = scmp.eq.s32.totalorder %s37, 1
    %p354 = por %p352, %p353
    %p356 = scmp.ne.s32.totalorder %s341, %s355
    %p357 = scmp.eq.s32.totalorder %s37, 0
    %p358 = por %p356, %p357
    %s360 = sadd.s32 %s359, 1
    %p363 = scmp.eq.s32.totalorder %s31, 1
    %p364 = scmp.ne.s32.totalorder %s359, %s361
    %p365 = scmp.eq.s32.totalorder %s31, 0
    %p366 = por %p364, %p365
    %p367 = scmp.ne.s32.totalorder %s359, %s361
    %p368 = scmp.eq.s32.totalorder %s36, 1
    %p369 = por %p367, %p368
    %p370 = scmp.ne.s32.totalorder %s361, %s362
    %p371 = scmp.eq.s32.totalorder %s36, 0
    %p372 = por %p370, %p371
    %p373 = scmp.ne.s32.totalorder %s361, %s362
    %p374 = scmp.eq.s32.totalorder %s37, 1
    %p375 = por %p373, %p374
    %p377 = scmp.ne.s32.totalorder %s362, %s376
    %p378 = scmp.eq.s32.totalorder %s37, 0
    %p379 = por %p377, %p378
    %s381 = sadd.s32 %s380, 1
    %p384 = scmp.eq.s32.totalorder %s31, 1
    %p385 = scmp.ne.s32.totalorder %s380, %s382
    %p386 = scmp.eq.s32.totalorder %s31, 0
    %p387 = por %p385, %p386
    %p388 = scmp.ne.s32.totalorder %s380, %s382
    %p389 = scmp.eq.s32.totalorder %s36, 1
    %p390 = por %p388, %p389
    %p391 = scmp.ne.s32.totalorder %s382, %s383
    %p392 = scmp.eq.s32.totalorder %s36, 0
    %p393 = por %p391, %p392
    %p394 = scmp.ne.s32.totalorder %s382, %s383
    %p395 = scmp.eq.s32.totalorder %s37, 1
    %p396 = por %p394, %p395
    %p398 = scmp.ne.s32.totalorder %s383, %s397
    %p399 = scmp.eq.s32.totalorder %s37, 0
    %p400 = por %p398, %p399
    %s402 = sadd.s32 %s401, 1
    %p405 = scmp.eq.s32.totalorder %s31, 1
    %p406 = scmp.ne.s32.totalorder %s401, %s403
    %p407 = scmp.eq.s32.totalorder %s31, 0
    %p408 = por %p406, %p407
    %p409 = scmp.ne.s32.totalorder %s401, %s403
    %p410 = scmp.eq.s32.totalorder %s36, 1
    %p411 = por %p409, %p410
    %p412 = scmp.ne.s32.totalorder %s403, %s404
    %p413 = scmp.eq.s32.totalorder %s36, 0
    %p414 = por %p412, %p413
    %p415 = scmp.ne.s32.totalorder %s403, %s404
    %p416 = scmp.eq.s32.totalorder %s37, 1
    %p417 = por %p415, %p416
    %p419 = scmp.ne.s32.totalorder %s404, %s418
    %p420 = scmp.eq.s32.totalorder %s37, 0
    %p421 = por %p419, %p420
    %s423 = sadd.s32 %s422, 1
    %p426 = scmp.eq.s32.totalorder %s31, 1
    %p427 = scmp.ne.s32.totalorder %s422, %s424
    %p428 = scmp.eq.s32.totalorder %s31, 0
    %p429 = por %p427, %p428
    %p430 = scmp.ne.s32.totalorder %s422, %s424
    %p431 = scmp.eq.s32.totalorder %s36, 1
    %p432 = por %p430, %p431
    %p433 = scmp.ne.s32.totalorder %s424, %s425
    %p434 = scmp.eq.s32.totalorder %s36, 0
    %p435 = por %p433, %p434
    %p436 = scmp.ne.s32.totalorder %s424, %s425
    %p437 = scmp.eq.s32.totalorder %s37, 1
    %p438 = por %p436, %p437
    %p440 = scmp.ne.s32.totalorder %s425, %s439
    %p441 = scmp.eq.s32.totalorder %s37, 0
    %p442 = por %p440, %p441
    %s444 = sadd.s32 %s443, 1
    %p447 = scmp.eq.s32.totalorder %s31, 1
    %p448 = scmp.ne.s32.totalorder %s443, %s445
    %p449 = scmp.eq.s32.totalorder %s31, 0
    %p450 = por %p448, %p449
    %p451 = scmp.ne.s32.totalorder %s443, %s445
    %p452 = scmp.eq.s32.totalorder %s36, 1
    %p453 = por %p451, %p452
    %p454 = scmp.ne.s32.totalorder %s445, %s446
    %p455 = scmp.eq.s32.totalorder %s36, 0
    %p456 = por %p454, %p455
    %p457 = scmp.ne.s32.totalorder %s445, %s446
    %p458 = scmp.eq.s32.totalorder %s37, 1
    %p459 = por %p457, %p458
    %p461 = scmp.ne.s32.totalorder %s446, %s460
    %p462 = scmp.eq.s32.totalorder %s37, 0
    %p463 = por %p461, %p462
    %s465 = sadd.s32 %s464, 1
    %p468 = scmp.eq.s32.totalorder %s31, 1
    %p469 = scmp.ne.s32.totalorder %s464, %s466
    %p470 = scmp.eq.s32.totalorder %s31, 0
    %p471 = por %p469, %p470
    %p472 = scmp.ne.s32.totalorder %s464, %s466
    %p473 = scmp.eq.s32.totalorder %s36, 1
    %p474 = por %p472, %p473
    %p475 = scmp.ne.s32.totalorder %s466, %s467
    %p476 = scmp.eq.s32.totalorder %s36, 0
    %p477 = por %p475, %p476
    %p478 = scmp.ne.s32.totalorder %s466, %s467
    %p479 = scmp.eq.s32.totalorder %s37, 1
    %p480 = por %p478, %p479
    %p482 = scmp.ne.s32.totalorder %s467, %s481
    %p483 = scmp.eq.s32.totalorder %s37, 0
    %p484 = por %p482, %p483
    %s486 = sadd.s32 %s485, 1
    %p489 = scmp.eq.s32.totalorder %s31, 1
    %p490 = scmp.ne.s32.totalorder %s485, %s487
    %p491 = scmp.eq.s32.totalorder %s31, 0
    %p492 = por %p490, %p491
    %p493 = scmp.ne.s32.totalorder %s485, %s487
    %p494 = scmp.eq.s32.totalorder %s36, 1
    %p495 = por %p493, %p494
    %p496 = scmp.ne.s32.totalorder %s487, %s488
    %p497 = scmp.eq.s32.totalorder %s36, 0
    %p498 = por %p496, %p497
    %p499 = scmp.ne.s32.totalorder %s487, %s488
    %p500 = scmp.eq.s32.totalorder %s37, 1
    %p501 = por %p499, %p500
    %p503 = scmp.ne.s32.totalorder %s488, %s502
    %p504 = scmp.eq.s32.totalorder %s37, 0
    %p505 = por %p503, %p504
    %s507 = sadd.s32 %s506, 1
    %p510 = scmp.eq.s32.totalorder %s31, 1
    %p511 = scmp.ne.s32.totalorder %s506, %s508
    %p512 = scmp.eq.s32.totalorder %s31, 0
    %p513 = por %p511, %p512
    %p514 = scmp.ne.s32.totalorder %s506, %s508
    %p515 = scmp.eq.s32.totalorder %s36, 1
    %p516 = por %p514, %p515
    %p517 = scmp.ne.s32.totalorder %s508, %s509
    %p518 = scmp.eq.s32.totalorder %s36, 0
    %p519 = por %p517, %p518
    %p520 = scmp.ne.s32.totalorder %s508, %s509
    %p521 = scmp.eq.s32.totalorder %s37, 1
    %p522 = por %p520, %p521
    %p524 = scmp.ne.s32.totalorder %s509, %s523
    %p525 = scmp.eq.s32.totalorder %s37, 0
    %p526 = por %p524, %p525
    %s528 = sadd.s32 %s527, 1
    %p531 = scmp.eq.s32.totalorder %s31, 1
    %p532 = scmp.ne.s32.totalorder %s527, %s529
    %p533 = scmp.eq.s32.totalorder %s31, 0
    %p534 = por %p532, %p533
    %p535 = scmp.ne.s32.totalorder %s527, %s529
    %p536 = scmp.eq.s32.totalorder %s36, 1
    %p537 = por %p535, %p536
    %p538 = scmp.ne.s32.totalorder %s529, %s530
    %p539 = scmp.eq.s32.totalorder %s36, 0
    %p540 = por %p538, %p539
    %p541 = scmp.ne.s32.totalorder %s529, %s530
    %p542 = scmp.eq.s32.totalorder %s37, 1
    %p543 = por %p541, %p542
    %p545 = scmp.ne.s32.totalorder %s530, %s544
    %p546 = scmp.eq.s32.totalorder %s37, 0
    %p547 = por %p545, %p546
    %s549 = sadd.s32 %s548, 1
    %p552 = scmp.eq.s32.totalorder %s31, 1
    %p553 = scmp.ne.s32.totalorder %s548, %s550
    %p554 = scmp.eq.s32.totalorder %s31, 0
    %p555 = por %p553, %p554
    %p556 = scmp.ne.s32.totalorder %s548, %s550
    %p557 = scmp.eq.s32.totalorder %s36, 1
    %p558 = por %p556, %p557
    %p559 = scmp.ne.s32.totalorder %s550, %s551
    %p560 = scmp.eq.s32.totalorder %s36, 0
    %p561 = por %p559, %p560
    %p562 = scmp.ne.s32.totalorder %s550, %s551
    %p563 = scmp.eq.s32.totalorder %s37, 1
    %p564 = por %p562, %p563
    %p566 = scmp.ne.s32.totalorder %s551, %s565
    %p567 = scmp.eq.s32.totalorder %s37, 0
    %p568 = por %p566, %p567
    %s569 = ssub.s32 %s31, %s38
    %p570 = scmp.eq.s32.totalorder %s569, 0
    %s572 = sadd.s32 %s571, 1
    %s573 = scalar_select %p570, %s571, %s572
    %p576 = pneg %p570
    %p577 = scmp.eq.s32.totalorder %s31, 1
    %p578 = por %p576, %p577
    %p579 = scmp.ne.s32.totalorder %s571, %s574
    %p580 = scmp.eq.s32.totalorder %s31, 0
    %p581 = por %p579, %p580
    %p582 = scmp.ne.s32.totalorder %s571, %s574
    %p583 = scmp.eq.s32.totalorder %s36, 1
    %p584 = por %p582, %p583
    %p585 = scmp.ne.s32.totalorder %s574, %s575
    %p586 = scmp.eq.s32.totalorder %s36, 0
    %p587 = por %p585, %p586
    %p588 = scmp.ne.s32.totalorder %s574, %s575
    %p589 = scmp.eq.s32.totalorder %s37, 1
    %p590 = por %p588, %p589
    %p592 = scmp.ne.s32.totalorder %s575, %s591
    %p593 = scmp.eq.s32.totalorder %s37, 0
    %p594 = por %p592, %p593
    %p595 = scmp.le.s32.totalorder 1, %s31
    %p596 = scmp.lt.s32.totalorder %s31, 3
    %p597 = pnand %p595, %p596
    %p598 = pneg %p597
    // Predicated region
    $region9: #{conv_block_forward.1} parent=5 // pred_check
      _
    $region10: #{conv_block_forward.1} parent=5 // pred_check_branch
      %600 = sbr.rel (%p597) target = $region12
    $region11: #{conv_block_forward.1} parent=5 // pred_region
      %s601 = ssub.s32 %s31, 1
      // Predicated region
      $region13: #{conv_block_forward.1} parent=11 // pred_check
        %p602 = pneg %p78
      $region14: #{conv_block_forward.1} parent=11 // pred_check_branch
        %604 = sbr.rel (%p602) target = $region16
      $region15: #{conv_block_forward.1} parent=11 // pred_region
        _
      $region16: #{conv_block_forward.1} parent=11 // pred_fallthru
        _
      // Predicated region
      $region17: #{conv_block_forward.1} parent=11 // pred_check
        %p605 = pneg %p99
      $region18: #{conv_block_forward.1} parent=11 // pred_check_branch
        %607 = sbr.rel (%p605) target = $region20
      $region19: #{conv_block_forward.1} parent=11 // pred_region
        _
      $region20: #{conv_block_forward.1} parent=11 // pred_fallthru
        _
      // Predicated region
      $region21: #{conv_block_forward.1} parent=11 // pred_check
        %p608 = pneg %p120
      $region22: #{conv_block_forward.1} parent=11 // pred_check_branch
        %610 = sbr.rel (%p608) target = $region24
      $region23: #{conv_block_forward.1} parent=11 // pred_region
        _
      $region24: #{conv_block_forward.1} parent=11 // pred_fallthru
        _
      // Predicated region
      $region25: #{conv_block_forward.1} parent=11 // pred_check
        %p611 = pneg %p141
      $region26: #{conv_block_forward.1} parent=11 // pred_check_branch
        %613 = sbr.rel (%p611) target = $region28
      $region27: #{conv_block_forward.1} parent=11 // pred_region
        _
      $region28: #{conv_block_forward.1} parent=11 // pred_fallthru
        _
      // Predicated region
      $region29: #{conv_block_forward.1} parent=11 // pred_check
        %p614 = pneg %p162
      $region30: #{conv_block_forward.1} parent=11 // pred_check_branch
        %616 = sbr.rel (%p614) target = $region32
      $region31: #{conv_block_forward.1} parent=11 // pred_region
        _
      $region32: #{conv_block_forward.1} parent=11 // pred_fallthru
        _
      // Predicated region
      $region33: #{conv_block_forward.1} parent=11 // pred_check
        %p617 = pneg %p183
      $region34: #{conv_block_forward.1} parent=11 // pred_check_branch
        %619 = sbr.rel (%p617) target = $region36
      $region35: #{conv_block_forward.1} parent=11 // pred_region
        _
      $region36: #{conv_block_forward.1} parent=11 // pred_fallthru
        _
      // Predicated region
      $region37: #{conv_block_forward.1} parent=11 // pred_check
        %p620 = pneg %p204
      $region38: #{conv_block_forward.1} parent=11 // pred_check_branch
        %622 = sbr.rel (%p620) target = $region40
      $region39: #{conv_block_forward.1} parent=11 // pred_region
        _
      $region40: #{conv_block_forward.1} parent=11 // pred_fallthru
        _
      // Predicated region
      $region41: #{conv_block_forward.1} parent=11 // pred_check
        %p623 = pneg %p225
      $region42: #{conv_block_forward.1} parent=11 // pred_check_branch
        %625 = sbr.rel (%p623) target = $region44
      $region43: #{conv_block_forward.1} parent=11 // pred_region
        _
      $region44: #{conv_block_forward.1} parent=11 // pred_fallthru
        _
      // Predicated region
      $region45: #{conv_block_forward.1} parent=11 // pred_check
        %p626 = pneg %p246
      $region46: #{conv_block_forward.1} parent=11 // pred_check_branch
        %628 = sbr.rel (%p626) target = $region48
      $region47: #{conv_block_forward.1} parent=11 // pred_region
        _
      $region48: #{conv_block_forward.1} parent=11 // pred_fallthru
        _
      // Predicated region
      $region49: #{conv_block_forward.1} parent=11 // pred_check
        %p629 = pneg %p267
      $region50: #{conv_block_forward.1} parent=11 // pred_check_branch
        %631 = sbr.rel (%p629) target = $region52
      $region51: #{conv_block_forward.1} parent=11 // pred_region
        _
      $region52: #{conv_block_forward.1} parent=11 // pred_fallthru
        _
      // Predicated region
      $region53: #{conv_block_forward.1} parent=11 // pred_check
        %p632 = pneg %p288
      $region54: #{conv_block_forward.1} parent=11 // pred_check_branch
        %634 = sbr.rel (%p632) target = $region56
      $region55: #{conv_block_forward.1} parent=11 // pred_region
        _
      $region56: #{conv_block_forward.1} parent=11 // pred_fallthru
        _
      // Predicated region
      $region57: #{conv_block_forward.1} parent=11 // pred_check
        %p635 = pneg %p309
      $region58: #{conv_block_forward.1} parent=11 // pred_check_branch
        %637 = sbr.rel (%p635) target = $region60
      $region59: #{conv_block_forward.1} parent=11 // pred_region
        _
      $region60: #{conv_block_forward.1} parent=11 // pred_fallthru
        _
      // Predicated region
      $region61: #{conv_block_forward.1} parent=11 // pred_check
        %p638 = pneg %p330
      $region62: #{conv_block_forward.1} parent=11 // pred_check_branch
        %640 = sbr.rel (%p638) target = $region64
      $region63: #{conv_block_forward.1} parent=11 // pred_region
        _
      $region64: #{conv_block_forward.1} parent=11 // pred_fallthru
        _
      // Predicated region
      $region65: #{conv_block_forward.1} parent=11 // pred_check
        %p641 = pneg %p351
      $region66: #{conv_block_forward.1} parent=11 // pred_check_branch
        %643 = sbr.rel (%p641) target = $region68
      $region67: #{conv_block_forward.1} parent=11 // pred_region
        _
      $region68: #{conv_block_forward.1} parent=11 // pred_fallthru
        _
      // Predicated region
      $region69: #{conv_block_forward.1} parent=11 // pred_check
        %p644 = pneg %p372
      $region70: #{conv_block_forward.1} parent=11 // pred_check_branch
        %646 = sbr.rel (%p644) target = $region72
      $region71: #{conv_block_forward.1} parent=11 // pred_region
        _
      $region72: #{conv_block_forward.1} parent=11 // pred_fallthru
        _
      // Predicated region
      $region73: #{conv_block_forward.1} parent=11 // pred_check
        %p647 = pneg %p393
      $region74: #{conv_block_forward.1} parent=11 // pred_check_branch
        %649 = sbr.rel (%p647) target = $region76
      $region75: #{conv_block_forward.1} parent=11 // pred_region
        _
      $region76: #{conv_block_forward.1} parent=11 // pred_fallthru
        _
      // Predicated region
      $region77: #{conv_block_forward.1} parent=11 // pred_check
        %p650 = pneg %p414
      $region78: #{conv_block_forward.1} parent=11 // pred_check_branch
        %652 = sbr.rel (%p650) target = $region80
      $region79: #{conv_block_forward.1} parent=11 // pred_region
        _
      $region80: #{conv_block_forward.1} parent=11 // pred_fallthru
        _
      // Predicated region
      $region81: #{conv_block_forward.1} parent=11 // pred_check
        %p653 = pneg %p435
      $region82: #{conv_block_forward.1} parent=11 // pred_check_branch
        %655 = sbr.rel (%p653) target = $region84
      $region83: #{conv_block_forward.1} parent=11 // pred_region
        _
      $region84: #{conv_block_forward.1} parent=11 // pred_fallthru
        _
      // Predicated region
      $region85: #{conv_block_forward.1} parent=11 // pred_check
        %p656 = pneg %p456
      $region86: #{conv_block_forward.1} parent=11 // pred_check_branch
        %658 = sbr.rel (%p656) target = $region88
      $region87: #{conv_block_forward.1} parent=11 // pred_region
        _
      $region88: #{conv_block_forward.1} parent=11 // pred_fallthru
        _
      // Predicated region
      $region89: #{conv_block_forward.1} parent=11 // pred_check
        %p659 = pneg %p477
      $region90: #{conv_block_forward.1} parent=11 // pred_check_branch
        %661 = sbr.rel (%p659) target = $region92
      $region91: #{conv_block_forward.1} parent=11 // pred_region
        _
      $region92: #{conv_block_forward.1} parent=11 // pred_fallthru
        _
      // Predicated region
      $region93: #{conv_block_forward.1} parent=11 // pred_check
        %p662 = pneg %p498
      $region94: #{conv_block_forward.1} parent=11 // pred_check_branch
        %664 = sbr.rel (%p662) target = $region96
      $region95: #{conv_block_forward.1} parent=11 // pred_region
        _
      $region96: #{conv_block_forward.1} parent=11 // pred_fallthru
        _
      // Predicated region
      $region97: #{conv_block_forward.1} parent=11 // pred_check
        %p665 = pneg %p519
      $region98: #{conv_block_forward.1} parent=11 // pred_check_branch
        %667 = sbr.rel (%p665) target = $region100
      $region99: #{conv_block_forward.1} parent=11 // pred_region
        _
      $region100: #{conv_block_forward.1} parent=11 // pred_fallthru
        _
      // Predicated region
      $region101: #{conv_block_forward.1} parent=11 // pred_check
        %p668 = pneg %p540
      $region102: #{conv_block_forward.1} parent=11 // pred_check_branch
        %670 = sbr.rel (%p668) target = $region104
      $region103: #{conv_block_forward.1} parent=11 // pred_region
        _
      $region104: #{conv_block_forward.1} parent=11 // pred_fallthru
        _
      // Predicated region
      $region105: #{conv_block_forward.1} parent=11 // pred_check
        %p671 = pneg %p561
      $region106: #{conv_block_forward.1} parent=11 // pred_check_branch
        %673 = sbr.rel (%p671) target = $region108
      $region107: #{conv_block_forward.1} parent=11 // pred_region
        _
      $region108: #{conv_block_forward.1} parent=11 // pred_fallthru
        _
    $region12: #{conv_block_forward.1} parent=5 // pred_fallthru
      _
    %p674 = scmp.lt.s32.totalorder %s31, 2
    // Predicated region
    $region109: #{conv_block_forward.1} parent=5 // pred_check
      %p675 = pneg %p674
    $region110: #{conv_block_forward.1} parent=5 // pred_check_branch
      %677 = sbr.rel (%p675) target = $region112
    $region111: #{conv_block_forward.1} parent=5 // pred_region
      // Predicated region
      $region113: #{conv_block_forward.1} parent=111 // pred_check
        %p678 = pneg %p51
      $region114: #{conv_block_forward.1} parent=111 // pred_check_branch
        %680 = sbr.rel (%p678) target = $region116
      $region115: #{conv_block_forward.1} parent=111 // pred_region
        %p681 = scmp.lt.s32.totalorder %s31, 1
        %s682 = scalar_select %p681, %s31, 1
        %s683 = smul.addr %s682, 2
        %s684 = smul.addr %s683, 8
        %s685 = scalar_lea.vmem %s0, %s684
      $region116: #{conv_block_forward.1} parent=111 // pred_fallthru
        _
    $region112: #{conv_block_forward.1} parent=5 // pred_fallthru
      _
    %p686 = scmp.le.s32.totalorder 1, %s31
    %p687 = scmp.lt.s32.totalorder %s31, 3
    %p688 = pnand %p686, %p687
    %p689 = pneg %p688
    // Predicated region
    $region117: #{conv_block_forward.1} parent=5 // pred_check
      _
    $region118: #{conv_block_forward.1} parent=5 // pred_check_branch
      %691 = sbr.rel (%p688) target = $region120
    $region119: #{conv_block_forward.1} parent=5 // pred_region
      %s692 = ssub.s32 %s31, 1
      %p693 = scmp.lt.s32.totalorder %s36, 1
      %s694 = scalar_select %p693, %s36, 1
      %s695 = smul.addr %s694, 2
      %s696 = smul.addr %s695, 8
      %s697 = scalar_lea.vmem %s0, %s696
      %p698 = pneg %p57
      %p699 = pneg %p54
      %p700 = pneg %p78
      %p701 = pneg %p75
      %p702 = pneg %p99
      %p703 = pneg %p96
      %p704 = pneg %p120
      %p705 = pneg %p117
      %p706 = pneg %p141
      %p707 = pneg %p138
      %p708 = pneg %p162
      %p709 = pneg %p159
      %p710 = pneg %p183
      %p711 = pneg %p180
      %p712 = pneg %p204
      %p713 = pneg %p201
      %p714 = pneg %p225
      %p715 = pneg %p222
      %p716 = pneg %p246
      %p717 = pneg %p243
      %p718 = pneg %p267
      %p719 = pneg %p264
      %p720 = pneg %p288
      %p721 = pneg %p285
      %p722 = pneg %p309
      %p723 = pneg %p306
      %p724 = pneg %p330
      %p725 = pneg %p327
      %p726 = pneg %p351
      %p727 = pneg %p348
      %p728 = pneg %p372
      %p729 = pneg %p369
      %p730 = pneg %p393
      %p731 = pneg %p390
      %p732 = pneg %p414
      %p733 = pneg %p411
      %p734 = pneg %p435
      %p735 = pneg %p432
      %p736 = pneg %p456
      %p737 = pneg %p453
      %p738 = pneg %p477
      %p739 = pneg %p474
      %p740 = pneg %p498
      %p741 = pneg %p495
      %p742 = pneg %p519
      %p743 = pneg %p516
      %p744 = pneg %p540
      %p745 = pneg %p537
      %p746 = pneg %p561
      %p747 = pneg %p558
      %p748 = pneg %p587
      %p749 = pneg %p584
      %p750 = scmp.lt.s32.totalorder %s36, 1
      %s751 = scalar_select %p750, %s36, 1
      %s752 = smul.addr %s751, 2
      %s753 = smul.addr %s752, 8
      %s754 = scalar_lea.vmem %s25, %s753
      %p755 = scmp.lt.s32.totalorder %s36, 1
      %s756 = scalar_select %p755, %s36, 1
      %s757 = smul.addr %s756, 2
      %s758 = smul.addr %s757, 8
      %s759 = scalar_lea.vmem %s0, %s758
      %p760 = scmp.lt.s32.totalorder %s36, 1
      %s761 = scalar_select %p760, %s36, 1
      %s762 = smul.addr %s761, 2
      %s763 = smul.addr %s762, 8
      %s764 = scalar_lea.vmem %s25, %s763
      %v766 = vld [vmem:[%s759] sm:$0xff]
      %v767 = vld [vmem:[%s759 + $0x8] sm:$0xff]
      %v768 = vlaneseq
      %v769 = vshrl.u32 %v768, 7
      %v770 = vadd.s32 %v769, 8
      %vm771 = vcmp.eq.s32.totalorder %v769, 0
      %vm772 = vcmp.eq.s32.totalorder %v770, 0
      %v773 = vrot.slane %v766, 7
      %v774 = vrot.slane %v767, 7
      %vm775 = vcmp.lt.s32.totalorder %v769, 1
      %v776 = vsel %vm775, %v773, %v774
      %v777 = vsel %vm775, %v774, %v773
      %v778 = vsel %vm771, 0.0, %v777
      %v779 = vsel %vm772, 0.0, %v776
      %vm780 = vcmp.eq.s32.totalorder %v769, 15
      %vm781 = vcmp.eq.s32.totalorder %v770, 15
      %v782 = vrot.slane %v766, 1
      %v783 = vrot.slane %v767, 1
      %vm784 = vcmp.lt.s32.totalorder %v769, 7
      %v785 = vsel %vm784, %v782, %v783
      %v786 = vsel %vm784, %v783, %v782
      %v787 = vsel %vm780, 0.0, %v785
      %v788 = vsel %vm781, 0.0, %v786
      %v789 = vpack.c.bf16 %v779, %v778
      %v790 = vld [vmem:[%s1] sm:$0x3]
      %v791 = vpack.c.bf16 %v767, %v766
      %s792 = scalar_lea.vmem %s1, 2
      %v793 = vld [vmem:[%s792] sm:$0x3]
      %vm794 = vcmask 31744
      %v796 = vsel %vm794, %v791, 0
      %vm798 = vcmask 1041408
      %v800 = vsel %vm798, %v793, 0
      %802 = vmatprep.subr.bf16.mxu0 0
      %803 = vmatpush1.bf16.msra.mxu0 %v800
      %804 = vmatprep.subr.bf16.mxu0 0
      %805 = vmatpush1.bf16.msra.mxu0 0
      %806 = vmatprep.subr.bf16.mxu0 0
      %807 = vmatpush1.bf16.msra.mxu0 0
      %808 = vmatprep.subr.bf16.mxu0 0
      %809 = vmatpush1.bf16.msra.mxu0 0
      %810 = vmatprep.subr.bf16.mxu0 0
      %811 = vmatpush1.bf16.msra.mxu0 0
      %812 = vmatprep.subr.bf16.mxu0 0
      %813 = vmatpush1.bf16.msra.mxu0 0
      %814 = vmatprep.subr.bf16.mxu0 0
      %815 = vmatpush1.bf16.msra.mxu0 0
      %816 = vmatprep.subr.bf16.mxu0 0
      %817 = vmatpush1.bf16.msra.mxu0 0
      %818 = vmatprep.subr.bf16.mxu0 0
      %819 = vmatpush1.bf16.msra.mxu0 0
      %820 = vmatprep.subr.bf16.mxu0 0
      %821 = vmatpush1.bf16.msra.mxu0 0
      %822 = vmatprep.subr.bf16.mxu0 0
      %823 = vmatpush1.bf16.msra.mxu0 0
      %824 = vmatprep.subr.bf16.mxu0 0
      %825 = vmatpush1.bf16.msra.mxu0 0
      %826 = vmatprep.subr.bf16.mxu0 0
      %827 = vmatpush1.bf16.msra.mxu0 0
      %828 = vmatprep.subr.bf16.mxu0 0
      %829 = vmatpush1.bf16.msra.mxu0 0
      %830 = vmatprep.subr.bf16.mxu0 0
      %831 = vmatpush1.bf16.msra.mxu0 0
      %832 = vmatprep.subr.bf16.mxu0 0
      %833 = vmatpush1.bf16.msra.mxu0 0
      %834 = vmatprep.mubr.bf16.mxu0 0
      %835 = vmatmul.mubr.bf16.gmra.mrb[0].mxu0 %v796
      %v836 = vpop.f32.mrb[0].mxu0
      %v837 = vadd.f32 0.0, %v836
      %v838 = vpop.f32.mrb[0].mxu0
      %v839 = vpop.f32.mrb[0].mxu0
      %v840 = vadd.f32 0.0, %v839
      %v841 = vpop.f32.mrb[0].mxu0
      %842 = vdwg.mxu0
      %v844 = vsel %vm794, %v789, 0
      %v847 = vsel %vm798, %v790, 0
      %849 = vmatprep.subr.bf16.mxu0 0
      %850 = vmatpush1.bf16.msra.mxu0 %v847
      %851 = vmatprep.subr.bf16.mxu0 0
      %852 = vmatpush1.bf16.msra.mxu0 0
      %853 = vmatprep.subr.bf16.mxu0 0
      %854 = vmatpush1.bf16.msra.mxu0 0
      %855 = vmatprep.subr.bf16.mxu0 0
      %856 = vmatpush1.bf16.msra.mxu0 0
      %857 = vmatprep.subr.bf16.mxu0 0
      %858 = vmatpush1.bf16.msra.mxu0 0
      %859 = vmatprep.subr.bf16.mxu0 0
      %860 = vmatpush1.bf16.msra.mxu0 0
      %861 = vmatprep.subr.bf16.mxu0 0
      %862 = vmatpush1.bf16.msra.mxu0 0
      %863 = vmatprep.subr.bf16.mxu0 0
      %864 = vmatpush1.bf16.msra.mxu0 0
      %865 = vmatprep.subr.bf16.mxu0 0
      %866 = vmatpush1.bf16.msra.mxu0 0
      %867 = vmatprep.subr.bf16.mxu0 0
      %868 = vmatpush1.bf16.msra.mxu0 0
      %869 = vmatprep.subr.bf16.mxu0 0
      %870 = vmatpush1.bf16.msra.mxu0 0
      %871 = vmatprep.subr.bf16.mxu0 0
      %872 = vmatpush1.bf16.msra.mxu0 0
      %873 = vmatprep.subr.bf16.mxu0 0
      %874 = vmatpush1.bf16.msra.mxu0 0
      %875 = vmatprep.subr.bf16.mxu0 0
      %876 = vmatpush1.bf16.msra.mxu0 0
      %877 = vmatprep.subr.bf16.mxu0 0
      %878 = vmatpush1.bf16.msra.mxu0 0
      %879 = vmatprep.subr.bf16.mxu0 0
      %880 = vmatpush1.bf16.msra.mxu0 0
      %881 = vmatprep.mubr.bf16.mxu0 0
      %882 = vmatmul.mubr.bf16.gmra.mrb[0].mxu0 %v844
      %v883 = vpop.f32.mrb[0].mxu0
      %v884 = vadd.f32 %v837, %v883
      %v885 = vpop.f32.mrb[0].mxu0
      %v886 = vpop.f32.mrb[0].mxu0
      %v887 = vadd.f32 %v840, %v886
      %v888 = vpop.f32.mrb[0].mxu0
      %889 = vdwg.mxu0
      %v890 = vpack.c.bf16 %v788, %v787
      %s891 = scalar_lea.vmem %s1, 4
      %v892 = vld [vmem:[%s891] sm:$0x3]
      %v894 = vsel %vm794, %v890, 0
      %v897 = vsel %vm798, %v892, 0
      %899 = vmatprep.subr.bf16.mxu0 0
      %900 = vmatpush1.bf16.msra.mxu0 %v897
      %901 = vmatprep.subr.bf16.mxu0 0
      %902 = vmatpush1.bf16.msra.mxu0 0
      %903 = vmatprep.subr.bf16.mxu0 0
      %904 = vmatpush1.bf16.msra.mxu0 0
      %905 = vmatprep.subr.bf16.mxu0 0
      %906 = vmatpush1.bf16.msra.mxu0 0
      %907 = vmatprep.subr.bf16.mxu0 0
      %908 = vmatpush1.bf16.msra.mxu0 0
      %909 = vmatprep.subr.bf16.mxu0 0
      %910 = vmatpush1.bf16.msra.mxu0 0
      %911 = vmatprep.subr.bf16.mxu0 0
      %912 = vmatpush1.bf16.msra.mxu0 0
      %913 = vmatprep.subr.bf16.mxu0 0
      %914 = vmatpush1.bf16.msra.mxu0 0
      %915 = vmatprep.subr.bf16.mxu0 0
      %916 = vmatpush1.bf16.msra.mxu0 0
      %917 = vmatprep.subr.bf16.mxu0 0
      %918 = vmatpush1.bf16.msra.mxu0 0
      %919 = vmatprep.subr.bf16.mxu0 0
      %920 = vmatpush1.bf16.msra.mxu0 0
      %921 = vmatprep.subr.bf16.mxu0 0
      %922 = vmatpush1.bf16.msra.mxu0 0
      %923 = vmatprep.subr.bf16.mxu0 0
      %924 = vmatpush1.bf16.msra.mxu0 0
      %925 = vmatprep.subr.bf16.mxu0 0
      %926 = vmatpush1.bf16.msra.mxu0 0
      %927 = vmatprep.subr.bf16.mxu0 0
      %928 = vmatpush1.bf16.msra.mxu0 0
      %929 = vmatprep.subr.bf16.mxu0 0
      %930 = vmatpush1.bf16.msra.mxu0 0
      %931 = vmatprep.mubr.bf16.mxu0 0
      %932 = vmatmul.mubr.bf16.gmra.mrb[0].mxu0 %v894
      %v933 = vpop.f32.mrb[0].mxu0
      %v934 = vadd.f32 0.0, %v933
      %v935 = vpop.f32.mrb[0].mxu0
      %v936 = vpop.f32.mrb[0].mxu0
      %v937 = vadd.f32 0.0, %v936
      %v938 = vpop.f32.mrb[0].mxu0
      %939 = vdwg.mxu0
      %v940 = vadd.f32 %v884, %v934
      %v941 = vadd.f32 %v887, %v937
      %v942 = vld [vmem:[%s2] sm:$0x1]
      %v944 = vlaneseq
      %v945 = vshrl.u32 %v944, 7
      %v946 = vsub.s32 0, %v945
      %v947 = vrot.slane %v942, %v946
      %v949 = vadd.f32 %v940, %v947
      %v950 = vadd.f32 %v941, %v947
      %v951 = vmax.f32 %v949, 0.0
      %v952 = vmax.f32 %v950, 0.0
      %v953 = vrot.slane %v951, 7
      %v954 = vrot.slane %v952, 7
      %v955 = vsel %vm775, %v953, %v954
      %v956 = vsel %vm775, %v954, %v953
      %v957 = vsel %vm771, 0.0, %v956
      %v958 = vsel %vm772, 0.0, %v955
      %v959 = vrot.slane %v951, 1
      %v960 = vrot.slane %v952, 1
      %v961 = vsel %vm784, %v959, %v960
      %v962 = vsel %vm784, %v960, %v959
      %v963 = vsel %vm780, 0.0, %v961
      %v964 = vsel %vm781, 0.0, %v962
      %v965 = vpack.c.bf16 %v958, %v957
      %v966 = vld [vmem:[%s3] sm:$0xf]
      %v967 = vld [vmem:[%s3 + $0x4] sm:$0xf]
      %v968 = vld [vmem:[%s3 + $0x8] sm:$0xf]
      %v969 = vld [vmem:[%s3 + $0xc] sm:$0xf]
      %v970 = vpack.c.bf16 %v952, %v951
      %s971 = scalar_lea.vmem %s3, 16
      %v972 = vld [vmem:[%s971] sm:$0xf]
      %v973 = vld [vmem:[%s971 + $0x4] sm:$0xf]
      %v974 = vld [vmem:[%s971 + $0x8] sm:$0xf]
      %v975 = vld [vmem:[%s971 + $0xc] sm:$0xf]
      %v980 = vunpack.c.l.b16 %v972
      %v981 = vunpack.c.l.b16 %v973
      %v982 = vunpack.c.l.b16 %v974
      %v983 = vunpack.c.l.b16 %v975
      %v984 = vpack.c.b16 %v981, %v980
      %v985 = vpack.c.b16 %v983, %v982
      %vm988 = vcmask 261120
      %v990 = vsel %vm988, %v970, 0
      %992 = vmatprep.subr.bf16.mxu0 0
      %993 = vmatpush1.bf16.msra.mxu0 %v984
      %994 = vmatprep.subr.bf16.mxu0 0
      %995 = vmatpush1.bf16.msra.mxu0 %v985
      %996 = vmatprep.subr.bf16.mxu0 0
      %997 = vmatpush1.bf16.msra.mxu0 0
      %998 = vmatprep.subr.bf16.mxu0 0
      %999 = vmatpush1.bf16.msra.mxu0 0
      %1000 = vmatprep.subr.bf16.mxu0 0
      %1001 = vmatpush1.bf16.msra.mxu0 0
      %1002 = vmatprep.subr.bf16.mxu0 0
      %1003 = vmatpush1.bf16.msra.mxu0 0
      %1004 = vmatprep.subr.bf16.mxu0 0
      %1005 = vmatpush1.bf16.msra.mxu0 0
      %1006 = vmatprep.subr.bf16.mxu0 0
      %1007 = vmatpush1.bf16.msra.mxu0 0
      %1008 = vmatprep.subr.bf16.mxu0 0
      %1009 = vmatpush1.bf16.msra.mxu0 0
      %1010 = vmatprep.subr.bf16.mxu0 0
      %1011 = vmatpush1.bf16.msra.mxu0 0
      %1012 = vmatprep.subr.bf16.mxu0 0
      %1013 = vmatpush1.bf16.msra.mxu0 0
      %1014 = vmatprep.subr.bf16.mxu0 0
      %1015 = vmatpush1.bf16.msra.mxu0 0
      %1016 = vmatprep.subr.bf16.mxu0 0
      %1017 = vmatpush1.bf16.msra.mxu0 0
      %1018 = vmatprep.subr.bf16.mxu0 0
      %1019 = vmatpush1.bf16.msra.mxu0 0
      %1020 = vmatprep.subr.bf16.mxu0 0
      %1021 = vmatpush1.bf16.msra.mxu0 0
      %1022 = vmatprep.subr.bf16.mxu0 0
      %1023 = vmatpush1.bf16.msra.mxu0 0
      %1024 = vmatprep.mubr.bf16.mxu0 0
      %1025 = vmatmul.mubr.bf16.gmra.mrb[0].mxu0 %v990
      %v1026 = vpop.f32.mrb[0].mxu0
      %v1027 = vadd.f32 0.0, %v1026
      %v1028 = vpop.f32.mrb[0].mxu0
      %v1029 = vpop.f32.mrb[0].mxu0
      %v1030 = vadd.f32 0.0, %v1029
      %v1031 = vpop.f32.mrb[0].mxu0
      %1032 = vdwg.mxu0
      %v1037 = vunpack.c.l.b16 %v966
      %v1038 = vunpack.c.l.b16 %v967
      %v1039 = vunpack.c.l.b16 %v968
      %v1040 = vunpack.c.l.b16 %v969
      %v1041 = vpack.c.b16 %v1038, %v1037
      %v1042 = vpack.c.b16 %v1040, %v1039
      %v1046 = vsel %vm988, %v965, 0
      %1048 = vmatprep.subr.bf16.mxu0 0
      %1049 = vmatpush1.bf16.msra.mxu0 %v1041
      %1050 = vmatprep.subr.bf16.mxu0 0
      %1051 = vmatpush1.bf16.msra.mxu0 %v1042
      %1052 = vmatprep.subr.bf16.mxu0 0
      %1053 = vmatpush1.bf16.msra.mxu0 0
      %1054 = vmatprep.subr.bf16.mxu0 0
      %1055 = vmatpush1.bf16.msra.mxu0 0
      %1056 = vmatprep.subr.bf16.mxu0 0
      %1057 = vmatpush1.bf16.msra.mxu0 0
      %1058 = vmatprep.subr.bf16.mxu0 0
      %1059 = vmatpush1.bf16.msra.mxu0 0
      %1060 = vmatprep.subr.bf16.mxu0 0
      %1061 = vmatpush1.bf16.msra.mxu0 0
      %1062 = vmatprep.subr.bf16.mxu0 0
      %1063 = vmatpush1.bf16.msra.mxu0 0
      %1064 = vmatprep.subr.bf16.mxu0 0
      %1065 = vmatpush1.bf16.msra.mxu0 0
      %1066 = vmatprep.subr.bf16.mxu0 0
      %1067 = vmatpush1.bf16.msra.mxu0 0
      %1068 = vmatprep.subr.bf16.mxu0 0
      %1069 = vmatpush1.bf16.msra.mxu0 0
      %1070 = vmatprep.subr.bf16.mxu0 0
      %1071 = vmatpush1.bf16.msra.mxu0 0
      %1072 = vmatprep.subr.bf16.mxu0 0
      %1073 = vmatpush1.bf16.msra.mxu0 0
      %1074 = vmatprep.subr.bf16.mxu0 0
      %1075 = vmatpush1.bf16.msra.mxu0 0
      %1076 = vmatprep.subr.bf16.mxu0 0
      %1077 = vmatpush1.bf16.msra.mxu0 0
      %1078 = vmatprep.subr.bf16.mxu0 0
      %1079 = vmatpush1.bf16.msra.mxu0 0
      %1080 = vmatprep.mubr.bf16.mxu0 0
      %1081 = vmatmul.mubr.bf16.gmra.mrb[0].mxu0 %v1046
      %v1082 = vpop.f32.mrb[0].mxu0
      %v1083 = vadd.f32 %v1027, %v1082
      %v1084 = vpop.f32.mrb[0].mxu0
      %v1085 = vpop.f32.mrb[0].mxu0
      %v1086 = vadd.f32 %v1030, %v1085
      %v1087 = vpop.f32.mrb[0].mxu0
      %1088 = vdwg.mxu0
      %v1089 = vpack.c.bf16 %v964, %v963
      %s1090 = scalar_lea.vmem %s3, 32
      %v1091 = vld [vmem:[%s1090] sm:$0xf]
      %v1092 = vld [vmem:[%s1090 + $0x4] sm:$0xf]
      %v1093 = vld [vmem:[%s1090 + $0x8] sm:$0xf]
      %v1094 = vld [vmem:[%s1090 + $0xc] sm:$0xf]
      %v1099 = vunpack.c.l.b16 %v1091
      %v1100 = vunpack.c.l.b16 %v1092
      %v1101 = vunpack.c.l.b16 %v1093
      %v1102 = vunpack.c.l.b16 %v1094
      %v1103 = vpack.c.b16 %v1100, %v1099
      %v1104 = vpack.c.b16 %v1102, %v1101
      %v1108 = vsel %vm988, %v1089, 0
      %1110 = vmatprep.subr.bf16.mxu0 0
      %1111 = vmatpush1.bf16.msra.mxu0 %v1103
      %1112 = vmatprep.subr.bf16.mxu0 0
      %1113 = vmatpush1.bf16.msra.mxu0 %v1104
      %1114 = vmatprep.subr.bf16.mxu0 0
      %1115 = vmatpush1.bf16.msra.mxu0 0
      %1116 = vmatprep.subr.bf16.mxu0 0
      %1117 = vmatpush1.bf16.msra.mxu0 0
      %1118 = vmatprep.subr.bf16.mxu0 0
      %1119 = vmatpush1.bf16.msra.mxu0 0
      %1120 = vmatprep.subr.bf16.mxu0 0
      %1121 = vmatpush1.bf16.msra.mxu0 0
      %1122 = vmatprep.subr.bf16.mxu0 0
      %1123 = vmatpush1.bf16.msra.mxu0 0
      %1124 = vmatprep.subr.bf16.mxu0 0
      %1125 = vmatpush1.bf16.msra.mxu0 0
      %1126 = vmatprep.subr.bf16.mxu0 0
      %1127 = vmatpush1.bf16.msra.mxu0 0
      %1128 = vmatprep.subr.bf16.mxu0 0
      %1129 = vmatpush1.bf16.msra.mxu0 0
      %1130 = vmatprep.subr.bf16.mxu0 0
      %1131 = vmatpush1.bf16.msra.mxu0 0
      %1132 = vmatprep.subr.bf16.mxu0 0
      %1133 = vmatpush1.bf16.msra.mxu0 0
      %1134 = vmatprep.subr.bf16.mxu0 0
      %1135 = vmatpush1.bf16.msra.mxu0 0
      %1136 = vmatprep.subr.bf16.mxu0 0
      %1137 = vmatpush1.bf16.msra.mxu0 0
      %1138 = vmatprep.subr.bf16.mxu0 0
      %1139 = vmatpush1.bf16.msra.mxu0 0
      %1140 = vmatprep.subr.bf16.mxu0 0
      %1141 = vmatpush1.bf16.msra.mxu0 0
      %1142 = vmatprep.mubr.bf16.mxu0 0
      %1143 = vmatmul.mubr.bf16.gmra.mrb[0].mxu0 %v1108
      %v1144 = vpop.f32.mrb[0].mxu0
      %v1145 = vadd.f32 0.0, %v1144
      %v1146 = vpop.f32.mrb[0].mxu0
      %v1147 = vpop.f32.mrb[0].mxu0
      %v1148 = vadd.f32 0.0, %v1147
      %v1149 = vpop.f32.mrb[0].mxu0
      %1150 = vdwg.mxu0
      %v1151 = vadd.f32 %v1083, %v1145
      %v1152 = vadd.f32 %v1086, %v1148
      %v1153 = vld [vmem:[%s4] sm:$0x1]
      %v1155 = vlaneseq
      %v1156 = vshrl.u32 %v1155, 7
      %v1157 = vsub.s32 0, %v1156
      %v1158 = vrot.slane %v1153, %v1157
      %v1160 = vadd.f32 %v1151, %v1158
      %v1161 = vadd.f32 %v1152, %v1158
      %v1162 = vld [vmem:[%s5] sm:$0x3]
      %v1163 = vld [vmem:[%s6] sm:$0x1]
      %v1165 = vlaneseq
      %v1166 = vshrl.u32 %v1165, 7
      %v1167 = vsub.s32 0, %v1166
      %v1168 = vrot.slane %v1163, %v1167
      %v1171 = vsel %vm798, %v1162, 0
      %1173 = vmatprep.subr.bf16.mxu0 0
      %1174 = vmatpush1.bf16.msra.mxu0 %v1171
      %1175 = vmatprep.subr.bf16.mxu0 0
      %1176 = vmatpush1.bf16.msra.mxu0 0
      %1177 = vmatprep.subr.bf16.mxu0 0
      %1178 = vmatpush1.bf16.msra.mxu0 0
      %1179 = vmatprep.subr.bf16.mxu0 0
      %1180 = vmatpush1.bf16.msra.mxu0 0
      %1181 = vmatprep.subr.bf16.mxu0 0
      %1182 = vmatpush1.bf16.msra.mxu0 0
      %1183 = vmatprep.subr.bf16.mxu0 0
      %1184 = vmatpush1.bf16.msra.mxu0 0
      %1185 = vmatprep.subr.bf16.mxu0 0
      %1186 = vmatpush1.bf16.msra.mxu0 0
      %1187 = vmatprep.subr.bf16.mxu0 0
      %1188 = vmatpush1.bf16.msra.mxu0 0
      %1189 = vmatprep.subr.bf16.mxu0 0
      %1190 = vmatpush1.bf16.msra.mxu0 0
      %1191 = vmatprep.subr.bf16.mxu0 0
      %1192 = vmatpush1.bf16.msra.mxu0 0
      %1193 = vmatprep.subr.bf16.mxu0 0
      %1194 = vmatpush1.bf16.msra.mxu0 0
      %1195 = vmatprep.subr.bf16.mxu0 0
      %1196 = vmatpush1.bf16.msra.mxu0 0
      %1197 = vmatprep.subr.bf16.mxu0 0
      %1198 = vmatpush1.bf16.msra.mxu0 0
      %1199 = vmatprep.subr.bf16.mxu0 0
      %1200 = vmatpush1.bf16.msra.mxu0 0
      %1201 = vmatprep.subr.bf16.mxu0 0
      %1202 = vmatpush1.bf16.msra.mxu0 0
      %1203 = vmatprep.subr.bf16.mxu0 0
      %1204 = vmatpush1.bf16.msra.mxu0 0
      %1205 = vmatprep.mubr.bf16.mxu0 0
      %1206 = vmatmul.mubr.bf16.gmra.mrb[0].mxu0 %v796
      %v1207 = vpop.f32.mrb[0].mxu0
      %v1208 = vadd.f32 %v1168, %v1207
      %v1209 = vpop.f32.mrb[0].mxu0
      %v1210 = vpop.f32.mrb[0].mxu0
      %v1211 = vadd.f32 %v1168, %v1210
      %v1212 = vpop.f32.mrb[0].mxu0
      %1213 = vdwg.mxu0
      %v1214 = vadd.f32 %v1160, %v1208
      %v1215 = vadd.f32 %v1161, %v1211
      %v1216 = vpack.c.bf16 %v1215, %v1214
      %v1217 = vld [vmem:[%s7] sm:$0xf]
      %v1218 = vld [vmem:[%s7 + $0x4] sm:$0xf]
      %v1219 = vld [vmem:[%s7 + $0x8] sm:$0xf]
      %v1220 = vld [vmem:[%s7 + $0xc] sm:$0xf]
      %v1221 = vld [vmem:[%s8] sm:$0x1]
      %v1223 = vlaneseq
      %v1224 = vshrl.u32 %v1223, 7
      %v1225 = vsub.s32 0, %v1224
      %v1226 = vrot.slane %v1221, %v1225
      %v1232 = vunpack.c.l.b16 %v1217
      %v1233 = vunpack.c.l.b16 %v1218
      %v1234 = vunpack.c.l.b16 %v1219
      %v1235 = vunpack.c.l.b16 %v1220
      %v1236 = vpack.c.b16 %v1233, %v1232
      %v1237 = vpack.c.b16 %v1235, %v1234
      %v1241 = vsel %vm988, %v1216, 0
      %1243 = vmatprep.subr.bf16.mxu0 0
      %1244 = vmatpush1.bf16.msra.mxu0 %v1236
      %1245 = vmatprep.subr.bf16.mxu0 0
      %1246 = vmatpush1.bf16.msra.mxu0 %v1237
      %1247 = vmatprep.subr.bf16.mxu0 0
      %1248 = vmatpush1.bf16.msra.mxu0 0
      %1249 = vmatprep.subr.bf16.mxu0 0
      %1250 = vmatpush1.bf16.msra.mxu0 0
      %1251 = vmatprep.subr.bf16.mxu0 0
      %1252 = vmatpush1.bf16.msra.mxu0 0
      %1253 = vmatprep.subr.bf16.mxu0 0
      %1254 = vmatpush1.bf16.msra.mxu0 0
      %1255 = vmatprep.subr.bf16.mxu0 0
      %1256 = vmatpush1.bf16.msra.mxu0 0
      %1257 = vmatprep.subr.bf16.mxu0 0
      %1258 = vmatpush1.bf16.msra.mxu0 0
      %1259 = vmatprep.subr.bf16.mxu0 0
      %1260 = vmatpush1.bf16.msra.mxu0 0
      %1261 = vmatprep.subr.bf16.mxu0 0
      %1262 = vmatpush1.bf16.msra.mxu0 0
      %1263 = vmatprep.subr.bf16.mxu0 0
      %1264 = vmatpush1.bf16.msra.mxu0 0
      %1265 = vmatprep.subr.bf16.mxu0 0
      %1266 = vmatpush1.bf16.msra.mxu0 0
      %1267 = vmatprep.subr.bf16.mxu0 0
      %1268 = vmatpush1.bf16.msra.mxu0 0
      %1269 = vmatprep.subr.bf16.mxu0 0
      %1270 = vmatpush1.bf16.msra.mxu0 0
      %1271 = vmatprep.subr.bf16.mxu0 0
      %1272 = vmatpush1.bf16.msra.mxu0 0
      %1273 = vmatprep.subr.bf16.mxu0 0
      %1274 = vmatpush1.bf16.msra.mxu0 0
      %1275 = vmatprep.mubr.bf16.mxu0 0
      %1276 = vmatmul.mubr.bf16.gmra.mrb[0].mxu0 %v1241
      %v1277 = vpop.f32.mrb[0].mxu0
      %v1278 = vadd.f32 %v1226, %v1277
      %v1279 = vpop.f32.mrb[0].mxu0
      %v1280 = vpop.f32.mrb[0].mxu0
      %v1281 = vadd.f32 %v1226, %v1280
      %v1282 = vpop.f32.mrb[0].mxu0
      %1283 = vdwg.mxu0
      %v1284 = vmul.f32 %v1278, 0.5
      %v1285 = vmul.f32 %v1281, 0.5
      %v1286 = vld [vmem:[%s9] sm:$0xf]
      %v1287 = vld [vmem:[%s9 + $0x4] sm:$0xf]
      %v1288 = vld [vmem:[%s9 + $0x8] sm:$0xf]
      %v1289 = vld [vmem:[%s9 + $0xc] sm:$0xf]
      %v1290 = vld [vmem:[%s10] sm:$0x1]
      %v1292 = vlaneseq
      %v1293 = vshrl.u32 %v1292, 7
      %v1294 = vsub.s32 0, %v1293
      %v1295 = vrot.slane %v1290, %v1294
      %v1301 = vunpack.c.l.b16 %v1286
      %v1302 = vunpack.c.l.b16 %v1287
      %v1303 = vunpack.c.l.b16 %v1288
      %v1304 = vunpack.c.l.b16 %v1289
      %v1305 = vpack.c.b16 %v1302, %v1301
      %v1306 = vpack.c.b16 %v1304, %v1303
      %1309 = vmatprep.subr.bf16.mxu0 0
      %1310 = vmatpush1.bf16.msra.mxu0 %v1305
      %1311 = vmatprep.subr.bf16.mxu0 0
      %1312 = vmatpush1.bf16.msra.mxu0 %v1306
      %1313 = vmatprep.subr.bf16.mxu0 0
      %1314 = vmatpush1.bf16.msra.mxu0 0
      %1315 = vmatprep.subr.bf16.mxu0 0
      %1316 = vmatpush1.bf16.msra.mxu0 0
      %1317 = vmatprep.subr.bf16.mxu0 0
      %1318 = vmatpush1.bf16.msra.mxu0 0
      %1319 = vmatprep.subr.bf16.mxu0 0
      %1320 = vmatpush1.bf16.msra.mxu0 0
      %1321 = vmatprep.subr.bf16.mxu0 0
      %1322 = vmatpush1.bf16.msra.mxu0 0
      %1323 = vmatprep.subr.bf16.mxu0 0
      %1324 = vmatpush1.bf16.msra.mxu0 0
      %1325 = vmatprep.subr.bf16.mxu0 0
      %1326 = vmatpush1.bf16.msra.mxu0 0
      %1327 = vmatprep.subr.bf16.mxu0 0
      %1328 = vmatpush1.bf16.msra.mxu0 0
      %1329 = vmatprep.subr.bf16.mxu0 0
      %1330 = vmatpush1.bf16.msra.mxu0 0
      %1331 = vmatprep.subr.bf16.mxu0 0
      %1332 = vmatpush1.bf16.msra.mxu0 0
      %1333 = vmatprep.subr.bf16.mxu0 0
      %1334 = vmatpush1.bf16.msra.mxu0 0
      %1335 = vmatprep.subr.bf16.mxu0 0
      %1336 = vmatpush1.bf16.msra.mxu0 0
      %1337 = vmatprep.subr.bf16.mxu0 0
      %1338 = vmatpush1.bf16.msra.mxu0 0
      %1339 = vmatprep.subr.bf16.mxu0 0
      %1340 = vmatpush1.bf16.msra.mxu0 0
      %1341 = vmatprep.mubr.bf16.mxu0 0
      %1342 = vmatmul.mubr.bf16.gmra.mrb[0].mxu0 %v1241
      %v1343 = vpop.f32.mrb[0].mxu0
      %v1344 = vadd.f32 %v1295, %v1343
      %v1345 = vpop.f32.mrb[0].mxu0
      %v1346 = vpop.f32.mrb[0].mxu0
      %v1347 = vadd.f32 %v1295, %v1346
      %v1348 = vpop.f32.mrb[0].mxu0
      %1349 = vdwg.mxu0
      %v1350 = vld [vmem:[%s11] sm:$0xf]
      %v1351 = vld [vmem:[%s11 + $0x4] sm:$0xf]
      %v1352 = vld [vmem:[%s11 + $0x8] sm:$0xf]
      %v1353 = vld [vmem:[%s11 + $0xc] sm:$0xf]
      %v1354 = vld [vmem:[%s12] sm:$0x1]
      %v1356 = vlaneseq
      %v1357 = vshrl.u32 %v1356, 7
      %v1358 = vsub.s32 0, %v1357
      %v1359 = vrot.slane %v1354, %v1358
      %v1365 = vunpack.c.l.b16 %v1350
      %v1366 = vunpack.c.l.b16 %v1351
      %v1367 = vunpack.c.l.b16 %v1352
      %v1368 = vunpack.c.l.b16 %v1353
      %v1369 = vpack.c.b16 %v1366, %v1365
      %v1370 = vpack.c.b16 %v1368, %v1367
      %1373 = vmatprep.subr.bf16.mxu0 0
      %1374 = vmatpush1.bf16.msra.mxu0 %v1369
      %1375 = vmatprep.subr.bf16.mxu0 0
      %1376 = vmatpush1.bf16.msra.mxu0 %v1370
      %1377 = vmatprep.subr.bf16.mxu0 0
      %1378 = vmatpush1.bf16.msra.mxu0 0
      %1379 = vmatprep.subr.bf16.mxu0 0
      %1380 = vmatpush1.bf16.msra.mxu0 0
      %1381 = vmatprep.subr.bf16.mxu0 0
      %1382 = vmatpush1.bf16.msra.mxu0 0
      %1383 = vmatprep.subr.bf16.mxu0 0
      %1384 = vmatpush1.bf16.msra.mxu0 0
      %1385 = vmatprep.subr.bf16.mxu0 0
      %1386 = vmatpush1.bf16.msra.mxu0 0
      %1387 = vmatprep.subr.bf16.mxu0 0
      %1388 = vmatpush1.bf16.msra.mxu0 0
      %1389 = vmatprep.subr.bf16.mxu0 0
      %1390 = vmatpush1.bf16.msra.mxu0 0
      %1391 = vmatprep.subr.bf16.mxu0 0
      %1392 = vmatpush1.bf16.msra.mxu0 0
      %1393 = vmatprep.subr.bf16.mxu0 0
      %1394 = vmatpush1.bf16.msra.mxu0 0
      %1395 = vmatprep.subr.bf16.mxu0 0
      %1396 = vmatpush1.bf16.msra.mxu0 0
      %1397 = vmatprep.subr.bf16.mxu0 0
      %1398 = vmatpush1.bf16.msra.mxu0 0
      %1399 = vmatprep.subr.bf16.mxu0 0
      %1400 = vmatpush1.bf16.msra.mxu0 0
      %1401 = vmatprep.subr.bf16.mxu0 0
      %1402 = vmatpush1.bf16.msra.mxu0 0
      %1403 = vmatprep.subr.bf16.mxu0 0
      %1404 = vmatpush1.bf16.msra.mxu0 0
      %1405 = vmatprep.mubr.bf16.mxu0 0
      %1406 = vmatmul.mubr.bf16.gmra.mrb[0].mxu0 %v1241
      %v1407 = vpop.f32.mrb[0].mxu0
      %v1408 = vadd.f32 %v1359, %v1407
      %v1409 = vpop.f32.mrb[0].mxu0
      %v1410 = vpop.f32.mrb[0].mxu0
      %v1411 = vadd.f32 %v1359, %v1410
      %v1412 = vpop.f32.mrb[0].mxu0
      %1413 = vdwg.mxu0
      %1416 = vrot.lane.b32.xlu0 %v1284, 124
      %v1417 = vpop.permute.xlu0 %1416
      %1418 = vrot.lane.b32.xlu0 %v1285, 124
      %v1419 = vpop.permute.xlu0 %1418
      %1422 = vrot.lane.b32.xlu0 %v1284, 120
      %v1423 = vpop.permute.xlu0 %1422
      %1424 = vrot.lane.b32.xlu0 %v1285, 120
      %v1425 = vpop.permute.xlu0 %1424
      %1428 = vrot.lane.b32.xlu0 %v1284, 116
      %v1429 = vpop.permute.xlu0 %1428
      %1430 = vrot.lane.b32.xlu0 %v1285, 116
      %v1431 = vpop.permute.xlu0 %1430
      %1434 = vrot.lane.b32.xlu0 %v1284, 112
      %v1435 = vpop.permute.xlu0 %1434
      %1436 = vrot.lane.b32.xlu0 %v1285, 112
      %v1437 = vpop.permute.xlu0 %1436
      %1440 = vrot.lane.b32.xlu0 %v1284, 108
      %v1441 = vpop.permute.xlu0 %1440
      %1442 = vrot.lane.b32.xlu0 %v1285, 108
      %v1443 = vpop.permute.xlu0 %1442
      %1446 = vrot.lane.b32.xlu0 %v1284, 104
      %v1447 = vpop.permute.xlu0 %1446
      %1448 = vrot.lane.b32.xlu0 %v1285, 104
      %v1449 = vpop.permute.xlu0 %1448
      %1452 = vrot.lane.b32.xlu0 %v1284, 100
      %v1453 = vpop.permute.xlu0 %1452
      %1454 = vrot.lane.b32.xlu0 %v1285, 100
      %v1455 = vpop.permute.xlu0 %1454
      %v1458 = vcombine.low %v1284, %v1423
      %v1459 = vcombine.high %v1284, %v1423
      %v1461 = vunpack.c.l.s4 1983009808
      %v1462 = vunpack.c.0.s8 %v1461
      %v1463 = vlaneseq
      %v1464 = vshrl.u32 %v1463, 7
      %v1465 = vsub.s32 %v1462, %v1464
      %v1466 = vrot.slane %v1458, %v1465
      %v1468 = vunpack.c.l.s4 1983009808
      %v1469 = vunpack.c.0.s8 %v1468
      %v1470 = vlaneseq
      %v1471 = vshrl.u32 %v1470, 7
      %v1472 = vsub.s32 %v1469, %v1471
      %v1473 = vrot.slane %v1459, %v1472
      %v1474 = vcombine.low %v1417, %v1429
      %v1475 = vcombine.high %v1417, %v1429
      %v1477 = vunpack.c.l.s4 1983009808
      %v1478 = vunpack.c.0.s8 %v1477
      %v1479 = vlaneseq
      %v1480 = vshrl.u32 %v1479, 7
      %v1481 = vsub.s32 %v1478, %v1480
      %v1482 = vrot.slane %v1474, %v1481
      %v1484 = vunpack.c.l.s4 1983009808
      %v1485 = vunpack.c.0.s8 %v1484
      %v1486 = vlaneseq
      %v1487 = vshrl.u32 %v1486, 7
      %v1488 = vsub.s32 %v1485, %v1487
      %v1489 = vrot.slane %v1475, %v1488
      %v1490 = vcombine.low %v1435, %v1447
      %v1491 = vcombine.high %v1435, %v1447
      %v1493 = vunpack.c.l.s4 1983009808
      %v1494 = vunpack.c.0.s8 %v1493
      %v1495 = vlaneseq
      %v1496 = vshrl.u32 %v1495, 7
      %v1497 = vsub.s32 %v1494, %v1496
      %v1498 = vrot.slane %v1490, %v1497
      %v1500 = vunpack.c.l.s4 1983009808
      %v1501 = vunpack.c.0.s8 %v1500
      %v1502 = vlaneseq
      %v1503 = vshrl.u32 %v1502, 7
      %v1504 = vsub.s32 %v1501, %v1503
      %v1505 = vrot.slane %v1491, %v1504
      %v1506 = vcombine.low %v1441, %v1453
      %v1507 = vcombine.high %v1441, %v1453
      %v1509 = vunpack.c.l.s4 1983009808
      %v1510 = vunpack.c.0.s8 %v1509
      %v1511 = vlaneseq
      %v1512 = vshrl.u32 %v1511, 7
      %v1513 = vsub.s32 %v1510, %v1512
      %v1514 = vrot.slane %v1506, %v1513
      %v1516 = vunpack.c.l.s4 1983009808
      %v1517 = vunpack.c.0.s8 %v1516
      %v1518 = vlaneseq
      %v1519 = vshrl.u32 %v1518, 7
      %v1520 = vsub.s32 %v1517, %v1519
      %v1521 = vrot.slane %v1507, %v1520
      %v1522 = vcombine.low %v1466, %v1482
      %v1523 = vcombine.high %v1466, %v1482
      %v1525 = vunpack.c.l.s4 1934713408
      %v1526 = vunpack.c.0.s8 %v1525
      %v1527 = vlaneseq
      %v1528 = vshrl.u32 %v1527, 7
      %v1529 = vsub.s32 %v1526, %v1528
      %v1530 = vrot.slane %v1522, %v1529
      %v1532 = vunpack.c.l.s4 1934713408
      %v1533 = vunpack.c.0.s8 %v1532
      %v1534 = vlaneseq
      %v1535 = vshrl.u32 %v1534, 7
      %v1536 = vsub.s32 %v1533, %v1535
      %v1537 = vrot.slane %v1523, %v1536
      %v1538 = vcombine.low %v1473, %v1489
      %v1539 = vcombine.high %v1473, %v1489
      %v1541 = vunpack.c.l.s4 1934713408
      %v1542 = vunpack.c.0.s8 %v1541
      %v1543 = vlaneseq
      %v1544 = vshrl.u32 %v1543, 7
      %v1545 = vsub.s32 %v1542, %v1544
      %v1546 = vrot.slane %v1538, %v1545
      %v1548 = vunpack.c.l.s4 1934713408
      %v1549 = vunpack.c.0.s8 %v1548
      %v1550 = vlaneseq
      %v1551 = vshrl.u32 %v1550, 7
      %v1552 = vsub.s32 %v1549, %v1551
      %v1553 = vrot.slane %v1539, %v1552
      %v1554 = vcombine.low %v1498, %v1514
      %v1555 = vcombine.high %v1498, %v1514
      %v1557 = vunpack.c.l.s4 1934713408
      %v1558 = vunpack.c.0.s8 %v1557
      %v1559 = vlaneseq
      %v1560 = vshrl.u32 %v1559, 7
      %v1561 = vsub.s32 %v1558, %v1560
      %v1562 = vrot.slane %v1554, %v1561
      %v1564 = vunpack.c.l.s4 1934713408
      %v1565 = vunpack.c.0.s8 %v1564
      %v1566 = vlaneseq
      %v1567 = vshrl.u32 %v1566, 7
      %v1568 = vsub.s32 %v1565, %v1567
      %v1569 = vrot.slane %v1555, %v1568
      %v1570 = vcombine.low %v1505, %v1521
      %v1571 = vcombine.high %v1505, %v1521
      %v1573 = vunpack.c.l.s4 1934713408
      %v1574 = vunpack.c.0.s8 %v1573
      %v1575 = vlaneseq
      %v1576 = vshrl.u32 %v1575, 7
      %v1577 = vsub.s32 %v1574, %v1576
      %v1578 = vrot.slane %v1570, %v1577
      %v1580 = vunpack.c.l.s4 1934713408
      %v1581 = vunpack.c.0.s8 %v1580
      %v1582 = vlaneseq
      %v1583 = vshrl.u32 %v1582, 7
      %v1584 = vsub.s32 %v1581, %v1583
      %v1585 = vrot.slane %v1571, %v1584
      %v1586 = vcombine.low %v1530, %v1562
      %v1587 = vcombine.high %v1530, %v1562
      %v1588 = vcombine.low %v1537, %v1569
      %v1589 = vcombine.high %v1537, %v1569
      %v1590 = vcombine.low %v1546, %v1578
      %v1591 = vcombine.high %v1546, %v1578
      %v1592 = vcombine.low %v1553, %v1585
      %v1593 = vcombine.high %v1553, %v1585
      %v1594 = vcombine.low %v1285, %v1425
      %v1595 = vcombine.high %v1285, %v1425
      %v1597 = vunpack.c.l.s4 1983009808
      %v1598 = vunpack.c.0.s8 %v1597
      %v1599 = vlaneseq
      %v1600 = vshrl.u32 %v1599, 7
      %v1601 = vsub.s32 %v1598, %v1600
      %v1602 = vrot.slane %v1594, %v1601
      %v1604 = vunpack.c.l.s4 1983009808
      %v1605 = vunpack.c.0.s8 %v1604
      %v1606 = vlaneseq
      %v1607 = vshrl.u32 %v1606, 7
      %v1608 = vsub.s32 %v1605, %v1607
      %v1609 = vrot.slane %v1595, %v1608
      %v1610 = vcombine.low %v1419, %v1431
      %v1611 = vcombine.high %v1419, %v1431
      %v1613 = vunpack.c.l.s4 1983009808
      %v1614 = vunpack.c.0.s8 %v1613
      %v1615 = vlaneseq
      %v1616 = vshrl.u32 %v1615, 7
      %v1617 = vsub.s32 %v1614, %v1616
      %v1618 = vrot.slane %v1610, %v1617
      %v1620 = vunpack.c.l.s4 1983009808
      %v1621 = vunpack.c.0.s8 %v1620
      %v1622 = vlaneseq
      %v1623 = vshrl.u32 %v1622, 7
      %v1624 = vsub.s32 %v1621, %v1623
      %v1625 = vrot.slane %v1611, %v1624
      %v1626 = vcombine.low %v1437, %v1449
      %v1627 = vcombine.high %v1437, %v1449
      %v1629 = vunpack.c.l.s4 1983009808
      %v1630 = vunpack.c.0.s8 %v1629
      %v1631 = vlaneseq
      %v1632 = vshrl.u32 %v1631, 7
      %v1633 = vsub.s32 %v1630, %v1632
      %v1634 = vrot.slane %v1626, %v1633
      %v1636 = vunpack.c.l.s4 1983009808
      %v1637 = vunpack.c.0.s8 %v1636
      %v1638 = vlaneseq
      %v1639 = vshrl.u32 %v1638, 7
      %v1640 = vsub.s32 %v1637, %v1639
      %v1641 = vrot.slane %v1627, %v1640
      %v1642 = vcombine.low %v1443, %v1455
      %v1643 = vcombine.high %v1443, %v1455
      %v1645 = vunpack.c.l.s4 1983009808
      %v1646 = vunpack.c.0.s8 %v1645
      %v1647 = vlaneseq
      %v1648 = vshrl.u32 %v1647, 7
      %v1649 = vsub.s32 %v1646, %v1648
      %v1650 = vrot.slane %v1642, %v1649
      %v1652 = vunpack.c.l.s4 1983009808
      %v1653 = vunpack.c.0.s8 %v1652
      %v1654 = vlaneseq
      %v1655 = vshrl.u32 %v1654, 7
      %v1656 = vsub.s32 %v1653, %v1655
      %v1657 = vrot.slane %v1643, %v1656
      %v1658 = vcombine.low %v1602, %v1618
      %v1659 = vcombine.high %v1602, %v1618
      %v1661 = vunpack.c.l.s4 1934713408
      %v1662 = vunpack.c.0.s8 %v1661
      %v1663 = vlaneseq
      %v1664 = vshrl.u32 %v1663, 7
      %v1665 = vsub.s32 %v1662, %v1664
      %v1666 = vrot.slane %v1658, %v1665
      %v1668 = vunpack.c.l.s4 1934713408
      %v1669 = vunpack.c.0.s8 %v1668
      %v1670 = vlaneseq
      %v1671 = vshrl.u32 %v1670, 7
      %v1672 = vsub.s32 %v1669, %v1671
      %v1673 = vrot.slane %v1659, %v1672
      %v1674 = vcombine.low %v1609, %v1625
      %v1675 = vcombine.high %v1609, %v1625
      %v1677 = vunpack.c.l.s4 1934713408
      %v1678 = vunpack.c.0.s8 %v1677
      %v1679 = vlaneseq
      %v1680 = vshrl.u32 %v1679, 7
      %v1681 = vsub.s32 %v1678, %v1680
      %v1682 = vrot.slane %v1674, %v1681
      %v1684 = vunpack.c.l.s4 1934713408
      %v1685 = vunpack.c.0.s8 %v1684
      %v1686 = vlaneseq
      %v1687 = vshrl.u32 %v1686, 7
      %v1688 = vsub.s32 %v1685, %v1687
      %v1689 = vrot.slane %v1675, %v1688
      %v1690 = vcombine.low %v1634, %v1650
      %v1691 = vcombine.high %v1634, %v1650
      %v1693 = vunpack.c.l.s4 1934713408
      %v1694 = vunpack.c.0.s8 %v1693
      %v1695 = vlaneseq
      %v1696 = vshrl.u32 %v1695, 7
      %v1697 = vsub.s32 %v1694, %v1696
      %v1698 = vrot.slane %v1690, %v1697
      %v1700 = vunpack.c.l.s4 1934713408
      %v1701 = vunpack.c.0.s8 %v1700
      %v1702 = vlaneseq
      %v1703 = vshrl.u32 %v1702, 7
      %v1704 = vsub.s32 %v1701, %v1703
      %v1705 = vrot.slane %v1691, %v1704
      %v1706 = vcombine.low %v1641, %v1657
      %v1707 = vcombine.high %v1641, %v1657
      %v1709 = vunpack.c.l.s4 1934713408
      %v1710 = vunpack.c.0.s8 %v1709
      %v1711 = vlaneseq
      %v1712 = vshrl.u32 %v1711, 7
      %v1713 = vsub.s32 %v1710, %v1712
      %v1714 = vrot.slane %v1706, %v1713
      %v1716 = vunpack.c.l.s4 1934713408
      %v1717 = vunpack.c.0.s8 %v1716
      %v1718 = vlaneseq
      %v1719 = vshrl.u32 %v1718, 7
      %v1720 = vsub.s32 %v1717, %v1719
      %v1721 = vrot.slane %v1707, %v1720
      %v1722 = vcombine.low %v1666, %v1698
      %v1723 = vcombine.high %v1666, %v1698
      %v1724 = vcombine.low %v1673, %v1705
      %v1725 = vcombine.high %v1673, %v1705
      %v1726 = vcombine.low %v1682, %v1714
      %v1727 = vcombine.high %v1682, %v1714
      %v1728 = vcombine.low %v1689, %v1721
      %v1729 = vcombine.high %v1689, %v1721
      %v1730 = vcombine.low %v1586, %v1588
      %v1731 = vcombine.high %v1586, %v1588
      %v1733 = vunpack.c.l.s4 1983009808
      %v1734 = vunpack.c.0.s8 %v1733
      %v1735 = vlaneseq
      %v1736 = vshrl.u32 %v1735, 7
      %v1737 = vsub.s32 %v1734, %v1736
      %v1738 = vrot.slane %v1730, %v1737
      %v1740 = vunpack.c.l.s4 1983009808
      %v1741 = vunpack.c.0.s8 %v1740
      %v1742 = vlaneseq
      %v1743 = vshrl.u32 %v1742, 7
      %v1744 = vsub.s32 %v1741, %v1743
      %v1745 = vrot.slane %v1731, %v1744
      %v1746 = vcombine.low %v1587, %v1589
      %v1747 = vcombine.high %v1587, %v1589
      %v1749 = vunpack.c.l.s4 1983009808
      %v1750 = vunpack.c.0.s8 %v1749
      %v1751 = vlaneseq
      %v1752 = vshrl.u32 %v1751, 7
      %v1753 = vsub.s32 %v1750, %v1752
      %v1754 = vrot.slane %v1746, %v1753
      %v1756 = vunpack.c.l.s4 1983009808
      %v1757 = vunpack.c.0.s8 %v1756
      %v1758 = vlaneseq
      %v1759 = vshrl.u32 %v1758, 7
      %v1760 = vsub.s32 %v1757, %v1759
      %v1761 = vrot.slane %v1747, %v1760
      %v1762 = vcombine.low %v1590, %v1592
      %v1763 = vcombine.high %v1590, %v1592
      %v1765 = vunpack.c.l.s4 1983009808
      %v1766 = vunpack.c.0.s8 %v1765
      %v1767 = vlaneseq
      %v1768 = vshrl.u32 %v1767, 7
      %v1769 = vsub.s32 %v1766, %v1768
      %v1770 = vrot.slane %v1762, %v1769
      %v1772 = vunpack.c.l.s4 1983009808
      %v1773 = vunpack.c.0.s8 %v1772
      %v1774 = vlaneseq
      %v1775 = vshrl.u32 %v1774, 7
      %v1776 = vsub.s32 %v1773, %v1775
      %v1777 = vrot.slane %v1763, %v1776
      %v1778 = vcombine.low %v1591, %v1593
      %v1779 = vcombine.high %v1591, %v1593
      %v1781 = vunpack.c.l.s4 1983009808
      %v1782 = vunpack.c.0.s8 %v1781
      %v1783 = vlaneseq
      %v1784 = vshrl.u32 %v1783, 7
      %v1785 = vsub.s32 %v1782, %v1784
      %v1786 = vrot.slane %v1778, %v1785
      %v1788 = vunpack.c.l.s4 1983009808
      %v1789 = vunpack.c.0.s8 %v1788
      %v1790 = vlaneseq
      %v1791 = vshrl.u32 %v1790, 7
      %v1792 = vsub.s32 %v1789, %v1791
      %v1793 = vrot.slane %v1779, %v1792
      %v1794 = vcombine.low %v1738, %v1754
      %v1795 = vcombine.high %v1738, %v1754
      %v1797 = vunpack.c.l.s4 1934713408
      %v1798 = vunpack.c.0.s8 %v1797
      %v1799 = vlaneseq
      %v1800 = vshrl.u32 %v1799, 7
      %v1801 = vsub.s32 %v1798, %v1800
      %v1802 = vrot.slane %v1794, %v1801
      %v1804 = vunpack.c.l.s4 1934713408
      %v1805 = vunpack.c.0.s8 %v1804
      %v1806 = vlaneseq
      %v1807 = vshrl.u32 %v1806, 7
      %v1808 = vsub.s32 %v1805, %v1807
      %v1809 = vrot.slane %v1795, %v1808
      %v1810 = vcombine.low %v1745, %v1761
      %v1811 = vcombine.high %v1745, %v1761
      %v1813 = vunpack.c.l.s4 1934713408
      %v1814 = vunpack.c.0.s8 %v1813
      %v1815 = vlaneseq
      %v1816 = vshrl.u32 %v1815, 7
      %v1817 = vsub.s32 %v1814, %v1816
      %v1818 = vrot.slane %v1810, %v1817
      %v1820 = vunpack.c.l.s4 1934713408
      %v1821 = vunpack.c.0.s8 %v1820
      %v1822 = vlaneseq
      %v1823 = vshrl.u32 %v1822, 7
      %v1824 = vsub.s32 %v1821, %v1823
      %v1825 = vrot.slane %v1811, %v1824
      %v1826 = vcombine.low %v1770, %v1786
      %v1827 = vcombine.high %v1770, %v1786
      %v1829 = vunpack.c.l.s4 1934713408
      %v1830 = vunpack.c.0.s8 %v1829
      %v1831 = vlaneseq
      %v1832 = vshrl.u32 %v1831, 7
      %v1833 = vsub.s32 %v1830, %v1832
      %v1834 = vrot.slane %v1826, %v1833
      %v1836 = vunpack.c.l.s4 1934713408
      %v1837 = vunpack.c.0.s8 %v1836
      %v1838 = vlaneseq
      %v1839 = vshrl.u32 %v1838, 7
      %v1840 = vsub.s32 %v1837, %v1839
      %v1841 = vrot.slane %v1827, %v1840
      %v1842 = vcombine.low %v1777, %v1793
      %v1843 = vcombine.high %v1777, %v1793
      %v1845 = vunpack.c.l.s4 1934713408
      %v1846 = vunpack.c.0.s8 %v1845
      %v1847 = vlaneseq
      %v1848 = vshrl.u32 %v1847, 7
      %v1849 = vsub.s32 %v1846, %v1848
      %v1850 = vrot.slane %v1842, %v1849
      %v1852 = vunpack.c.l.s4 1934713408
      %v1853 = vunpack.c.0.s8 %v1852
      %v1854 = vlaneseq
      %v1855 = vshrl.u32 %v1854, 7
      %v1856 = vsub.s32 %v1853, %v1855
      %v1857 = vrot.slane %v1843, %v1856
      %v1858 = vcombine.low %v1802, %v1834
      %v1859 = vcombine.high %v1802, %v1834
      %v1860 = vcombine.low %v1809, %v1841
      %v1861 = vcombine.high %v1809, %v1841
      %v1862 = vcombine.low %v1818, %v1850
      %v1863 = vcombine.high %v1818, %v1850
      %v1864 = vcombine.low %v1825, %v1857
      %v1865 = vcombine.high %v1825, %v1857
      %v1866 = vcombine.low %v1722, %v1724
      %v1867 = vcombine.high %v1722, %v1724
      %v1869 = vunpack.c.l.s4 1983009808
      %v1870 = vunpack.c.0.s8 %v1869
      %v1871 = vlaneseq
      %v1872 = vshrl.u32 %v1871, 7
      %v1873 = vsub.s32 %v1870, %v1872
      %v1874 = vrot.slane %v1866, %v1873
      %v1876 = vunpack.c.l.s4 1983009808
      %v1877 = vunpack.c.0.s8 %v1876
      %v1878 = vlaneseq
      %v1879 = vshrl.u32 %v1878, 7
      %v1880 = vsub.s32 %v1877, %v1879
      %v1881 = vrot.slane %v1867, %v1880
      %v1882 = vcombine.low %v1723, %v1725
      %v1883 = vcombine.high %v1723, %v1725
      %v1885 = vunpack.c.l.s4 1983009808
      %v1886 = vunpack.c.0.s8 %v1885
      %v1887 = vlaneseq
      %v1888 = vshrl.u32 %v1887, 7
      %v1889 = vsub.s32 %v1886, %v1888
      %v1890 = vrot.slane %v1882, %v1889
      %v1892 = vunpack.c.l.s4 1983009808
      %v1893 = vunpack.c.0.s8 %v1892
      %v1894 = vlaneseq
      %v1895 = vshrl.u32 %v1894, 7
      %v1896 = vsub.s32 %v1893, %v1895
      %v1897 = vrot.slane %v1883, %v1896
      %v1898 = vcombine.low %v1726, %v1728
      %v1899 = vcombine.high %v1726, %v1728
      %v1901 = vunpack.c.l.s4 1983009808
      %v1902 = vunpack.c.0.s8 %v1901
      %v1903 = vlaneseq
      %v1904 = vshrl.u32 %v1903, 7
      %v1905 = vsub.s32 %v1902, %v1904
      %v1906 = vrot.slane %v1898, %v1905
      %v1908 = vunpack.c.l.s4 1983009808
      %v1909 = vunpack.c.0.s8 %v1908
      %v1910 = vlaneseq
      %v1911 = vshrl.u32 %v1910, 7
      %v1912 = vsub.s32 %v1909, %v1911
      %v1913 = vrot.slane %v1899, %v1912
      %v1914 = vcombine.low %v1727, %v1729
      %v1915 = vcombine.high %v1727, %v1729
      %v1917 = vunpack.c.l.s4 1983009808
      %v1918 = vunpack.c.0.s8 %v1917
      %v1919 = vlaneseq
      %v1920 = vshrl.u32 %v1919, 7
      %v1921 = vsub.s32 %v1918, %v1920
      %v1922 = vrot.slane %v1914, %v1921
      %v1924 = vunpack.c.l.s4 1983009808
      %v1925 = vunpack.c.0.s8 %v1924
      %v1926 = vlaneseq
      %v1927 = vshrl.u32 %v1926, 7
      %v1928 = vsub.s32 %v1925, %v1927
      %v1929 = vrot.slane %v1915, %v1928
      %v1930 = vcombine.low %v1874, %v1890
      %v1931 = vcombine.high %v1874, %v1890
      %v1933 = vunpack.c.l.s4 1934713408
      %v1934 = vunpack.c.0.s8 %v1933
      %v1935 = vlaneseq
      %v1936 = vshrl.u32 %v1935, 7
      %v1937 = vsub.s32 %v1934, %v1936
      %v1938 = vrot.slane %v1930, %v1937
      %v1940 = vunpack.c.l.s4 1934713408
      %v1941 = vunpack.c.0.s8 %v1940
      %v1942 = vlaneseq
      %v1943 = vshrl.u32 %v1942, 7
      %v1944 = vsub.s32 %v1941, %v1943
      %v1945 = vrot.slane %v1931, %v1944
      %v1946 = vcombine.low %v1881, %v1897
      %v1947 = vcombine.high %v1881, %v1897
      %v1949 = vunpack.c.l.s4 1934713408
      %v1950 = vunpack.c.0.s8 %v1949
      %v1951 = vlaneseq
      %v1952 = vshrl.u32 %v1951, 7
      %v1953 = vsub.s32 %v1950, %v1952
      %v1954 = vrot.slane %v1946, %v1953
      %v1956 = vunpack.c.l.s4 1934713408
      %v1957 = vunpack.c.0.s8 %v1956
      %v1958 = vlaneseq
      %v1959 = vshrl.u32 %v1958, 7
      %v1960 = vsub.s32 %v1957, %v1959
      %v1961 = vrot.slane %v1947, %v1960
      %v1962 = vcombine.low %v1906, %v1922
      %v1963 = vcombine.high %v1906, %v1922
      %v1965 = vunpack.c.l.s4 1934713408
      %v1966 = vunpack.c.0.s8 %v1965
      %v1967 = vlaneseq
      %v1968 = vshrl.u32 %v1967, 7
      %v1969 = vsub.s32 %v1966, %v1968
      %v1970 = vrot.slane %v1962, %v1969
      %v1972 = vunpack.c.l.s4 1934713408
      %v1973 = vunpack.c.0.s8 %v1972
      %v1974 = vlaneseq
      %v1975 = vshrl.u32 %v1974, 7
      %v1976 = vsub.s32 %v1973, %v1975
      %v1977 = vrot.slane %v1963, %v1976
      %v1978 = vcombine.low %v1913, %v1929
      %v1979 = vcombine.high %v1913, %v1929
      %v1981 = vunpack.c.l.s4 1934713408
      %v1982 = vunpack.c.0.s8 %v1981
      %v1983 = vlaneseq
      %v1984 = vshrl.u32 %v1983, 7
      %v1985 = vsub.s32 %v1982, %v1984
      %v1986 = vrot.slane %v1978, %v1985
      %v1988 = vunpack.c.l.s4 1934713408
      %v1989 = vunpack.c.0.s8 %v1988
      %v1990 = vlaneseq
      %v1991 = vshrl.u32 %v1990, 7
      %v1992 = vsub.s32 %v1989, %v1991
      %v1993 = vrot.slane %v1979, %v1992
      %v1994 = vcombine.low %v1938, %v1970
      %v1995 = vcombine.high %v1938, %v1970
      %v1996 = vcombine.low %v1945, %v1977
      %v1997 = vcombine.high %v1945, %v1977
      %v1998 = vcombine.low %v1954, %v1986
      %v1999 = vcombine.high %v1954, %v1986
      %v2000 = vcombine.low %v1961, %v1993
      %v2001 = vcombine.high %v1961, %v1993
      %v2002 = vpack.c.bf16 %v1994, %v1858
      %v2003 = vpack.c.bf16 %v1995, %v1859
      %v2004 = vpack.c.bf16 %v1996, %v1860
      %v2005 = vpack.c.bf16 %v1997, %v1861
      %v2006 = vpack.c.bf16 %v1998, %v1862
      %v2007 = vpack.c.bf16 %v1999, %v1863
      %v2008 = vpack.c.bf16 %v2000, %v1864
      %v2009 = vpack.c.bf16 %v2001, %v1865
      %2012 = vrot.lane.b32.xlu0 %v1344, 124
      %v2013 = vpop.permute.xlu0 %2012
      %2014 = vrot.lane.b32.xlu0 %v1347, 124
      %v2015 = vpop.permute.xlu0 %2014
      %2018 = vrot.lane.b32.xlu0 %v1344, 120
      %v2019 = vpop.permute.xlu0 %2018
      %2020 = vrot.lane.b32.xlu0 %v1347, 120
      %v2021 = vpop.permute.xlu0 %2020
      %2024 = vrot.lane.b32.xlu0 %v1344, 116
      %v2025 = vpop.permute.xlu0 %2024
      %2026 = vrot.lane.b32.xlu0 %v1347, 116
      %v2027 = vpop.permute.xlu0 %2026
      %2030 = vrot.lane.b32.xlu0 %v1344, 112
      %v2031 = vpop.permute.xlu0 %2030
      %2032 = vrot.lane.b32.xlu0 %v1347, 112
      %v2033 = vpop.permute.xlu0 %2032
      %2036 = vrot.lane.b32.xlu0 %v1344, 108
      %v2037 = vpop.permute.xlu0 %2036
      %2038 = vrot.lane.b32.xlu0 %v1347, 108
      %v2039 = vpop.permute.xlu0 %2038
      %2042 = vrot.lane.b32.xlu0 %v1344, 104
      %v2043 = vpop.permute.xlu0 %2042
      %2044 = vrot.lane.b32.xlu0 %v1347, 104
      %v2045 = vpop.permute.xlu0 %2044
      %2048 = vrot.lane.b32.xlu0 %v1344, 100
      %v2049 = vpop.permute.xlu0 %2048
      %2050 = vrot.lane.b32.xlu0 %v1347, 100
      %v2051 = vpop.permute.xlu0 %2050
      %v2054 = vcombine.low %v1344, %v2019
      %v2055 = vcombine.high %v1344, %v2019
      %v2057 = vunpack.c.l.s4 1983009808
      %v2058 = vunpack.c.0.s8 %v2057
      %v2059 = vlaneseq
      %v2060 = vshrl.u32 %v2059, 7
      %v2061 = vsub.s32 %v2058, %v2060
      %v2062 = vrot.slane %v2054, %v2061
      %v2064 = vunpack.c.l.s4 1983009808
      %v2065 = vunpack.c.0.s8 %v2064
      %v2066 = vlaneseq
      %v2067 = vshrl.u32 %v2066, 7
      %v2068 = vsub.s32 %v2065, %v2067
      %v2069 = vrot.slane %v2055, %v2068
      %v2070 = vcombine.low %v2013, %v2025
      %v2071 = vcombine.high %v2013, %v2025
      %v2073 = vunpack.c.l.s4 1983009808
      %v2074 = vunpack.c.0.s8 %v2073
      %v2075 = vlaneseq
      %v2076 = vshrl.u32 %v2075, 7
      %v2077 = vsub.s32 %v2074, %v2076
      %v2078 = vrot.slane %v2070, %v2077
      %v2080 = vunpack.c.l.s4 1983009808
      %v2081 = vunpack.c.0.s8 %v2080
      %v2082 = vlaneseq
      %v2083 = vshrl.u32 %v2082, 7
      %v2084 = vsub.s32 %v2081, %v2083
      %v2085 = vrot.slane %v2071, %v2084
      %v2086 = vcombine.low %v2031, %v2043
      %v2087 = vcombine.high %v2031, %v2043
      %v2089 = vunpack.c.l.s4 1983009808
      %v2090 = vunpack.c.0.s8 %v2089
      %v2091 = vlaneseq
      %v2092 = vshrl.u32 %v2091, 7
      %v2093 = vsub.s32 %v2090, %v2092
      %v2094 = vrot.slane %v2086, %v2093
      %v2096 = vunpack.c.l.s4 1983009808
      %v2097 = vunpack.c.0.s8 %v2096
      %v2098 = vlaneseq
      %v2099 = vshrl.u32 %v2098, 7
      %v2100 = vsub.s32 %v2097, %v2099
      %v2101 = vrot.slane %v2087, %v2100
      %v2102 = vcombine.low %v2037, %v2049
      %v2103 = vcombine.high %v2037, %v2049
      %v2105 = vunpack.c.l.s4 1983009808
      %v2106 = vunpack.c.0.s8 %v2105
      %v2107 = vlaneseq
      %v2108 = vshrl.u32 %v2107, 7
      %v2109 = vsub.s32 %v2106, %v2108
      %v2110 = vrot.slane %v2102, %v2109
      %v2112 = vunpack.c.l.s4 1983009808
      %v2113 = vunpack.c.0.s8 %v2112
      %v2114 = vlaneseq
      %v2115 = vshrl.u32 %v2114, 7
      %v2116 = vsub.s32 %v2113, %v2115
      %v2117 = vrot.slane %v2103, %v2116
      %v2118 = vcombine.low %v2062, %v2078
      %v2119 = vcombine.high %v2062, %v2078
      %v2121 = vunpack.c.l.s4 1934713408
      %v2122 = vunpack.c.0.s8 %v2121
      %v2123 = vlaneseq
      %v2124 = vshrl.u32 %v2123, 7
      %v2125 = vsub.s32 %v2122, %v2124
      %v2126 = vrot.slane %v2118, %v2125
      %v2128 = vunpack.c.l.s4 1934713408
      %v2129 = vunpack.c.0.s8 %v2128
      %v2130 = vlaneseq
      %v2131 = vshrl.u32 %v2130, 7
      %v2132 = vsub.s32 %v2129, %v2131
      %v2133 = vrot.slane %v2119, %v2132
      %v2134 = vcombine.low %v2069, %v2085
      %v2135 = vcombine.high %v2069, %v2085
      %v2137 = vunpack.c.l.s4 1934713408
      %v2138 = vunpack.c.0.s8 %v2137
      %v2139 = vlaneseq
      %v2140 = vshrl.u32 %v2139, 7
      %v2141 = vsub.s32 %v2138, %v2140
      %v2142 = vrot.slane %v2134, %v2141
      %v2144 = vunpack.c.l.s4 1934713408
      %v2145 = vunpack.c.0.s8 %v2144
      %v2146 = vlaneseq
      %v2147 = vshrl.u32 %v2146, 7
      %v2148 = vsub.s32 %v2145, %v2147
      %v2149 = vrot.slane %v2135, %v2148
      %v2150 = vcombine.low %v2094, %v2110
      %v2151 = vcombine.high %v2094, %v2110
      %v2153 = vunpack.c.l.s4 1934713408
      %v2154 = vunpack.c.0.s8 %v2153
      %v2155 = vlaneseq
      %v2156 = vshrl.u32 %v2155, 7
      %v2157 = vsub.s32 %v2154, %v2156
      %v2158 = vrot.slane %v2150, %v2157
      %v2160 = vunpack.c.l.s4 1934713408
      %v2161 = vunpack.c.0.s8 %v2160
      %v2162 = vlaneseq
      %v2163 = vshrl.u32 %v2162, 7
      %v2164 = vsub.s32 %v2161, %v2163
      %v2165 = vrot.slane %v2151, %v2164
      %v2166 = vcombine.low %v2101, %v2117
      %v2167 = vcombine.high %v2101, %v2117
      %v2169 = vunpack.c.l.s4 1934713408
      %v2170 = vunpack.c.0.s8 %v2169
      %v2171 = vlaneseq
      %v2172 = vshrl.u32 %v2171, 7
      %v2173 = vsub.s32 %v2170, %v2172
      %v2174 = vrot.slane %v2166, %v2173
      %v2176 = vunpack.c.l.s4 1934713408
      %v2177 = vunpack.c.0.s8 %v2176
      %v2178 = vlaneseq
      %v2179 = vshrl.u32 %v2178, 7
      %v2180 = vsub.s32 %v2177, %v2179
      %v2181 = vrot.slane %v2167, %v2180
      %v2182 = vcombine.low %v2126, %v2158
      %v2183 = vcombine.high %v2126, %v2158
      %v2184 = vcombine.low %v2133, %v2165
      %v2185 = vcombine.high %v2133, %v2165
      %v2186 = vcombine.low %v2142, %v2174
      %v2187 = vcombine.high %v2142, %v2174
      %v2188 = vcombine.low %v2149, %v2181
      %v2189 = vcombine.high %v2149, %v2181
      %v2190 = vcombine.low %v1347, %v2021
      %v2191 = vcombine.high %v1347, %v2021
      %v2193 = vunpack.c.l.s4 1983009808
      %v2194 = vunpack.c.0.s8 %v2193
      %v2195 = vlaneseq
      %v2196 = vshrl.u32 %v2195, 7
      %v2197 = vsub.s32 %v2194, %v2196
      %v2198 = vrot.slane %v2190, %v2197
      %v2200 = vunpack.c.l.s4 1983009808
      %v2201 = vunpack.c.0.s8 %v2200
      %v2202 = vlaneseq
      %v2203 = vshrl.u32 %v2202, 7
      %v2204 = vsub.s32 %v2201, %v2203
      %v2205 = vrot.slane %v2191, %v2204
      %v2206 = vcombine.low %v2015, %v2027
      %v2207 = vcombine.high %v2015, %v2027
      %v2209 = vunpack.c.l.s4 1983009808
      %v2210 = vunpack.c.0.s8 %v2209
      %v2211 = vlaneseq
      %v2212 = vshrl.u32 %v2211, 7
      %v2213 = vsub.s32 %v2210, %v2212
      %v2214 = vrot.slane %v2206, %v2213
      %v2216 = vunpack.c.l.s4 1983009808
      %v2217 = vunpack.c.0.s8 %v2216
      %v2218 = vlaneseq
      %v2219 = vshrl.u32 %v2218, 7
      %v2220 = vsub.s32 %v2217, %v2219
      %v2221 = vrot.slane %v2207, %v2220
      %v2222 = vcombine.low %v2033, %v2045
      %v2223 = vcombine.high %v2033, %v2045
      %v2225 = vunpack.c.l.s4 1983009808
      %v2226 = vunpack.c.0.s8 %v2225
      %v2227 = vlaneseq
      %v2228 = vshrl.u32 %v2227, 7
      %v2229 = vsub.s32 %v2226, %v2228
      %v2230 = vrot.slane %v2222, %v2229
      %v2232 = vunpack.c.l.s4 1983009808
      %v2233 = vunpack.c.0.s8 %v2232
      %v2234 = vlaneseq
      %v2235 = vshrl.u32 %v2234, 7
      %v2236 = vsub.s32 %v2233, %v2235
      %v2237 = vrot.slane %v2223, %v2236
      %v2238 = vcombine.low %v2039, %v2051
      %v2239 = vcombine.high %v2039, %v2051
      %v2241 = vunpack.c.l.s4 1983009808
      %v2242 = vunpack.c.0.s8 %v2241
      %v2243 = vlaneseq
      %v2244 = vshrl.u32 %v2243, 7
      %v2245 = vsub.s32 %v2242, %v2244
      %v2246 = vrot.slane %v2238, %v2245
      %v2248 = vunpack.c.l.s4 1983009808
      %v2249 = vunpack.c.0.s8 %v2248
      %v2250 = vlaneseq
      %v2251 = vshrl.u32 %v2250, 7
      %v2252 = vsub.s32 %v2249, %v2251
      %v2253 = vrot.slane %v2239, %v2252
      %v2254 = vcombine.low %v2198, %v2214
      %v2255 = vcombine.high %v2198, %v2214
      %v2257 = vunpack.c.l.s4 1934713408
      %v2258 = vunpack.c.0.s8 %v2257
      %v2259 = vlaneseq
      %v2260 = vshrl.u32 %v2259, 7
      %v2261 = vsub.s32 %v2258, %v2260
      %v2262 = vrot.slane %v2254, %v2261
      %v2264 = vunpack.c.l.s4 1934713408
      %v2265 = vunpack.c.0.s8 %v2264
      %v2266 = vlaneseq
      %v2267 = vshrl.u32 %v2266, 7
      %v2268 = vsub.s32 %v2265, %v2267
      %v2269 = vrot.slane %v2255, %v2268
      %v2270 = vcombine.low %v2205, %v2221
      %v2271 = vcombine.high %v2205, %v2221
      %v2273 = vunpack.c.l.s4 1934713408
      %v2274 = vunpack.c.0.s8 %v2273
      %v2275 = vlaneseq
      %v2276 = vshrl.u32 %v2275, 7
      %v2277 = vsub.s32 %v2274, %v2276
      %v2278 = vrot.slane %v2270, %v2277
      %v2280 = vunpack.c.l.s4 1934713408
      %v2281 = vunpack.c.0.s8 %v2280
      %v2282 = vlaneseq
      %v2283 = vshrl.u32 %v2282, 7
      %v2284 = vsub.s32 %v2281, %v2283
      %v2285 = vrot.slane %v2271, %v2284
      %v2286 = vcombine.low %v2230, %v2246
      %v2287 = vcombine.high %v2230, %v2246
      %v2289 = vunpack.c.l.s4 1934713408
      %v2290 = vunpack.c.0.s8 %v2289
      %v2291 = vlaneseq
      %v2292 = vshrl.u32 %v2291, 7
      %v2293 = vsub.s32 %v2290, %v2292
      %v2294 = vrot.slane %v2286, %v2293
      %v2296 = vunpack.c.l.s4 1934713408
      %v2297 = vunpack.c.0.s8 %v2296
      %v2298 = vlaneseq
      %v2299 = vshrl.u32 %v2298, 7
      %v2300 = vsub.s32 %v2297, %v2299
      %v2301 = vrot.slane %v2287, %v2300
      %v2302 = vcombine.low %v2237, %v2253
      %v2303 = vcombine.high %v2237, %v2253
      %v2305 = vunpack.c.l.s4 1934713408
      %v2306 = vunpack.c.0.s8 %v2305
      %v2307 = vlaneseq
      %v2308 = vshrl.u32 %v2307, 7
      %v2309 = vsub.s32 %v2306, %v2308
      %v2310 = vrot.slane %v2302, %v2309
      %v2312 = vunpack.c.l.s4 1934713408
      %v2313 = vunpack.c.0.s8 %v2312
      %v2314 = vlaneseq
      %v2315 = vshrl.u32 %v2314, 7
      %v2316 = vsub.s32 %v2313, %v2315
      %v2317 = vrot.slane %v2303, %v2316
      %v2318 = vcombine.low %v2262, %v2294
      %v2319 = vcombine.high %v2262, %v2294
      %v2320 = vcombine.low %v2269, %v2301
      %v2321 = vcombine.high %v2269, %v2301
      %v2322 = vcombine.low %v2278, %v2310
      %v2323 = vcombine.high %v2278, %v2310
      %v2324 = vcombine.low %v2285, %v2317
      %v2325 = vcombine.high %v2285, %v2317
      %v2326 = vcombine.low %v2182, %v2184
      %v2327 = vcombine.high %v2182, %v2184
      %v2329 = vunpack.c.l.s4 1983009808
      %v2330 = vunpack.c.0.s8 %v2329
      %v2331 = vlaneseq
      %v2332 = vshrl.u32 %v2331, 7
      %v2333 = vsub.s32 %v2330, %v2332
      %v2334 = vrot.slane %v2326, %v2333
      %v2336 = vunpack.c.l.s4 1983009808
      %v2337 = vunpack.c.0.s8 %v2336
      %v2338 = vlaneseq
      %v2339 = vshrl.u32 %v2338, 7
      %v2340 = vsub.s32 %v2337, %v2339
      %v2341 = vrot.slane %v2327, %v2340
      %v2342 = vcombine.low %v2183, %v2185
      %v2343 = vcombine.high %v2183, %v2185
      %v2345 = vunpack.c.l.s4 1983009808
      %v2346 = vunpack.c.0.s8 %v2345
      %v2347 = vlaneseq
      %v2348 = vshrl.u32 %v2347, 7
      %v2349 = vsub.s32 %v2346, %v2348
      %v2350 = vrot.slane %v2342, %v2349
      %v2352 = vunpack.c.l.s4 1983009808
      %v2353 = vunpack.c.0.s8 %v2352
      %v2354 = vlaneseq
      %v2355 = vshrl.u32 %v2354, 7
      %v2356 = vsub.s32 %v2353, %v2355
      %v2357 = vrot.slane %v2343, %v2356
      %v2358 = vcombine.low %v2186, %v2188
      %v2359 = vcombine.high %v2186, %v2188
      %v2361 = vunpack.c.l.s4 1983009808
      %v2362 = vunpack.c.0.s8 %v2361
      %v2363 = vlaneseq
      %v2364 = vshrl.u32 %v2363, 7
      %v2365 = vsub.s32 %v2362, %v2364
      %v2366 = vrot.slane %v2358, %v2365
      %v2368 = vunpack.c.l.s4 1983009808
      %v2369 = vunpack.c.0.s8 %v2368
      %v2370 = vlaneseq
      %v2371 = vshrl.u32 %v2370, 7
      %v2372 = vsub.s32 %v2369, %v2371
      %v2373 = vrot.slane %v2359, %v2372
      %v2374 = vcombine.low %v2187, %v2189
      %v2375 = vcombine.high %v2187, %v2189
      %v2377 = vunpack.c.l.s4 1983009808
      %v2378 = vunpack.c.0.s8 %v2377
      %v2379 = vlaneseq
      %v2380 = vshrl.u32 %v2379, 7
      %v2381 = vsub.s32 %v2378, %v2380
      %v2382 = vrot.slane %v2374, %v2381
      %v2384 = vunpack.c.l.s4 1983009808
      %v2385 = vunpack.c.0.s8 %v2384
      %v2386 = vlaneseq
      %v2387 = vshrl.u32 %v2386, 7
      %v2388 = vsub.s32 %v2385, %v2387
      %v2389 = vrot.slane %v2375, %v2388
      %v2390 = vcombine.low %v2334, %v2350
      %v2391 = vcombine.high %v2334, %v2350
      %v2393 = vunpack.c.l.s4 1934713408
      %v2394 = vunpack.c.0.s8 %v2393
      %v2395 = vlaneseq
      %v2396 = vshrl.u32 %v2395, 7
      %v2397 = vsub.s32 %v2394, %v2396
      %v2398 = vrot.slane %v2390, %v2397
      %v2400 = vunpack.c.l.s4 1934713408
      %v2401 = vunpack.c.0.s8 %v2400
      %v2402 = vlaneseq
      %v2403 = vshrl.u32 %v2402, 7
      %v2404 = vsub.s32 %v2401, %v2403
      %v2405 = vrot.slane %v2391, %v2404
      %v2406 = vcombine.low %v2341, %v2357
      %v2407 = vcombine.high %v2341, %v2357
      %v2409 = vunpack.c.l.s4 1934713408
      %v2410 = vunpack.c.0.s8 %v2409
      %v2411 = vlaneseq
      %v2412 = vshrl.u32 %v2411, 7
      %v2413 = vsub.s32 %v2410, %v2412
      %v2414 = vrot.slane %v2406, %v2413
      %v2416 = vunpack.c.l.s4 1934713408
      %v2417 = vunpack.c.0.s8 %v2416
      %v2418 = vlaneseq
      %v2419 = vshrl.u32 %v2418, 7
      %v2420 = vsub.s32 %v2417, %v2419
      %v2421 = vrot.slane %v2407, %v2420
      %v2422 = vcombine.low %v2366, %v2382
      %v2423 = vcombine.high %v2366, %v2382
      %v2425 = vunpack.c.l.s4 1934713408
      %v2426 = vunpack.c.0.s8 %v2425
      %v2427 = vlaneseq
      %v2428 = vshrl.u32 %v2427, 7
      %v2429 = vsub.s32 %v2426, %v2428
      %v2430 = vrot.slane %v2422, %v2429
      %v2432 = vunpack.c.l.s4 1934713408
      %v2433 = vunpack.c.0.s8 %v2432
      %v2434 = vlaneseq
      %v2435 = vshrl.u32 %v2434, 7
      %v2436 = vsub.s32 %v2433, %v2435
      %v2437 = vrot.slane %v2423, %v2436
      %v2438 = vcombine.low %v2373, %v2389
      %v2439 = vcombine.high %v2373, %v2389
      %v2441 = vunpack.c.l.s4 1934713408
      %v2442 = vunpack.c.0.s8 %v2441
      %v2443 = vlaneseq
      %v2444 = vshrl.u32 %v2443, 7
      %v2445 = vsub.s32 %v2442, %v2444
      %v2446 = vrot.slane %v2438, %v2445
      %v2448 = vunpack.c.l.s4 1934713408
      %v2449 = vunpack.c.0.s8 %v2448
      %v2450 = vlaneseq
      %v2451 = vshrl.u32 %v2450, 7
      %v2452 = vsub.s32 %v2449, %v2451
      %v2453 = vrot.slane %v2439, %v2452
      %v2454 = vcombine.low %v2398, %v2430
      %v2455 = vcombine.high %v2398, %v2430
      %v2456 = vcombine.low %v2405, %v2437
      %v2457 = vcombine.high %v2405, %v2437
      %v2458 = vcombine.low %v2414, %v2446
      %v2459 = vcombine.high %v2414, %v2446
      %v2460 = vcombine.low %v2421, %v2453
      %v2461 = vcombine.high %v2421, %v2453
      %v2462 = vcombine.low %v2318, %v2320
      %v2463 = vcombine.high %v2318, %v2320
      %v2465 = vunpack.c.l.s4 1983009808
      %v2466 = vunpack.c.0.s8 %v2465
      %v2467 = vlaneseq
      %v2468 = vshrl.u32 %v2467, 7
      %v2469 = vsub.s32 %v2466, %v2468
      %v2470 = vrot.slane %v2462, %v2469
      %v2472 = vunpack.c.l.s4 1983009808
      %v2473 = vunpack.c.0.s8 %v2472
      %v2474 = vlaneseq
      %v2475 = vshrl.u32 %v2474, 7
      %v2476 = vsub.s32 %v2473, %v2475
      %v2477 = vrot.slane %v2463, %v2476
      %v2478 = vcombine.low %v2319, %v2321
      %v2479 = vcombine.high %v2319, %v2321
      %v2481 = vunpack.c.l.s4 1983009808
      %v2482 = vunpack.c.0.s8 %v2481
      %v2483 = vlaneseq
      %v2484 = vshrl.u32 %v2483, 7
      %v2485 = vsub.s32 %v2482, %v2484
      %v2486 = vrot.slane %v2478, %v2485
      %v2488 = vunpack.c.l.s4 1983009808
      %v2489 = vunpack.c.0.s8 %v2488
      %v2490 = vlaneseq
      %v2491 = vshrl.u32 %v2490, 7
      %v2492 = vsub.s32 %v2489, %v2491
      %v2493 = vrot.slane %v2479, %v2492
      %v2494 = vcombine.low %v2322, %v2324
      %v2495 = vcombine.high %v2322, %v2324
      %v2497 = vunpack.c.l.s4 1983009808
      %v2498 = vunpack.c.0.s8 %v2497
      %v2499 = vlaneseq
      %v2500 = vshrl.u32 %v2499, 7
      %v2501 = vsub.s32 %v2498, %v2500
      %v2502 = vrot.slane %v2494, %v2501
      %v2504 = vunpack.c.l.s4 1983009808
      %v2505 = vunpack.c.0.s8 %v2504
      %v2506 = vlaneseq
      %v2507 = vshrl.u32 %v2506, 7
      %v2508 = vsub.s32 %v2505, %v2507
      %v2509 = vrot.slane %v2495, %v2508
      %v2510 = vcombine.low %v2323, %v2325
      %v2511 = vcombine.high %v2323, %v2325
      %v2513 = vunpack.c.l.s4 1983009808
      %v2514 = vunpack.c.0.s8 %v2513
      %v2515 = vlaneseq
      %v2516 = vshrl.u32 %v2515, 7
      %v2517 = vsub.s32 %v2514, %v2516
      %v2518 = vrot.slane %v2510, %v2517
      %v2520 = vunpack.c.l.s4 1983009808
      %v2521 = vunpack.c.0.s8 %v2520
      %v2522 = vlaneseq
      %v2523 = vshrl.u32 %v2522, 7
      %v2524 = vsub.s32 %v2521, %v2523
      %v2525 = vrot.slane %v2511, %v2524
      %v2526 = vcombine.low %v2470, %v2486
      %v2527 = vcombine.high %v2470, %v2486
      %v2529 = vunpack.c.l.s4 1934713408
      %v2530 = vunpack.c.0.s8 %v2529
      %v2531 = vlaneseq
      %v2532 = vshrl.u32 %v2531, 7
      %v2533 = vsub.s32 %v2530, %v2532
      %v2534 = vrot.slane %v2526, %v2533
      %v2536 = vunpack.c.l.s4 1934713408
      %v2537 = vunpack.c.0.s8 %v2536
      %v2538 = vlaneseq
      %v2539 = vshrl.u32 %v2538, 7
      %v2540 = vsub.s32 %v2537, %v2539
      %v2541 = vrot.slane %v2527, %v2540
      %v2542 = vcombine.low %v2477, %v2493
      %v2543 = vcombine.high %v2477, %v2493
      %v2545 = vunpack.c.l.s4 1934713408
      %v2546 = vunpack.c.0.s8 %v2545
      %v2547 = vlaneseq
      %v2548 = vshrl.u32 %v2547, 7
      %v2549 = vsub.s32 %v2546, %v2548
      %v2550 = vrot.slane %v2542, %v2549
      %v2552 = vunpack.c.l.s4 1934713408
      %v2553 = vunpack.c.0.s8 %v2552
      %v2554 = vlaneseq
      %v2555 = vshrl.u32 %v2554, 7
      %v2556 = vsub.s32 %v2553, %v2555
      %v2557 = vrot.slane %v2543, %v2556
      %v2558 = vcombine.low %v2502, %v2518
      %v2559 = vcombine.high %v2502, %v2518
      %v2561 = vunpack.c.l.s4 1934713408
      %v2562 = vunpack.c.0.s8 %v2561
      %v2563 = vlaneseq
      %v2564 = vshrl.u32 %v2563, 7
      %v2565 = vsub.s32 %v2562, %v2564
      %v2566 = vrot.slane %v2558, %v2565
      %v2568 = vunpack.c.l.s4 1934713408
      %v2569 = vunpack.c.0.s8 %v2568
      %v2570 = vlaneseq
      %v2571 = vshrl.u32 %v2570, 7
      %v2572 = vsub.s32 %v2569, %v2571
      %v2573 = vrot.slane %v2559, %v2572
      %v2574 = vcombine.low %v2509, %v2525
      %v2575 = vcombine.high %v2509, %v2525
      %v2577 = vunpack.c.l.s4 1934713408
      %v2578 = vunpack.c.0.s8 %v2577
      %v2579 = vlaneseq
      %v2580 = vshrl.u32 %v2579, 7
      %v2581 = vsub.s32 %v2578, %v2580
      %v2582 = vrot.slane %v2574, %v2581
      %v2584 = vunpack.c.l.s4 1934713408
      %v2585 = vunpack.c.0.s8 %v2584
      %v2586 = vlaneseq
      %v2587 = vshrl.u32 %v2586, 7
      %v2588 = vsub.s32 %v2585, %v2587
      %v2589 = vrot.slane %v2575, %v2588
      %v2590 = vcombine.low %v2534, %v2566
      %v2591 = vcombine.high %v2534, %v2566
      %v2592 = vcombine.low %v2541, %v2573
      %v2593 = vcombine.high %v2541, %v2573
      %v2594 = vcombine.low %v2550, %v2582
      %v2595 = vcombine.high %v2550, %v2582
      %v2596 = vcombine.low %v2557, %v2589
      %v2597 = vcombine.high %v2557, %v2589
      %v2598 = vpack.c.bf16 %v2590, %v2454
      %v2599 = vpack.c.bf16 %v2591, %v2455
      %v2600 = vpack.c.bf16 %v2592, %v2456
      %v2601 = vpack.c.bf16 %v2593, %v2457
      %v2602 = vpack.c.bf16 %v2594, %v2458
      %v2603 = vpack.c.bf16 %v2595, %v2459
      %v2604 = vpack.c.bf16 %v2596, %v2460
      %v2605 = vpack.c.bf16 %v2597, %v2461
      %2608 = vrot.lane.b32.xlu0 %v1408, 124
      %v2609 = vpop.permute.xlu0 %2608
      %2610 = vrot.lane.b32.xlu0 %v1411, 124
      %v2611 = vpop.permute.xlu0 %2610
      %2614 = vrot.lane.b32.xlu0 %v1408, 120
      %v2615 = vpop.permute.xlu0 %2614
      %2616 = vrot.lane.b32.xlu0 %v1411, 120
      %v2617 = vpop.permute.xlu0 %2616
      %2620 = vrot.lane.b32.xlu0 %v1408, 116
      %v2621 = vpop.permute.xlu0 %2620
      %2622 = vrot.lane.b32.xlu0 %v1411, 116
      %v2623 = vpop.permute.xlu0 %2622
      %2626 = vrot.lane.b32.xlu0 %v1408, 112
      %v2627 = vpop.permute.xlu0 %2626
      %2628 = vrot.lane.b32.xlu0 %v1411, 112
      %v2629 = vpop.permute.xlu0 %2628
      %2632 = vrot.lane.b32.xlu0 %v1408, 108
      %v2633 = vpop.permute.xlu0 %2632
      %2634 = vrot.lane.b32.xlu0 %v1411, 108
      %v2635 = vpop.permute.xlu0 %2634
      %2638 = vrot.lane.b32.xlu0 %v1408, 104
      %v2639 = vpop.permute.xlu0 %2638
      %2640 = vrot.lane.b32.xlu0 %v1411, 104
      %v2641 = vpop.permute.xlu0 %2640
      %2644 = vrot.lane.b32.xlu0 %v1408, 100
      %v2645 = vpop.permute.xlu0 %2644
      %2646 = vrot.lane.b32.xlu0 %v1411, 100
      %v2647 = vpop.permute.xlu0 %2646
      %v2650 = vcombine.low %v1408, %v2615
      %v2651 = vcombine.high %v1408, %v2615
      %v2653 = vunpack.c.l.s4 1983009808
      %v2654 = vunpack.c.0.s8 %v2653
      %v2655 = vlaneseq
      %v2656 = vshrl.u32 %v2655, 7
      %v2657 = vsub.s32 %v2654, %v2656
      %v2658 = vrot.slane %v2650, %v2657
      %v2660 = vunpack.c.l.s4 1983009808
      %v2661 = vunpack.c.0.s8 %v2660
      %v2662 = vlaneseq
      %v2663 = vshrl.u32 %v2662, 7
      %v2664 = vsub.s32 %v2661, %v2663
      %v2665 = vrot.slane %v2651, %v2664
      %v2666 = vcombine.low %v2609, %v2621
      %v2667 = vcombine.high %v2609, %v2621
      %v2669 = vunpack.c.l.s4 1983009808
      %v2670 = vunpack.c.0.s8 %v2669
      %v2671 = vlaneseq
      %v2672 = vshrl.u32 %v2671, 7
      %v2673 = vsub.s32 %v2670, %v2672
      %v2674 = vrot.slane %v2666, %v2673
      %v2676 = vunpack.c.l.s4 1983009808
      %v2677 = vunpack.c.0.s8 %v2676
      %v2678 = vlaneseq
      %v2679 = vshrl.u32 %v2678, 7
      %v2680 = vsub.s32 %v2677, %v2679
      %v2681 = vrot.slane %v2667, %v2680
      %v2682 = vcombine.low %v2627, %v2639
      %v2683 = vcombine.high %v2627, %v2639
      %v2685 = vunpack.c.l.s4 1983009808
      %v2686 = vunpack.c.0.s8 %v2685
      %v2687 = vlaneseq
      %v2688 = vshrl.u32 %v2687, 7
      %v2689 = vsub.s32 %v2686, %v2688
      %v2690 = vrot.slane %v2682, %v2689
      %v2692 = vunpack.c.l.s4 1983009808
      %v2693 = vunpack.c.0.s8 %v2692
      %v2694 = vlaneseq
      %v2695 = vshrl.u32 %v2694, 7
      %v2696 = vsub.s32 %v2693, %v2695
      %v2697 = vrot.slane %v2683, %v2696
      %v2698 = vcombine.low %v2633, %v2645
      %v2699 = vcombine.high %v2633, %v2645
      %v2701 = vunpack.c.l.s4 1983009808
      %v2702 = vunpack.c.0.s8 %v2701
      %v2703 = vlaneseq
      %v2704 = vshrl.u32 %v2703, 7
      %v2705 = vsub.s32 %v2702, %v2704
      %v2706 = vrot.slane %v2698, %v2705
      %v2708 = vunpack.c.l.s4 1983009808
      %v2709 = vunpack.c.0.s8 %v2708
      %v2710 = vlaneseq
      %v2711 = vshrl.u32 %v2710, 7
      %v2712 = vsub.s32 %v2709, %v2711
      %v2713 = vrot.slane %v2699, %v2712
      %v2714 = vcombine.low %v2658, %v2674
      %v2715 = vcombine.high %v2658, %v2674
      %v2717 = vunpack.c.l.s4 1934713408
      %v2718 = vunpack.c.0.s8 %v2717
      %v2719 = vlaneseq
      %v2720 = vshrl.u32 %v2719, 7
      %v2721 = vsub.s32 %v2718, %v2720
      %v2722 = vrot.slane %v2714, %v2721
      %v2724 = vunpack.c.l.s4 1934713408
      %v2725 = vunpack.c.0.s8 %v2724
      %v2726 = vlaneseq
      %v2727 = vshrl.u32 %v2726, 7
      %v2728 = vsub.s32 %v2725, %v2727
      %v2729 = vrot.slane %v2715, %v2728
      %v2730 = vcombine.low %v2665, %v2681
      %v2731 = vcombine.high %v2665, %v2681
      %v2733 = vunpack.c.l.s4 1934713408
      %v2734 = vunpack.c.0.s8 %v2733
      %v2735 = vlaneseq
      %v2736 = vshrl.u32 %v2735, 7
      %v2737 = vsub.s32 %v2734, %v2736
      %v2738 = vrot.slane %v2730, %v2737
      %v2740 = vunpack.c.l.s4 1934713408
      %v2741 = vunpack.c.0.s8 %v2740
      %v2742 = vlaneseq
      %v2743 = vshrl.u32 %v2742, 7
      %v2744 = vsub.s32 %v2741, %v2743
      %v2745 = vrot.slane %v2731, %v2744
      %v2746 = vcombine.low %v2690, %v2706
      %v2747 = vcombine.high %v2690, %v2706
      %v2749 = vunpack.c.l.s4 1934713408
      %v2750 = vunpack.c.0.s8 %v2749
      %v2751 = vlaneseq
      %v2752 = vshrl.u32 %v2751, 7
      %v2753 = vsub.s32 %v2750, %v2752
      %v2754 = vrot.slane %v2746, %v2753
      %v2756 = vunpack.c.l.s4 1934713408
      %v2757 = vunpack.c.0.s8 %v2756
      %v2758 = vlaneseq
      %v2759 = vshrl.u32 %v2758, 7
      %v2760 = vsub.s32 %v2757, %v2759
      %v2761 = vrot.slane %v2747, %v2760
      %v2762 = vcombine.low %v2697, %v2713
      %v2763 = vcombine.high %v2697, %v2713
      %v2765 = vunpack.c.l.s4 1934713408
      %v2766 = vunpack.c.0.s8 %v2765
      %v2767 = vlaneseq
      %v2768 = vshrl.u32 %v2767, 7
      %v2769 = vsub.s32 %v2766, %v2768
      %v2770 = vrot.slane %v2762, %v2769
      %v2772 = vunpack.c.l.s4 1934713408
      %v2773 = vunpack.c.0.s8 %v2772
      %v2774 = vlaneseq
      %v2775 = vshrl.u32 %v2774, 7
      %v2776 = vsub.s32 %v2773, %v2775
      %v2777 = vrot.slane %v2763, %v2776
      %v2778 = vcombine.low %v2722, %v2754
      %v2779 = vcombine.high %v2722, %v2754
      %v2780 = vcombine.low %v2729, %v2761
      %v2781 = vcombine.high %v2729, %v2761
      %v2782 = vcombine.low %v2738, %v2770
      %v2783 = vcombine.high %v2738, %v2770
      %v2784 = vcombine.low %v2745, %v2777
      %v2785 = vcombine.high %v2745, %v2777
      %v2786 = vcombine.low %v1411, %v2617
      %v2787 = vcombine.high %v1411, %v2617
      %v2789 = vunpack.c.l.s4 1983009808
      %v2790 = vunpack.c.0.s8 %v2789
      %v2791 = vlaneseq
      %v2792 = vshrl.u32 %v2791, 7
      %v2793 = vsub.s32 %v2790, %v2792
      %v2794 = vrot.slane %v2786, %v2793
      %v2796 = vunpack.c.l.s4 1983009808
      %v2797 = vunpack.c.0.s8 %v2796
      %v2798 = vlaneseq
      %v2799 = vshrl.u32 %v2798, 7
      %v2800 = vsub.s32 %v2797, %v2799
      %v2801 = vrot.slane %v2787, %v2800
      %v2802 = vcombine.low %v2611, %v2623
      %v2803 = vcombine.high %v2611, %v2623
      %v2805 = vunpack.c.l.s4 1983009808
      %v2806 = vunpack.c.0.s8 %v2805
      %v2807 = vlaneseq
      %v2808 = vshrl.u32 %v2807, 7
      %v2809 = vsub.s32 %v2806, %v2808
      %v2810 = vrot.slane %v2802, %v2809
      %v2812 = vunpack.c.l.s4 1983009808
      %v2813 = vunpack.c.0.s8 %v2812
      %v2814 = vlaneseq
      %v2815 = vshrl.u32 %v2814, 7
      %v2816 = vsub.s32 %v2813, %v2815
      %v2817 = vrot.slane %v2803, %v2816
      %v2818 = vcombine.low %v2629, %v2641
      %v2819 = vcombine.high %v2629, %v2641
      %v2821 = vunpack.c.l.s4 1983009808
      %v2822 = vunpack.c.0.s8 %v2821
      %v2823 = vlaneseq
      %v2824 = vshrl.u32 %v2823, 7
      %v2825 = vsub.s32 %v2822, %v2824
      %v2826 = vrot.slane %v2818, %v2825
      %v2828 = vunpack.c.l.s4 1983009808
      %v2829 = vunpack.c.0.s8 %v2828
      %v2830 = vlaneseq
      %v2831 = vshrl.u32 %v2830, 7
      %v2832 = vsub.s32 %v2829, %v2831
      %v2833 = vrot.slane %v2819, %v2832
      %v2834 = vcombine.low %v2635, %v2647
      %v2835 = vcombine.high %v2635, %v2647
      %v2837 = vunpack.c.l.s4 1983009808
      %v2838 = vunpack.c.0.s8 %v2837
      %v2839 = vlaneseq
      %v2840 = vshrl.u32 %v2839, 7
      %v2841 = vsub.s32 %v2838, %v2840
      %v2842 = vrot.slane %v2834, %v2841
      %v2844 = vunpack.c.l.s4 1983009808
      %v2845 = vunpack.c.0.s8 %v2844
      %v2846 = vlaneseq
      %v2847 = vshrl.u32 %v2846, 7
      %v2848 = vsub.s32 %v2845, %v2847
      %v2849 = vrot.slane %v2835, %v2848
      %v2850 = vcombine.low %v2794, %v2810
      %v2851 = vcombine.high %v2794, %v2810
      %v2853 = vunpack.c.l.s4 1934713408
      %v2854 = vunpack.c.0.s8 %v2853
      %v2855 = vlaneseq
      %v2856 = vshrl.u32 %v2855, 7
      %v2857 = vsub.s32 %v2854, %v2856
      %v2858 = vrot.slane %v2850, %v2857
      %v2860 = vunpack.c.l.s4 1934713408
      %v2861 = vunpack.c.0.s8 %v2860
      %v2862 = vlaneseq
      %v2863 = vshrl.u32 %v2862, 7
      %v2864 = vsub.s32 %v2861, %v2863
      %v2865 = vrot.slane %v2851, %v2864
      %v2866 = vcombine.low %v2801, %v2817
      %v2867 = vcombine.high %v2801, %v2817
      %v2869 = vunpack.c.l.s4 1934713408
      %v2870 = vunpack.c.0.s8 %v2869
      %v2871 = vlaneseq
      %v2872 = vshrl.u32 %v2871, 7
      %v2873 = vsub.s32 %v2870, %v2872
      %v2874 = vrot.slane %v2866, %v2873
      %v2876 = vunpack.c.l.s4 1934713408
      %v2877 = vunpack.c.0.s8 %v2876
      %v2878 = vlaneseq
      %v2879 = vshrl.u32 %v2878, 7
      %v2880 = vsub.s32 %v2877, %v2879
      %v2881 = vrot.slane %v2867, %v2880
      %v2882 = vcombine.low %v2826, %v2842
      %v2883 = vcombine.high %v2826, %v2842
      %v2885 = vunpack.c.l.s4 1934713408
      %v2886 = vunpack.c.0.s8 %v2885
      %v2887 = vlaneseq
      %v2888 = vshrl.u32 %v2887, 7
      %v2889 = vsub.s32 %v2886, %v2888
      %v2890 = vrot.slane %v2882, %v2889
      %v2892 = vunpack.c.l.s4 1934713408
      %v2893 = vunpack.c.0.s8 %v2892
      %v2894 = vlaneseq
      %v2895 = vshrl.u32 %v2894, 7
      %v2896 = vsub.s32 %v2893, %v2895
      %v2897 = vrot.slane %v2883, %v2896
      %v2898 = vcombine.low %v2833, %v2849
      %v2899 = vcombine.high %v2833, %v2849
      %v2901 = vunpack.c.l.s4 1934713408
      %v2902 = vunpack.c.0.s8 %v2901
      %v2903 = vlaneseq
      %v2904 = vshrl.u32 %v2903, 7
      %v2905 = vsub.s32 %v2902, %v2904
      %v2906 = vrot.slane %v2898, %v2905
      %v2908 = vunpack.c.l.s4 1934713408
      %v2909 = vunpack.c.0.s8 %v2908
      %v2910 = vlaneseq
      %v2911 = vshrl.u32 %v2910, 7
      %v2912 = vsub.s32 %v2909, %v2911
      %v2913 = vrot.slane %v2899, %v2912
      %v2914 = vcombine.low %v2858, %v2890
      %v2915 = vcombine.high %v2858, %v2890
      %v2916 = vcombine.low %v2865, %v2897
      %v2917 = vcombine.high %v2865, %v2897
      %v2918 = vcombine.low %v2874, %v2906
      %v2919 = vcombine.high %v2874, %v2906
      %v2920 = vcombine.low %v2881, %v2913
      %v2921 = vcombine.high %v2881, %v2913
      %v2922 = vcombine.low %v2778, %v2780
      %v2923 = vcombine.high %v2778, %v2780
      %v2925 = vunpack.c.l.s4 1983009808
      %v2926 = vunpack.c.0.s8 %v2925
      %v2927 = vlaneseq
      %v2928 = vshrl.u32 %v2927, 7
      %v2929 = vsub.s32 %v2926, %v2928
      %v2930 = vrot.slane %v2922, %v2929
      %v2932 = vunpack.c.l.s4 1983009808
      %v2933 = vunpack.c.0.s8 %v2932
      %v2934 = vlaneseq
      %v2935 = vshrl.u32 %v2934, 7
      %v2936 = vsub.s32 %v2933, %v2935
      %v2937 = vrot.slane %v2923, %v2936
      %v2938 = vcombine.low %v2779, %v2781
      %v2939 = vcombine.high %v2779, %v2781
      %v2941 = vunpack.c.l.s4 1983009808
      %v2942 = vunpack.c.0.s8 %v2941
      %v2943 = vlaneseq
      %v2944 = vshrl.u32 %v2943, 7
      %v2945 = vsub.s32 %v2942, %v2944
      %v2946 = vrot.slane %v2938, %v2945
      %v2948 = vunpack.c.l.s4 1983009808
      %v2949 = vunpack.c.0.s8 %v2948
      %v2950 = vlaneseq
      %v2951 = vshrl.u32 %v2950, 7
      %v2952 = vsub.s32 %v2949, %v2951
      %v2953 = vrot.slane %v2939, %v2952
      %v2954 = vcombine.low %v2782, %v2784
      %v2955 = vcombine.high %v2782, %v2784
      %v2957 = vunpack.c.l.s4 1983009808
      %v2958 = vunpack.c.0.s8 %v2957
      %v2959 = vlaneseq
      %v2960 = vshrl.u32 %v2959, 7
      %v2961 = vsub.s32 %v2958, %v2960
      %v2962 = vrot.slane %v2954, %v2961
      %v2964 = vunpack.c.l.s4 1983009808
      %v2965 = vunpack.c.0.s8 %v2964
      %v2966 = vlaneseq
      %v2967 = vshrl.u32 %v2966, 7
      %v2968 = vsub.s32 %v2965, %v2967
      %v2969 = vrot.slane %v2955, %v2968
      %v2970 = vcombine.low %v2783, %v2785
      %v2971 = vcombine.high %v2783, %v2785
      %v2973 = vunpack.c.l.s4 1983009808
      %v2974 = vunpack.c.0.s8 %v2973
      %v2975 = vlaneseq
      %v2976 = vshrl.u32 %v2975, 7
      %v2977 = vsub.s32 %v2974, %v2976
      %v2978 = vrot.slane %v2970, %v2977
      %v2980 = vunpack.c.l.s4 1983009808
      %v2981 = vunpack.c.0.s8 %v2980
      %v2982 = vlaneseq
      %v2983 = vshrl.u32 %v2982, 7
      %v2984 = vsub.s32 %v2981, %v2983
      %v2985 = vrot.slane %v2971, %v2984
      %v2986 = vcombine.low %v2930, %v2946
      %v2987 = vcombine.high %v2930, %v2946
      %v2989 = vunpack.c.l.s4 1934713408
      %v2990 = vunpack.c.0.s8 %v2989
      %v2991 = vlaneseq
      %v2992 = vshrl.u32 %v2991, 7
      %v2993 = vsub.s32 %v2990, %v2992
      %v2994 = vrot.slane %v2986, %v2993
      %v2996 = vunpack.c.l.s4 1934713408
      %v2997 = vunpack.c.0.s8 %v2996
      %v2998 = vlaneseq
      %v2999 = vshrl.u32 %v2998, 7
      %v3000 = vsub.s32 %v2997, %v2999
      %v3001 = vrot.slane %v2987, %v3000
      %v3002 = vcombine.low %v2937, %v2953
      %v3003 = vcombine.high %v2937, %v2953
      %v3005 = vunpack.c.l.s4 1934713408
      %v3006 = vunpack.c.0.s8 %v3005
      %v3007 = vlaneseq
      %v3008 = vshrl.u32 %v3007, 7
      %v3009 = vsub.s32 %v3006, %v3008
      %v3010 = vrot.slane %v3002, %v3009
      %v3012 = vunpack.c.l.s4 1934713408
      %v3013 = vunpack.c.0.s8 %v3012
      %v3014 = vlaneseq
      %v3015 = vshrl.u32 %v3014, 7
      %v3016 = vsub.s32 %v3013, %v3015
      %v3017 = vrot.slane %v3003, %v3016
      %v3018 = vcombine.low %v2962, %v2978
      %v3019 = vcombine.high %v2962, %v2978
      %v3021 = vunpack.c.l.s4 1934713408
      %v3022 = vunpack.c.0.s8 %v3021
      %v3023 = vlaneseq
      %v3024 = vshrl.u32 %v3023, 7
      %v3025 = vsub.s32 %v3022, %v3024
      %v3026 = vrot.slane %v3018, %v3025
      %v3028 = vunpack.c.l.s4 1934713408
      %v3029 = vunpack.c.0.s8 %v3028
      %v3030 = vlaneseq
      %v3031 = vshrl.u32 %v3030, 7
      %v3032 = vsub.s32 %v3029, %v3031
      %v3033 = vrot.slane %v3019, %v3032
      %v3034 = vcombine.low %v2969, %v2985
      %v3035 = vcombine.high %v2969, %v2985
      %v3037 = vunpack.c.l.s4 1934713408
      %v3038 = vunpack.c.0.s8 %v3037
      %v3039 = vlaneseq
      %v3040 = vshrl.u32 %v3039, 7
      %v3041 = vsub.s32 %v3038, %v3040
      %v3042 = vrot.slane %v3034, %v3041
      %v3044 = vunpack.c.l.s4 1934713408
      %v3045 = vunpack.c.0.s8 %v3044
      %v3046 = vlaneseq
      %v3047 = vshrl.u32 %v3046, 7
      %v3048 = vsub.s32 %v3045, %v3047
      %v3049 = vrot.slane %v3035, %v3048
      %v3050 = vcombine.low %v2994, %v3026
      %v3051 = vcombine.high %v2994, %v3026
      %v3052 = vcombine.low %v3001, %v3033
      %v3053 = vcombine.high %v3001, %v3033
      %v3054 = vcombine.low %v3010, %v3042
      %v3055 = vcombine.high %v3010, %v3042
      %v3056 = vcombine.low %v3017, %v3049
      %v3057 = vcombine.high %v3017, %v3049
      %v3058 = vcombine.low %v2914, %v2916
      %v3059 = vcombine.high %v2914, %v2916
      %v3061 = vunpack.c.l.s4 1983009808
      %v3062 = vunpack.c.0.s8 %v3061
      %v3063 = vlaneseq
      %v3064 = vshrl.u32 %v3063, 7
      %v3065 = vsub.s32 %v3062, %v3064
      %v3066 = vrot.slane %v3058, %v3065
      %v3068 = vunpack.c.l.s4 1983009808
      %v3069 = vunpack.c.0.s8 %v3068
      %v3070 = vlaneseq
      %v3071 = vshrl.u32 %v3070, 7
      %v3072 = vsub.s32 %v3069, %v3071
      %v3073 = vrot.slane %v3059, %v3072
      %v3074 = vcombine.low %v2915, %v2917
      %v3075 = vcombine.high %v2915, %v2917
      %v3077 = vunpack.c.l.s4 1983009808
      %v3078 = vunpack.c.0.s8 %v3077
      %v3079 = vlaneseq
      %v3080 = vshrl.u32 %v3079, 7
      %v3081 = vsub.s32 %v3078, %v3080
      %v3082 = vrot.slane %v3074, %v3081
      %v3084 = vunpack.c.l.s4 1983009808
      %v3085 = vunpack.c.0.s8 %v3084
      %v3086 = vlaneseq
      %v3087 = vshrl.u32 %v3086, 7
      %v3088 = vsub.s32 %v3085, %v3087
      %v3089 = vrot.slane %v3075, %v3088
      %v3090 = vcombine.low %v2918, %v2920
      %v3091 = vcombine.high %v2918, %v2920
      %v3093 = vunpack.c.l.s4 1983009808
      %v3094 = vunpack.c.0.s8 %v3093
      %v3095 = vlaneseq
      %v3096 = vshrl.u32 %v3095, 7
      %v3097 = vsub.s32 %v3094, %v3096
      %v3098 = vrot.slane %v3090, %v3097
      %v3100 = vunpack.c.l.s4 1983009808
      %v3101 = vunpack.c.0.s8 %v3100
      %v3102 = vlaneseq
      %v3103 = vshrl.u32 %v3102, 7
      %v3104 = vsub.s32 %v3101, %v3103
      %v3105 = vrot.slane %v3091, %v3104
      %v3106 = vcombine.low %v2919, %v2921
      %v3107 = vcombine.high %v2919, %v2921
      %v3109 = vunpack.c.l.s4 1983009808
      %v3110 = vunpack.c.0.s8 %v3109
      %v3111 = vlaneseq
      %v3112 = vshrl.u32 %v3111, 7
      %v3113 = vsub.s32 %v3110, %v3112
      %v3114 = vrot.slane %v3106, %v3113
      %v3116 = vunpack.c.l.s4 1983009808
      %v3117 = vunpack.c.0.s8 %v3116
      %v3118 = vlaneseq
      %v3119 = vshrl.u32 %v3118, 7
      %v3120 = vsub.s32 %v3117, %v3119
      %v3121 = vrot.slane %v3107, %v3120
      %v3122 = vcombine.low %v3066, %v3082
      %v3123 = vcombine.high %v3066, %v3082
      %v3125 = vunpack.c.l.s4 1934713408
      %v3126 = vunpack.c.0.s8 %v3125
      %v3127 = vlaneseq
      %v3128 = vshrl.u32 %v3127, 7
      %v3129 = vsub.s32 %v3126, %v3128
      %v3130 = vrot.slane %v3122, %v3129
      %v3132 = vunpack.c.l.s4 1934713408
      %v3133 = vunpack.c.0.s8 %v3132
      %v3134 = vlaneseq
      %v3135 = vshrl.u32 %v3134, 7
      %v3136 = vsub.s32 %v3133, %v3135
      %v3137 = vrot.slane %v3123, %v3136
      %v3138 = vcombine.low %v3073, %v3089
      %v3139 = vcombine.high %v3073, %v3089
      %v3141 = vunpack.c.l.s4 1934713408
      %v3142 = vunpack.c.0.s8 %v3141
      %v3143 = vlaneseq
      %v3144 = vshrl.u32 %v3143, 7
      %v3145 = vsub.s32 %v3142, %v3144
      %v3146 = vrot.slane %v3138, %v3145
      %v3148 = vunpack.c.l.s4 1934713408
      %v3149 = vunpack.c.0.s8 %v3148
      %v3150 = vlaneseq
      %v3151 = vshrl.u32 %v3150, 7
      %v3152 = vsub.s32 %v3149, %v3151
      %v3153 = vrot.slane %v3139, %v3152
      %v3154 = vcombine.low %v3098, %v3114
      %v3155 = vcombine.high %v3098, %v3114
      %v3157 = vunpack.c.l.s4 1934713408
      %v3158 = vunpack.c.0.s8 %v3157
      %v3159 = vlaneseq
      %v3160 = vshrl.u32 %v3159, 7
      %v3161 = vsub.s32 %v3158, %v3160
      %v3162 = vrot.slane %v3154, %v3161
      %v3164 = vunpack.c.l.s4 1934713408
      %v3165 = vunpack.c.0.s8 %v3164
      %v3166 = vlaneseq
      %v3167 = vshrl.u32 %v3166, 7
      %v3168 = vsub.s32 %v3165, %v3167
      %v3169 = vrot.slane %v3155, %v3168
      %v3170 = vcombine.low %v3105, %v3121
      %v3171 = vcombine.high %v3105, %v3121
      %v3173 = vunpack.c.l.s4 1934713408
      %v3174 = vunpack.c.0.s8 %v3173
      %v3175 = vlaneseq
      %v3176 = vshrl.u32 %v3175, 7
      %v3177 = vsub.s32 %v3174, %v3176
      %v3178 = vrot.slane %v3170, %v3177
      %v3180 = vunpack.c.l.s4 1934713408
      %v3181 = vunpack.c.0.s8 %v3180
      %v3182 = vlaneseq
      %v3183 = vshrl.u32 %v3182, 7
      %v3184 = vsub.s32 %v3181, %v3183
      %v3185 = vrot.slane %v3171, %v3184
      %v3186 = vcombine.low %v3130, %v3162
      %v3187 = vcombine.high %v3130, %v3162
      %v3188 = vcombine.low %v3137, %v3169
      %v3189 = vcombine.high %v3137, %v3169
      %v3190 = vcombine.low %v3146, %v3178
      %v3191 = vcombine.high %v3146, %v3178
      %v3192 = vcombine.low %v3153, %v3185
      %v3193 = vcombine.high %v3153, %v3185
      %v3194 = vpack.c.bf16 %v3186, %v3050
      %v3195 = vpack.c.bf16 %v3187, %v3051
      %v3196 = vpack.c.bf16 %v3188, %v3052
      %v3197 = vpack.c.bf16 %v3189, %v3053
      %v3198 = vpack.c.bf16 %v3190, %v3054
      %v3199 = vpack.c.bf16 %v3191, %v3055
      %v3200 = vpack.c.bf16 %v3192, %v3056
      %v3201 = vpack.c.bf16 %v3193, %v3057
      %v3203 = vsel %vm794, %v2002, 0
      %v3206 = vsel %vm794, %v2598, 0
      %3208 = vmatprep.subr.bf16.mxu0 0
      %3209 = vmatpush1.bf16.xpose.msra.mxu0 %v3206
      %3210 = vmatprep.subr.bf16.mxu0 0
      %3211 = vmatpush1.bf16.xpose.msra.mxu0 0
      %3212 = vmatprep.subr.bf16.mxu0 0
      %3213 = vmatpush1.bf16.xpose.msra.mxu0 0
      %3214 = vmatprep.subr.bf16.mxu0 0
      %3215 = vmatpush1.bf16.xpose.msra.mxu0 0
      %3216 = vmatprep.subr.bf16.mxu0 0
      %3217 = vmatpush1.bf16.xpose.msra.mxu0 0
      %3218 = vmatprep.subr.bf16.mxu0 0
      %3219 = vmatpush1.bf16.xpose.msra.mxu0 0
      %3220 = vmatprep.subr.bf16.mxu0 0
      %3221 = vmatpush1.bf16.xpose.msra.mxu0 0
      %3222 = vmatprep.subr.bf16.mxu0 0
      %3223 = vmatpush1.bf16.xpose.msra.mxu0 0
      %3224 = vmatprep.subr.bf16.mxu0 0
      %3225 = vmatpush1.bf16.xpose.msra.mxu0 0
      %3226 = vmatprep.subr.bf16.mxu0 0
      %3227 = vmatpush1.bf16.xpose.msra.mxu0 0
      %3228 = vmatprep.subr.bf16.mxu0 0
      %3229 = vmatpush1.bf16.xpose.msra.mxu0 0
      %3230 = vmatprep.subr.bf16.mxu0 0
      %3231 = vmatpush1.bf16.xpose.msra.mxu0 0
      %3232 = vmatprep.subr.bf16.mxu0 0
      %3233 = vmatpush1.bf16.xpose.msra.mxu0 0
      %3234 = vmatprep.subr.bf16.mxu0 0
      %3235 = vmatpush1.bf16.xpose.msra.mxu0 0
      %3236 = vmatprep.subr.bf16.mxu0 0
      %3237 = vmatpush1.bf16.xpose.msra.mxu0 0
      %3238 = vmatprep.subr.bf16.mxu0 0
      %3239 = vmatpush1.bf16.xpose.msra.mxu0 0
      %3240 = vmatprep.mubr.bf16.mxu0 0
      %3241 = vmatmul.mubr.bf16.gmra.mrb[0].mxu0 %v3203
      %v3242 = vpop.f32.mrb[0].mxu0
      %v3243 = vadd.f32 0.0, %v3242
      %v3244 = vpop.f32.mrb[0].mxu0
      %v3245 = vpop.f32.mrb[0].mxu0
      %v3246 = vadd.f32 0.0, %v3245
      %v3247 = vpop.f32.mrb[0].mxu0
      %3248 = vdwg.mxu0
      %v3250 = vsel %vm794, %v2003, 0
      %v3253 = vsel %vm794, %v2599, 0
      %3255 = vmatprep.subr.bf16.mxu0 0
      %3256 = vmatpush1.bf16.xpose.msra.mxu0 %v3253
      %3257 = vmatprep.subr.bf16.mxu0 0
      %3258 = vmatpush1.bf16.xpose.msra.mxu0 0
      %3259 = vmatprep.subr.bf16.mxu0 0
      %3260 = vmatpush1.bf16.xpose.msra.mxu0 0
      %3261 = vmatprep.subr.bf16.mxu0 0
      %3262 = vmatpush1.bf16.xpose.msra.mxu0 0
      %3263 = vmatprep.subr.bf16.mxu0 0
      %3264 = vmatpush1.bf16.xpose.msra.mxu0 0
      %3265 = vmatprep.subr.bf16.mxu0 0
      %3266 = vmatpush1.bf16.xpose.msra.mxu0 0
      %3267 = vmatprep.subr.bf16.mxu0 0
      %3268 = vmatpush1.bf16.xpose.msra.mxu0 0
      %3269 = vmatprep.subr.bf16.mxu0 0
      %3270 = vmatpush1.bf16.xpose.msra.mxu0 0
      %3271 = vmatprep.subr.bf16.mxu0 0
      %3272 = vmatpush1.bf16.xpose.msra.mxu0 0
      %3273 = vmatprep.subr.bf16.mxu0 0
      %3274 = vmatpush1.bf16.xpose.msra.mxu0 0
      %3275 = vmatprep.subr.bf16.mxu0 0
      %3276 = vmatpush1.bf16.xpose.msra.mxu0 0
      %3277 = vmatprep.subr.bf16.mxu0 0
      %3278 = vmatpush1.bf16.xpose.msra.mxu0 0
      %3279 = vmatprep.subr.bf16.mxu0 0
      %3280 = vmatpush1.bf16.xpose.msra.mxu0 0
      %3281 = vmatprep.subr.bf16.mxu0 0
      %3282 = vmatpush1.bf16.xpose.msra.mxu0 0
      %3283 = vmatprep.subr.bf16.mxu0 0
      %3284 = vmatpush1.bf16.xpose.msra.mxu0 0
      %3285 = vmatprep.subr.bf16.mxu0 0
      %3286 = vmatpush1.bf16.xpose.msra.mxu0 0
      %3287 = vmatprep.mubr.bf16.mxu0 0
      %3288 = vmatmul.mubr.bf16.gmra.mrb[0].mxu0 %v3250
      %v3289 = vpop.f32.mrb[0].mxu0
      %v3290 = vadd.f32 0.0, %v3289
      %v3291 = vpop.f32.mrb[0].mxu0
      %v3292 = vpop.f32.mrb[0].mxu0
      %v3293 = vadd.f32 0.0, %v3292
      %v3294 = vpop.f32.mrb[0].mxu0
      %3295 = vdwg.mxu0
      %v3297 = vsel %vm794, %v2004, 0
      %v3300 = vsel %vm794, %v2600, 0
      %3302 = vmatprep.subr.bf16.mxu0 0
      %3303 = vmatpush1.bf16.xpose.msra.mxu0 %v3300
      %3304 = vmatprep.subr.bf16.mxu0 0
      %3305 = vmatpush1.bf16.xpose.msra.mxu0 0
      %3306 = vmatprep.subr.bf16.mxu0 0
      %3307 = vmatpush1.bf16.xpose.msra.mxu0 0
      %3308 = vmatprep.subr.bf16.mxu0 0
      %3309 = vmatpush1.bf16.xpose.msra.mxu0 0
      %3310 = vmatprep.subr.bf16.mxu0 0
      %3311 = vmatpush1.bf16.xpose.msra.mxu0 0
      %3312 = vmatprep.subr.bf16.mxu0 0
      %3313 = vmatpush1.bf16.xpose.msra.mxu0 0
      %3314 = vmatprep.subr.bf16.mxu0 0
      %3315 = vmatpush1.bf16.xpose.msra.mxu0 0
      %3316 = vmatprep.subr.bf16.mxu0 0
      %3317 = vmatpush1.bf16.xpose.msra.mxu0 0
      %3318 = vmatprep.subr.bf16.mxu0 0
      %3319 = vmatpush1.bf16.xpose.msra.mxu0 0
      %3320 = vmatprep.subr.bf16.mxu0 0
      %3321 = vmatpush1.bf16.xpose.msra.mxu0 0
      %3322 = vmatprep.subr.bf16.mxu0 0
      %3323 = vmatpush1.bf16.xpose.msra.mxu0 0
      %3324 = vmatprep.subr.bf16.mxu0 0
      %3325 = vmatpush1.bf16.xpose.msra.mxu0 0
      %3326 = vmatprep.subr.bf16.mxu0 0
      %3327 = vmatpush1.bf16.xpose.msra.mxu0 0
      %3328 = vmatprep.subr.bf16.mxu0 0
      %3329 = vmatpush1.bf16.xpose.msra.mxu0 0
      %3330 = vmatprep.subr.bf16.mxu0 0
      %3331 = vmatpush1.bf16.xpose.msra.mxu0 0
      %3332 = vmatprep.subr.bf16.mxu0 0
      %3333 = vmatpush1.bf16.xpose.msra.mxu0 0
      %3334 = vmatprep.mubr.bf16.mxu0 0
      %3335 = vmatmul.mubr.bf16.gmra.mrb[0].mxu0 %v3297
      %v3336 = vpop.f32.mrb[0].mxu0
      %v3337 = vadd.f32 0.0, %v3336
      %v3338 = vpop.f32.mrb[0].mxu0
      %v3339 = vpop.f32.mrb[0].mxu0
      %v3340 = vadd.f32 0.0, %v3339
      %v3341 = vpop.f32.mrb[0].mxu0
      %3342 = vdwg.mxu0
      %v3344 = vsel %vm794, %v2005, 0
      %v3347 = vsel %vm794, %v2601, 0
      %3349 = vmatprep.subr.bf16.mxu0 0
      %3350 = vmatpush1.bf16.xpose.msra.mxu0 %v3347
      %3351 = vmatprep.subr.bf16.mxu0 0
      %3352 = vmatpush1.bf16.xpose.msra.mxu0 0
      %3353 = vmatprep.subr.bf16.mxu0 0
      %3354 = vmatpush1.bf16.xpose.msra.mxu0 0
      %3355 = vmatprep.subr.bf16.mxu0 0
      %3356 = vmatpush1.bf16.xpose.msra.mxu0 0
      %3357 = vmatprep.subr.bf16.mxu0 0
      %3358 = vmatpush1.bf16.xpose.msra.mxu0 0
      %3359 = vmatprep.subr.bf16.mxu0 0
      %3360 = vmatpush1.bf16.xpose.msra.mxu0 0
      %3361 = vmatprep.subr.bf16.mxu0 0
      %3362 = vmatpush1.bf16.xpose.msra.mxu0 0
      %3363 = vmatprep.subr.bf16.mxu0 0
      %3364 = vmatpush1.bf16.xpose.msra.mxu0 0
      %3365 = vmatprep.subr.bf16.mxu0 0
      %3366 = vmatpush1.bf16.xpose.msra.mxu0 0
      %3367 = vmatprep.subr.bf16.mxu0 0
      %3368 = vmatpush1.bf16.xpose.msra.mxu0 0
      %3369 = vmatprep.subr.bf16.mxu0 0
      %3370 = vmatpush1.bf16.xpose.msra.mxu0 0
      %3371 = vmatprep.subr.bf16.mxu0 0
      %3372 = vmatpush1.bf16.xpose.msra.mxu0 0
      %3373 = vmatprep.subr.bf16.mxu0 0
      %3374 = vmatpush1.bf16.xpose.msra.mxu0 0
      %3375 = vmatprep.subr.bf16.mxu0 0
      %3376 = vmatpush1.bf16.xpose.msra.mxu0 0
      %3377 = vmatprep.subr.bf16.mxu0 0
      %3378 = vmatpush1.bf16.xpose.msra.mxu0 0
      %3379 = vmatprep.subr.bf16.mxu0 0
      %3380 = vmatpush1.bf16.xpose.msra.mxu0 0
      %3381 = vmatprep.mubr.bf16.mxu0 0
      %3382 = vmatmul.mubr.bf16.gmra.mrb[0].mxu0 %v3344
      %v3383 = vpop.f32.mrb[0].mxu0
      %v3384 = vadd.f32 0.0, %v3383
      %v3385 = vpop.f32.mrb[0].mxu0
      %v3386 = vpop.f32.mrb[0].mxu0
      %v3387 = vadd.f32 0.0, %v3386
      %v3388 = vpop.f32.mrb[0].mxu0
      %3389 = vdwg.mxu0
      %v3391 = vsel %vm794, %v2006, 0
      %v3394 = vsel %vm794, %v2602, 0
      %3396 = vmatprep.subr.bf16.mxu0 0
      %3397 = vmatpush1.bf16.xpose.msra.mxu0 %v3394
      %3398 = vmatprep.subr.bf16.mxu0 0
      %3399 = vmatpush1.bf16.xpose.msra.mxu0 0
      %3400 = vmatprep.subr.bf16.mxu0 0
      %3401 = vmatpush1.bf16.xpose.msra.mxu0 0
      %3402 = vmatprep.subr.bf16.mxu0 0
      %3403 = vmatpush1.bf16.xpose.msra.mxu0 0
      %3404 = vmatprep.subr.bf16.mxu0 0
      %3405 = vmatpush1.bf16.xpose.msra.mxu0 0
      %3406 = vmatprep.subr.bf16.mxu0 0
      %3407 = vmatpush1.bf16.xpose.msra.mxu0 0
      %3408 = vmatprep.subr.bf16.mxu0 0
      %3409 = vmatpush1.bf16.xpose.msra.mxu0 0
      %3410 = vmatprep.subr.bf16.mxu0 0
      %3411 = vmatpush1.bf16.xpose.msra.mxu0 0
      %3412 = vmatprep.subr.bf16.mxu0 0
      %3413 = vmatpush1.bf16.xpose.msra.mxu0 0
      %3414 = vmatprep.subr.bf16.mxu0 0
      %3415 = vmatpush1.bf16.xpose.msra.mxu0 0
      %3416 = vmatprep.subr.bf16.mxu0 0
      %3417 = vmatpush1.bf16.xpose.msra.mxu0 0
      %3418 = vmatprep.subr.bf16.mxu0 0
      %3419 = vmatpush1.bf16.xpose.msra.mxu0 0
      %3420 = vmatprep.subr.bf16.mxu0 0
      %3421 = vmatpush1.bf16.xpose.msra.mxu0 0
      %3422 = vmatprep.subr.bf16.mxu0 0
      %3423 = vmatpush1.bf16.xpose.msra.mxu0 0
      %3424 = vmatprep.subr.bf16.mxu0 0
      %3425 = vmatpush1.bf16.xpose.msra.mxu0 0
      %3426 = vmatprep.subr.bf16.mxu0 0
      %3427 = vmatpush1.bf16.xpose.msra.mxu0 0
      %3428 = vmatprep.mubr.bf16.mxu0 0
      %3429 = vmatmul.mubr.bf16.gmra.mrb[0].mxu0 %v3391
      %v3430 = vpop.f32.mrb[0].mxu0
      %v3431 = vadd.f32 0.0, %v3430
      %v3432 = vpop.f32.mrb[0].mxu0
      %v3433 = vpop.f32.mrb[0].mxu0
      %v3434 = vadd.f32 0.0, %v3433
      %v3435 = vpop.f32.mrb[0].mxu0
      %3436 = vdwg.mxu0
      %v3438 = vsel %vm794, %v2007, 0
      %v3441 = vsel %vm794, %v2603, 0
      %3443 = vmatprep.subr.bf16.mxu0 0
      %3444 = vmatpush1.bf16.xpose.msra.mxu0 %v3441
      %3445 = vmatprep.subr.bf16.mxu0 0
      %3446 = vmatpush1.bf16.xpose.msra.mxu0 0
      %3447 = vmatprep.subr.bf16.mxu0 0
      %3448 = vmatpush1.bf16.xpose.msra.mxu0 0
      %3449 = vmatprep.subr.bf16.mxu0 0
      %3450 = vmatpush1.bf16.xpose.msra.mxu0 0
      %3451 = vmatprep.subr.bf16.mxu0 0
      %3452 = vmatpush1.bf16.xpose.msra.mxu0 0
      %3453 = vmatprep.subr.bf16.mxu0 0
      %3454 = vmatpush1.bf16.xpose.msra.mxu0 0
      %3455 = vmatprep.subr.bf16.mxu0 0
      %3456 = vmatpush1.bf16.xpose.msra.mxu0 0
      %3457 = vmatprep.subr.bf16.mxu0 0
      %3458 = vmatpush1.bf16.xpose.msra.mxu0 0
      %3459 = vmatprep.subr.bf16.mxu0 0
      %3460 = vmatpush1.bf16.xpose.msra.mxu0 0
      %3461 = vmatprep.subr.bf16.mxu0 0
      %3462 = vmatpush1.bf16.xpose.msra.mxu0 0
      %3463 = vmatprep.subr.bf16.mxu0 0
      %3464 = vmatpush1.bf16.xpose.msra.mxu0 0
      %3465 = vmatprep.subr.bf16.mxu0 0
      %3466 = vmatpush1.bf16.xpose.msra.mxu0 0
      %3467 = vmatprep.subr.bf16.mxu0 0
      %3468 = vmatpush1.bf16.xpose.msra.mxu0 0
      %3469 = vmatprep.subr.bf16.mxu0 0
      %3470 = vmatpush1.bf16.xpose.msra.mxu0 0
      %3471 = vmatprep.subr.bf16.mxu0 0
      %3472 = vmatpush1.bf16.xpose.msra.mxu0 0
      %3473 = vmatprep.subr.bf16.mxu0 0
      %3474 = vmatpush1.bf16.xpose.msra.mxu0 0
      %3475 = vmatprep.mubr.bf16.mxu0 0
      %3476 = vmatmul.mubr.bf16.gmra.mrb[0].mxu0 %v3438
      %v3477 = vpop.f32.mrb[0].mxu0
      %v3478 = vadd.f32 0.0, %v3477
      %v3479 = vpop.f32.mrb[0].mxu0
      %v3480 = vpop.f32.mrb[0].mxu0
      %v3481 = vadd.f32 0.0, %v3480
      %v3482 = vpop.f32.mrb[0].mxu0
      %3483 = vdwg.mxu0
      %v3485 = vsel %vm794, %v2008, 0
      %v3488 = vsel %vm794, %v2604, 0
      %3490 = vmatprep.subr.bf16.mxu0 0
      %3491 = vmatpush1.bf16.xpose.msra.mxu0 %v3488
      %3492 = vmatprep.subr.bf16.mxu0 0
      %3493 = vmatpush1.bf16.xpose.msra.mxu0 0
      %3494 = vmatprep.subr.bf16.mxu0 0
      %3495 = vmatpush1.bf16.xpose.msra.mxu0 0
      %3496 = vmatprep.subr.bf16.mxu0 0
      %3497 = vmatpush1.bf16.xpose.msra.mxu0 0
      %3498 = vmatprep.subr.bf16.mxu0 0
      %3499 = vmatpush1.bf16.xpose.msra.mxu0 0
      %3500 = vmatprep.subr.bf16.mxu0 0
      %3501 = vmatpush1.bf16.xpose.msra.mxu0 0
      %3502 = vmatprep.subr.bf16.mxu0 0
      %3503 = vmatpush1.bf16.xpose.msra.mxu0 0
      %3504 = vmatprep.subr.bf16.mxu0 0
      %3505 = vmatpush1.bf16.xpose.msra.mxu0 0
      %3506 = vmatprep.subr.bf16.mxu0 0
      %3507 = vmatpush1.bf16.xpose.msra.mxu0 0
      %3508 = vmatprep.subr.bf16.mxu0 0
      %3509 = vmatpush1.bf16.xpose.msra.mxu0 0
      %3510 = vmatprep.subr.bf16.mxu0 0
      %3511 = vmatpush1.bf16.xpose.msra.mxu0 0
      %3512 = vmatprep.subr.bf16.mxu0 0
      %3513 = vmatpush1.bf16.xpose.msra.mxu0 0
      %3514 = vmatprep.subr.bf16.mxu0 0
      %3515 = vmatpush1.bf16.xpose.msra.mxu0 0
      %3516 = vmatprep.subr.bf16.mxu0 0
      %3517 = vmatpush1.bf16.xpose.msra.mxu0 0
      %3518 = vmatprep.subr.bf16.mxu0 0
      %3519 = vmatpush1.bf16.xpose.msra.mxu0 0
      %3520 = vmatprep.subr.bf16.mxu0 0
      %3521 = vmatpush1.bf16.xpose.msra.mxu0 0
      %3522 = vmatprep.mubr.bf16.mxu0 0
      %3523 = vmatmul.mubr.bf16.gmra.mrb[0].mxu0 %v3485
      %v3524 = vpop.f32.mrb[0].mxu0
      %v3525 = vadd.f32 0.0, %v3524
      %v3526 = vpop.f32.mrb[0].mxu0
      %v3527 = vpop.f32.mrb[0].mxu0
      %v3528 = vadd.f32 0.0, %v3527
      %v3529 = vpop.f32.mrb[0].mxu0
      %3530 = vdwg.mxu0
      %v3532 = vsel %vm794, %v2009, 0
      %v3535 = vsel %vm794, %v2605, 0
      %3537 = vmatprep.subr.bf16.mxu0 0
      %3538 = vmatpush1.bf16.xpose.msra.mxu0 %v3535
      %3539 = vmatprep.subr.bf16.mxu0 0
      %3540 = vmatpush1.bf16.xpose.msra.mxu0 0
      %3541 = vmatprep.subr.bf16.mxu0 0
      %3542 = vmatpush1.bf16.xpose.msra.mxu0 0
      %3543 = vmatprep.subr.bf16.mxu0 0
      %3544 = vmatpush1.bf16.xpose.msra.mxu0 0
      %3545 = vmatprep.subr.bf16.mxu0 0
      %3546 = vmatpush1.bf16.xpose.msra.mxu0 0
      %3547 = vmatprep.subr.bf16.mxu0 0
      %3548 = vmatpush1.bf16.xpose.msra.mxu0 0
      %3549 = vmatprep.subr.bf16.mxu0 0
      %3550 = vmatpush1.bf16.xpose.msra.mxu0 0
      %3551 = vmatprep.subr.bf16.mxu0 0
      %3552 = vmatpush1.bf16.xpose.msra.mxu0 0
      %3553 = vmatprep.subr.bf16.mxu0 0
      %3554 = vmatpush1.bf16.xpose.msra.mxu0 0
      %3555 = vmatprep.subr.bf16.mxu0 0
      %3556 = vmatpush1.bf16.xpose.msra.mxu0 0
      %3557 = vmatprep.subr.bf16.mxu0 0
      %3558 = vmatpush1.bf16.xpose.msra.mxu0 0
      %3559 = vmatprep.subr.bf16.mxu0 0
      %3560 = vmatpush1.bf16.xpose.msra.mxu0 0
      %3561 = vmatprep.subr.bf16.mxu0 0
      %3562 = vmatpush1.bf16.xpose.msra.mxu0 0
      %3563 = vmatprep.subr.bf16.mxu0 0
      %3564 = vmatpush1.bf16.xpose.msra.mxu0 0
      %3565 = vmatprep.subr.bf16.mxu0 0
      %3566 = vmatpush1.bf16.xpose.msra.mxu0 0
      %3567 = vmatprep.subr.bf16.mxu0 0
      %3568 = vmatpush1.bf16.xpose.msra.mxu0 0
      %3569 = vmatprep.mubr.bf16.mxu0 0
      %3570 = vmatmul.mubr.bf16.gmra.mrb[0].mxu0 %v3532
      %v3571 = vpop.f32.mrb[0].mxu0
      %v3572 = vadd.f32 0.0, %v3571
      %v3573 = vpop.f32.mrb[0].mxu0
      %v3574 = vpop.f32.mrb[0].mxu0
      %v3575 = vadd.f32 0.0, %v3574
      %v3576 = vpop.f32.mrb[0].mxu0
      %3577 = vdwg.mxu0
      %vm3578 = vcmask 130048
      %v3579 = vsel %vm3578, %v3243, -inf
      %3580 = vmax.xlane.f32.xlu0 %v3579
      %v3581 = vpop.xlane.xlu0 %3580
      %v3582 = vsel %vm3578, %v3246, -inf
      %3583 = vmax.xlane.f32.xlu0 %v3582
      %v3584 = vpop.xlane.xlu0 %3583
      %v3585 = vsel %vm3578, %v3290, -inf
      %3586 = vmax.xlane.f32.xlu0 %v3585
      %v3587 = vpop.xlane.xlu0 %3586
      %v3588 = vsel %vm3578, %v3293, -inf
      %3589 = vmax.xlane.f32.xlu0 %v3588
      %v3590 = vpop.xlane.xlu0 %3589
      %v3591 = vsel %vm3578, %v3337, -inf
      %3592 = vmax.xlane.f32.xlu0 %v3591
      %v3593 = vpop.xlane.xlu0 %3592
      %v3594 = vsel %vm3578, %v3340, -inf
      %3595 = vmax.xlane.f32.xlu0 %v3594
      %v3596 = vpop.xlane.xlu0 %3595
      %v3597 = vsel %vm3578, %v3384, -inf
      %3598 = vmax.xlane.f32.xlu0 %v3597
      %v3599 = vpop.xlane.xlu0 %3598
      %v3600 = vsel %vm3578, %v3387, -inf
      %3601 = vmax.xlane.f32.xlu0 %v3600
      %v3602 = vpop.xlane.xlu0 %3601
      %v3603 = vsel %vm3578, %v3431, -inf
      %3604 = vmax.xlane.f32.xlu0 %v3603
      %v3605 = vpop.xlane.xlu0 %3604
      %v3606 = vsel %vm3578, %v3434, -inf
      %3607 = vmax.xlane.f32.xlu0 %v3606
      %v3608 = vpop.xlane.xlu0 %3607
      %v3609 = vsel %vm3578, %v3478, -inf
      %3610 = vmax.xlane.f32.xlu0 %v3609
      %v3611 = vpop.xlane.xlu0 %3610
      %v3612 = vsel %vm3578, %v3481, -inf
      %3613 = vmax.xlane.f32.xlu0 %v3612
      %v3614 = vpop.xlane.xlu0 %3613
      %v3615 = vsel %vm3578, %v3525, -inf
      %3616 = vmax.xlane.f32.xlu0 %v3615
      %v3617 = vpop.xlane.xlu0 %3616
      %v3618 = vsel %vm3578, %v3528, -inf
      %3619 = vmax.xlane.f32.xlu0 %v3618
      %v3620 = vpop.xlane.xlu0 %3619
      %v3621 = vsel %vm3578, %v3572, -inf
      %3622 = vmax.xlane.f32.xlu0 %v3621
      %v3623 = vpop.xlane.xlu0 %3622
      %v3624 = vsel %vm3578, %v3575, -inf
      %3625 = vmax.xlane.f32.xlu0 %v3624
      %v3626 = vpop.xlane.xlu0 %3625
      %v3627 = vsub.f32 %v3243, %v3581
      %v3628 = vsub.f32 %v3246, %v3584
      %v3629 = vsub.f32 %v3290, %v3587
      %v3630 = vsub.f32 %v3293, %v3590
      %v3631 = vsub.f32 %v3337, %v3593
      %v3632 = vsub.f32 %v3340, %v3596
      %v3633 = vsub.f32 %v3384, %v3599
      %v3634 = vsub.f32 %v3387, %v3602
      %v3635 = vsub.f32 %v3431, %v3605
      %v3636 = vsub.f32 %v3434, %v3608
      %v3637 = vsub.f32 %v3478, %v3611
      %v3638 = vsub.f32 %v3481, %v3614
      %v3639 = vsub.f32 %v3525, %v3617
      %v3640 = vsub.f32 %v3528, %v3620
      %v3641 = vsub.f32 %v3572, %v3623
      %v3642 = vsub.f32 %v3575, %v3626
      %v3643 = vmul.f32 %v3627, 1.442695
      %v3644 = vpow.pop %v3643
      %v3645 = vmul.f32 %v3628, 1.442695
      %v3646 = vpow.pop %v3645
      %v3647 = vmul.f32 %v3629, 1.442695
      %v3648 = vpow.pop %v3647
      %v3649 = vmul.f32 %v3630, 1.442695
      %v3650 = vpow.pop %v3649
      %v3651 = vmul.f32 %v3631, 1.442695
      %v3652 = vpow.pop %v3651
      %v3653 = vmul.f32 %v3632, 1.442695
      %v3654 = vpow.pop %v3653
      %v3655 = vmul.f32 %v3633, 1.442695
      %v3656 = vpow.pop %v3655
      %v3657 = vmul.f32 %v3634, 1.442695
      %v3658 = vpow.pop %v3657
      %v3659 = vmul.f32 %v3635, 1.442695
      %v3660 = vpow.pop %v3659
      %v3661 = vmul.f32 %v3636, 1.442695
      %v3662 = vpow.pop %v3661
      %v3663 = vmul.f32 %v3637, 1.442695
      %v3664 = vpow.pop %v3663
      %v3665 = vmul.f32 %v3638, 1.442695
      %v3666 = vpow.pop %v3665
      %v3667 = vmul.f32 %v3639, 1.442695
      %v3668 = vpow.pop %v3667
      %v3669 = vmul.f32 %v3640, 1.442695
      %v3670 = vpow.pop %v3669
      %v3671 = vmul.f32 %v3641, 1.442695
      %v3672 = vpow.pop %v3671
      %v3673 = vmul.f32 %v3642, 1.442695
      %v3674 = vpow.pop %v3673
      %v3675 = vsel %vm3578, %v3644, 0.0
      %3676 = vadd.xlane.f32.xlu0 %v3675
      %v3677 = vpop.xlane.xlu0 %3676
      %v3678 = vsel %vm3578, %v3646, 0.0
      %3679 = vadd.xlane.f32.xlu0 %v3678
      %v3680 = vpop.xlane.xlu0 %3679
      %v3681 = vsel %vm3578, %v3648, 0.0
      %3682 = vadd.xlane.f32.xlu0 %v3681
      %v3683 = vpop.xlane.xlu0 %3682
      %v3684 = vsel %vm3578, %v3650, 0.0
      %3685 = vadd.xlane.f32.xlu0 %v3684
      %v3686 = vpop.xlane.xlu0 %3685
      %v3687 = vsel %vm3578, %v3652, 0.0
      %3688 = vadd.xlane.f32.xlu0 %v3687
      %v3689 = vpop.xlane.xlu0 %3688
      %v3690 = vsel %vm3578, %v3654, 0.0
      %3691 = vadd.xlane.f32.xlu0 %v3690
      %v3692 = vpop.xlane.xlu0 %3691
      %v3693 = vsel %vm3578, %v3656, 0.0
      %3694 = vadd.xlane.f32.xlu0 %v3693
      %v3695 = vpop.xlane.xlu0 %3694
      %v3696 = vsel %vm3578, %v3658, 0.0
      %3697 = vadd.xlane.f32.xlu0 %v3696
      %v3698 = vpop.xlane.xlu0 %3697
      %v3699 = vsel %vm3578, %v3660, 0.0
      %3700 = vadd.xlane.f32.xlu0 %v3699
      %v3701 = vpop.xlane.xlu0 %3700
      %v3702 = vsel %vm3578, %v3662, 0.0
      %3703 = vadd.xlane.f32.xlu0 %v3702
      %v3704 = vpop.xlane.xlu0 %3703
      %v3705 = vsel %vm3578, %v3664, 0.0
      %3706 = vadd.xlane.f32.xlu0 %v3705
      %v3707 = vpop.xlane.xlu0 %3706
      %v3708 = vsel %vm3578, %v3666, 0.0
      %3709 = vadd.xlane.f32.xlu0 %v3708
      %v3710 = vpop.xlane.xlu0 %3709
      %v3711 = vsel %vm3578, %v3668, 0.0
      %3712 = vadd.xlane.f32.xlu0 %v3711
      %v3713 = vpop.xlane.xlu0 %3712
      %v3714 = vsel %vm3578, %v3670, 0.0
      %3715 = vadd.xlane.f32.xlu0 %v3714
      %v3716 = vpop.xlane.xlu0 %3715
      %v3717 = vsel %vm3578, %v3672, 0.0
      %3718 = vadd.xlane.f32.xlu0 %v3717
      %v3719 = vpop.xlane.xlu0 %3718
      %v3720 = vsel %vm3578, %v3674, 0.0
      %3721 = vadd.xlane.f32.xlu0 %v3720
      %v3722 = vpop.xlane.xlu0 %3721
      %v3723 = vrcp.pop %v3677
      %v3724 = vrcp.pop %v3680
      %v3725 = vrcp.pop %v3683
      %v3726 = vrcp.pop %v3686
      %v3727 = vrcp.pop %v3689
      %v3728 = vrcp.pop %v3692
      %v3729 = vrcp.pop %v3695
      %v3730 = vrcp.pop %v3698
      %v3731 = vrcp.pop %v3701
      %v3732 = vrcp.pop %v3704
      %v3733 = vrcp.pop %v3707
      %v3734 = vrcp.pop %v3710
      %v3735 = vrcp.pop %v3713
      %v3736 = vrcp.pop %v3716
      %v3737 = vrcp.pop %v3719
      %v3738 = vrcp.pop %v3722
      %v3739 = vmul.f32 %v3644, %v3723
      %v3740 = vmul.f32 %v3646, %v3724
      %v3741 = vmul.f32 %v3648, %v3725
      %v3742 = vmul.f32 %v3650, %v3726
      %v3743 = vmul.f32 %v3652, %v3727
      %v3744 = vmul.f32 %v3654, %v3728
      %v3745 = vmul.f32 %v3656, %v3729
      %v3746 = vmul.f32 %v3658, %v3730
      %v3747 = vmul.f32 %v3660, %v3731
      %v3748 = vmul.f32 %v3662, %v3732
      %v3749 = vmul.f32 %v3664, %v3733
      %v3750 = vmul.f32 %v3666, %v3734
      %v3751 = vmul.f32 %v3668, %v3735
      %v3752 = vmul.f32 %v3670, %v3736
      %v3753 = vmul.f32 %v3672, %v3737
      %v3754 = vmul.f32 %v3674, %v3738
      %v3755 = vpack.c.bf16 %v3740, %v3739
      %v3756 = vpack.c.bf16 %v3742, %v3741
      %v3757 = vpack.c.bf16 %v3744, %v3743
      %v3758 = vpack.c.bf16 %v3746, %v3745
      %v3759 = vpack.c.bf16 %v3748, %v3747
      %v3760 = vpack.c.bf16 %v3750, %v3749
      %v3761 = vpack.c.bf16 %v3752, %v3751
      %v3762 = vpack.c.bf16 %v3754, %v3753
      %v3764 = vsel %vm3578, %v3755, 0
      %3766 = vmatprep.subr.bf16.mxu0 0
      %3767 = vmatpush1.bf16.msra.mxu0 %v3194
      %3768 = vmatprep.subr.bf16.mxu0 0
      %3769 = vmatpush1.bf16.msra.mxu0 0
      %3770 = vmatprep.subr.bf16.mxu0 0
      %3771 = vmatpush1.bf16.msra.mxu0 0
      %3772 = vmatprep.subr.bf16.mxu0 0
      %3773 = vmatpush1.bf16.msra.mxu0 0
      %3774 = vmatprep.subr.bf16.mxu0 0
      %3775 = vmatpush1.bf16.msra.mxu0 0
      %3776 = vmatprep.subr.bf16.mxu0 0
      %3777 = vmatpush1.bf16.msra.mxu0 0
      %3778 = vmatprep.subr.bf16.mxu0 0
      %3779 = vmatpush1.bf16.msra.mxu0 0
      %3780 = vmatprep.subr.bf16.mxu0 0
      %3781 = vmatpush1.bf16.msra.mxu0 0
      %3782 = vmatprep.subr.bf16.mxu0 0
      %3783 = vmatpush1.bf16.msra.mxu0 0
      %3784 = vmatprep.subr.bf16.mxu0 0
      %3785 = vmatpush1.bf16.msra.mxu0 0
      %3786 = vmatprep.subr.bf16.mxu0 0
      %3787 = vmatpush1.bf16.msra.mxu0 0
      %3788 = vmatprep.subr.bf16.mxu0 0
      %3789 = vmatpush1.bf16.msra.mxu0 0
      %3790 = vmatprep.subr.bf16.mxu0 0
      %3791 = vmatpush1.bf16.msra.mxu0 0
      %3792 = vmatprep.subr.bf16.mxu0 0
      %3793 = vmatpush1.bf16.msra.mxu0 0
      %3794 = vmatprep.subr.bf16.mxu0 0
      %3795 = vmatpush1.bf16.msra.mxu0 0
      %3796 = vmatprep.subr.bf16.mxu0 0
      %3797 = vmatpush1.bf16.msra.mxu0 0
      %3798 = vmatprep.mubr.bf16.mxu0 0
      %3799 = vmatmul.mubr.bf16.gmra.mrb[0].mxu0 %v3764
      %v3800 = vpop.f32.mrb[0].mxu0
      %v3801 = vadd.f32 0.0, %v3800
      %v3802 = vpop.f32.mrb[0].mxu0
      %v3803 = vpop.f32.mrb[0].mxu0
      %v3804 = vadd.f32 0.0, %v3803
      %v3805 = vpop.f32.mrb[0].mxu0
      %3806 = vdwg.mxu0
      %v3808 = vsel %vm3578, %v3756, 0
      %3810 = vmatprep.subr.bf16.mxu0 0
      %3811 = vmatpush1.bf16.msra.mxu0 %v3195
      %3812 = vmatprep.subr.bf16.mxu0 0
      %3813 = vmatpush1.bf16.msra.mxu0 0
      %3814 = vmatprep.subr.bf16.mxu0 0
      %3815 = vmatpush1.bf16.msra.mxu0 0
      %3816 = vmatprep.subr.bf16.mxu0 0
      %3817 = vmatpush1.bf16.msra.mxu0 0
      %3818 = vmatprep.subr.bf16.mxu0 0
      %3819 = vmatpush1.bf16.msra.mxu0 0
      %3820 = vmatprep.subr.bf16.mxu0 0
      %3821 = vmatpush1.bf16.msra.mxu0 0
      %3822 = vmatprep.subr.bf16.mxu0 0
      %3823 = vmatpush1.bf16.msra.mxu0 0
      %3824 = vmatprep.subr.bf16.mxu0 0
      %3825 = vmatpush1.bf16.msra.mxu0 0
      %3826 = vmatprep.subr.bf16.mxu0 0
      %3827 = vmatpush1.bf16.msra.mxu0 0
      %3828 = vmatprep.subr.bf16.mxu0 0
      %3829 = vmatpush1.bf16.msra.mxu0 0
      %3830 = vmatprep.subr.bf16.mxu0 0
      %3831 = vmatpush1.bf16.msra.mxu0 0
      %3832 = vmatprep.subr.bf16.mxu0 0
      %3833 = vmatpush1.bf16.msra.mxu0 0
      %3834 = vmatprep.subr.bf16.mxu0 0
      %3835 = vmatpush1.bf16.msra.mxu0 0
      %3836 = vmatprep.subr.bf16.mxu0 0
      %3837 = vmatpush1.bf16.msra.mxu0 0
      %3838 = vmatprep.subr.bf16.mxu0 0
      %3839 = vmatpush1.bf16.msra.mxu0 0
      %3840 = vmatprep.subr.bf16.mxu0 0
      %3841 = vmatpush1.bf16.msra.mxu0 0
      %3842 = vmatprep.mubr.bf16.mxu0 0
      %3843 = vmatmul.mubr.bf16.gmra.mrb[0].mxu0 %v3808
      %v3844 = vpop.f32.mrb[0].mxu0
      %v3845 = vadd.f32 0.0, %v3844
      %v3846 = vpop.f32.mrb[0].mxu0
      %v3847 = vpop.f32.mrb[0].mxu0
      %v3848 = vadd.f32 0.0, %v3847
      %v3849 = vpop.f32.mrb[0].mxu0
      %3850 = vdwg.mxu0
      %v3852 = vsel %vm3578, %v3757, 0
      %3854 = vmatprep.subr.bf16.mxu0 0
      %3855 = vmatpush1.bf16.msra.mxu0 %v3196
      %3856 = vmatprep.subr.bf16.mxu0 0
      %3857 = vmatpush1.bf16.msra.mxu0 0
      %3858 = vmatprep.subr.bf16.mxu0 0
      %3859 = vmatpush1.bf16.msra.mxu0 0
      %3860 = vmatprep.subr.bf16.mxu0 0
      %3861 = vmatpush1.bf16.msra.mxu0 0
      %3862 = vmatprep.subr.bf16.mxu0 0
      %3863 = vmatpush1.bf16.msra.mxu0 0
      %3864 = vmatprep.subr.bf16.mxu0 0
      %3865 = vmatpush1.bf16.msra.mxu0 0
      %3866 = vmatprep.subr.bf16.mxu0 0
      %3867 = vmatpush1.bf16.msra.mxu0 0
      %3868 = vmatprep.subr.bf16.mxu0 0
      %3869 = vmatpush1.bf16.msra.mxu0 0
      %3870 = vmatprep.subr.bf16.mxu0 0
      %3871 = vmatpush1.bf16.msra.mxu0 0
      %3872 = vmatprep.subr.bf16.mxu0 0
      %3873 = vmatpush1.bf16.msra.mxu0 0
      %3874 = vmatprep.subr.bf16.mxu0 0
      %3875 = vmatpush1.bf16.msra.mxu0 0
      %3876 = vmatprep.subr.bf16.mxu0 0
      %3877 = vmatpush1.bf16.msra.mxu0 0
      %3878 = vmatprep.subr.bf16.mxu0 0
      %3879 = vmatpush1.bf16.msra.mxu0 0
      %3880 = vmatprep.subr.bf16.mxu0 0
      %3881 = vmatpush1.bf16.msra.mxu0 0
      %3882 = vmatprep.subr.bf16.mxu0 0
      %3883 = vmatpush1.bf16.msra.mxu0 0
      %3884 = vmatprep.subr.bf16.mxu0 0
      %3885 = vmatpush1.bf16.msra.mxu0 0
      %3886 = vmatprep.mubr.bf16.mxu0 0
      %3887 = vmatmul.mubr.bf16.gmra.mrb[0].mxu0 %v3852
      %v3888 = vpop.f32.mrb[0].mxu0
      %v3889 = vadd.f32 0.0, %v3888
      %v3890 = vpop.f32.mrb[0].mxu0
      %v3891 = vpop.f32.mrb[0].mxu0
      %v3892 = vadd.f32 0.0, %v3891
      %v3893 = vpop.f32.mrb[0].mxu0
      %3894 = vdwg.mxu0
      %v3896 = vsel %vm3578, %v3758, 0
      %3898 = vmatprep.subr.bf16.mxu0 0
      %3899 = vmatpush1.bf16.msra.mxu0 %v3197
      %3900 = vmatprep.subr.bf16.mxu0 0
      %3901 = vmatpush1.bf16.msra.mxu0 0
      %3902 = vmatprep.subr.bf16.mxu0 0
      %3903 = vmatpush1.bf16.msra.mxu0 0
      %3904 = vmatprep.subr.bf16.mxu0 0
      %3905 = vmatpush1.bf16.msra.mxu0 0
      %3906 = vmatprep.subr.bf16.mxu0 0
      %3907 = vmatpush1.bf16.msra.mxu0 0
      %3908 = vmatprep.subr.bf16.mxu0 0
      %3909 = vmatpush1.bf16.msra.mxu0 0
      %3910 = vmatprep.subr.bf16.mxu0 0
      %3911 = vmatpush1.bf16.msra.mxu0 0
      %3912 = vmatprep.subr.bf16.mxu0 0
      %3913 = vmatpush1.bf16.msra.mxu0 0
      %3914 = vmatprep.subr.bf16.mxu0 0
      %3915 = vmatpush1.bf16.msra.mxu0 0
      %3916 = vmatprep.subr.bf16.mxu0 0
      %3917 = vmatpush1.bf16.msra.mxu0 0
      %3918 = vmatprep.subr.bf16.mxu0 0
      %3919 = vmatpush1.bf16.msra.mxu0 0
      %3920 = vmatprep.subr.bf16.mxu0 0
      %3921 = vmatpush1.bf16.msra.mxu0 0
      %3922 = vmatprep.subr.bf16.mxu0 0
      %3923 = vmatpush1.bf16.msra.mxu0 0
      %3924 = vmatprep.subr.bf16.mxu0 0
      %3925 = vmatpush1.bf16.msra.mxu0 0
      %3926 = vmatprep.subr.bf16.mxu0 0
      %3927 = vmatpush1.bf16.msra.mxu0 0
      %3928 = vmatprep.subr.bf16.mxu0 0
      %3929 = vmatpush1.bf16.msra.mxu0 0
      %3930 = vmatprep.mubr.bf16.mxu0 0
      %3931 = vmatmul.mubr.bf16.gmra.mrb[0].mxu0 %v3896
      %v3932 = vpop.f32.mrb[0].mxu0
      %v3933 = vadd.f32 0.0, %v3932
      %v3934 = vpop.f32.mrb[0].mxu0
      %v3935 = vpop.f32.mrb[0].mxu0
      %v3936 = vadd.f32 0.0, %v3935
      %v3937 = vpop.f32.mrb[0].mxu0
      %3938 = vdwg.mxu0
      %v3940 = vsel %vm3578, %v3759, 0
      %3942 = vmatprep.subr.bf16.mxu0 0
      %3943 = vmatpush1.bf16.msra.mxu0 %v3198
      %3944 = vmatprep.subr.bf16.mxu0 0
      %3945 = vmatpush1.bf16.msra.mxu0 0
      %3946 = vmatprep.subr.bf16.mxu0 0
      %3947 = vmatpush1.bf16.msra.mxu0 0
      %3948 = vmatprep.subr.bf16.mxu0 0
      %3949 = vmatpush1.bf16.msra.mxu0 0
      %3950 = vmatprep.subr.bf16.mxu0 0
      %3951 = vmatpush1.bf16.msra.mxu0 0
      %3952 = vmatprep.subr.bf16.mxu0 0
      %3953 = vmatpush1.bf16.msra.mxu0 0
      %3954 = vmatprep.subr.bf16.mxu0 0
      %3955 = vmatpush1.bf16.msra.mxu0 0
      %3956 = vmatprep.subr.bf16.mxu0 0
      %3957 = vmatpush1.bf16.msra.mxu0 0
      %3958 = vmatprep.subr.bf16.mxu0 0
      %3959 = vmatpush1.bf16.msra.mxu0 0
      %3960 = vmatprep.subr.bf16.mxu0 0
      %3961 = vmatpush1.bf16.msra.mxu0 0
      %3962 = vmatprep.subr.bf16.mxu0 0
      %3963 = vmatpush1.bf16.msra.mxu0 0
      %3964 = vmatprep.subr.bf16.mxu0 0
      %3965 = vmatpush1.bf16.msra.mxu0 0
      %3966 = vmatprep.subr.bf16.mxu0 0
      %3967 = vmatpush1.bf16.msra.mxu0 0
      %3968 = vmatprep.subr.bf16.mxu0 0
      %3969 = vmatpush1.bf16.msra.mxu0 0
      %3970 = vmatprep.subr.bf16.mxu0 0
      %3971 = vmatpush1.bf16.msra.mxu0 0
      %3972 = vmatprep.subr.bf16.mxu0 0
      %3973 = vmatpush1.bf16.msra.mxu0 0
      %3974 = vmatprep.mubr.bf16.mxu0 0
      %3975 = vmatmul.mubr.bf16.gmra.mrb[0].mxu0 %v3940
      %v3976 = vpop.f32.mrb[0].mxu0
      %v3977 = vadd.f32 0.0, %v3976
      %v3978 = vpop.f32.mrb[0].mxu0
      %v3979 = vpop.f32.mrb[0].mxu0
      %v3980 = vadd.f32 0.0, %v3979
      %v3981 = vpop.f32.mrb[0].mxu0
      %3982 = vdwg.mxu0
      %v3984 = vsel %vm3578, %v3760, 0
      %3986 = vmatprep.subr.bf16.mxu0 0
      %3987 = vmatpush1.bf16.msra.mxu0 %v3199
      %3988 = vmatprep.subr.bf16.mxu0 0
      %3989 = vmatpush1.bf16.msra.mxu0 0
      %3990 = vmatprep.subr.bf16.mxu0 0
      %3991 = vmatpush1.bf16.msra.mxu0 0
      %3992 = vmatprep.subr.bf16.mxu0 0
      %3993 = vmatpush1.bf16.msra.mxu0 0
      %3994 = vmatprep.subr.bf16.mxu0 0
      %3995 = vmatpush1.bf16.msra.mxu0 0
      %3996 = vmatprep.subr.bf16.mxu0 0
      %3997 = vmatpush1.bf16.msra.mxu0 0
      %3998 = vmatprep.subr.bf16.mxu0 0
      %3999 = vmatpush1.bf16.msra.mxu0 0
      %4000 = vmatprep.subr.bf16.mxu0 0
      %4001 = vmatpush1.bf16.msra.mxu0 0
      %4002 = vmatprep.subr.bf16.mxu0 0
      %4003 = vmatpush1.bf16.msra.mxu0 0
      %4004 = vmatprep.subr.bf16.mxu0 0
      %4005 = vmatpush1.bf16.msra.mxu0 0
      %4006 = vmatprep.subr.bf16.mxu0 0
      %4007 = vmatpush1.bf16.msra.mxu0 0
      %4008 = vmatprep.subr.bf16.mxu0 0
      %4009 = vmatpush1.bf16.msra.mxu0 0
      %4010 = vmatprep.subr.bf16.mxu0 0
      %4011 = vmatpush1.bf16.msra.mxu0 0
      %4012 = vmatprep.subr.bf16.mxu0 0
      %4013 = vmatpush1.bf16.msra.mxu0 0
      %4014 = vmatprep.subr.bf16.mxu0 0
      %4015 = vmatpush1.bf16.msra.mxu0 0
      %4016 = vmatprep.subr.bf16.mxu0 0
      %4017 = vmatpush1.bf16.msra.mxu0 0
      %4018 = vmatprep.mubr.bf16.mxu0 0
      %4019 = vmatmul.mubr.bf16.gmra.mrb[0].mxu0 %v3984
      %v4020 = vpop.f32.mrb[0].mxu0
      %v4021 = vadd.f32 0.0, %v4020
      %v4022 = vpop.f32.mrb[0].mxu0
      %v4023 = vpop.f32.mrb[0].mxu0
      %v4024 = vadd.f32 0.0, %v4023
      %v4025 = vpop.f32.mrb[0].mxu0
      %4026 = vdwg.mxu0
      %v4028 = vsel %vm3578, %v3761, 0
      %4030 = vmatprep.subr.bf16.mxu0 0
      %4031 = vmatpush1.bf16.msra.mxu0 %v3200
      %4032 = vmatprep.subr.bf16.mxu0 0
      %4033 = vmatpush1.bf16.msra.mxu0 0
      %4034 = vmatprep.subr.bf16.mxu0 0
      %4035 = vmatpush1.bf16.msra.mxu0 0
      %4036 = vmatprep.subr.bf16.mxu0 0
      %4037 = vmatpush1.bf16.msra.mxu0 0
      %4038 = vmatprep.subr.bf16.mxu0 0
      %4039 = vmatpush1.bf16.msra.mxu0 0
      %4040 = vmatprep.subr.bf16.mxu0 0
      %4041 = vmatpush1.bf16.msra.mxu0 0
      %4042 = vmatprep.subr.bf16.mxu0 0
      %4043 = vmatpush1.bf16.msra.mxu0 0
      %4044 = vmatprep.subr.bf16.mxu0 0
      %4045 = vmatpush1.bf16.msra.mxu0 0
      %4046 = vmatprep.subr.bf16.mxu0 0
      %4047 = vmatpush1.bf16.msra.mxu0 0
      %4048 = vmatprep.subr.bf16.mxu0 0
      %4049 = vmatpush1.bf16.msra.mxu0 0
      %4050 = vmatprep.subr.bf16.mxu0 0
      %4051 = vmatpush1.bf16.msra.mxu0 0
      %4052 = vmatprep.subr.bf16.mxu0 0
      %4053 = vmatpush1.bf16.msra.mxu0 0
      %4054 = vmatprep.subr.bf16.mxu0 0
      %4055 = vmatpush1.bf16.msra.mxu0 0
      %4056 = vmatprep.subr.bf16.mxu0 0
      %4057 = vmatpush1.bf16.msra.mxu0 0
      %4058 = vmatprep.subr.bf16.mxu0 0
      %4059 = vmatpush1.bf16.msra.mxu0 0
      %4060 = vmatprep.subr.bf16.mxu0 0
      %4061 = vmatpush1.bf16.msra.mxu0 0
      %4062 = vmatprep.mubr.bf16.mxu0 0
      %4063 = vmatmul.mubr.bf16.gmra.mrb[0].mxu0 %v4028
      %v4064 = vpop.f32.mrb[0].mxu0
      %v4065 = vadd.f32 0.0, %v4064
      %v4066 = vpop.f32.mrb[0].mxu0
      %v4067 = vpop.f32.mrb[0].mxu0
      %v4068 = vadd.f32 0.0, %v4067
      %v4069 = vpop.f32.mrb[0].mxu0
      %4070 = vdwg.mxu0
      %v4072 = vsel %vm3578, %v3762, 0
      %4074 = vmatprep.subr.bf16.mxu0 0
      %4075 = vmatpush1.bf16.msra.mxu0 %v3201
      %4076 = vmatprep.subr.bf16.mxu0 0
      %4077 = vmatpush1.bf16.msra.mxu0 0
      %4078 = vmatprep.subr.bf16.mxu0 0
      %4079 = vmatpush1.bf16.msra.mxu0 0
      %4080 = vmatprep.subr.bf16.mxu0 0
      %4081 = vmatpush1.bf16.msra.mxu0 0
      %4082 = vmatprep.subr.bf16.mxu0 0
      %4083 = vmatpush1.bf16.msra.mxu0 0
      %4084 = vmatprep.subr.bf16.mxu0 0
      %4085 = vmatpush1.bf16.msra.mxu0 0
      %4086 = vmatprep.subr.bf16.mxu0 0
      %4087 = vmatpush1.bf16.msra.mxu0 0
      %4088 = vmatprep.subr.bf16.mxu0 0
      %4089 = vmatpush1.bf16.msra.mxu0 0
      %4090 = vmatprep.subr.bf16.mxu0 0
      %4091 = vmatpush1.bf16.msra.mxu0 0
      %4092 = vmatprep.subr.bf16.mxu0 0
      %4093 = vmatpush1.bf16.msra.mxu0 0
      %4094 = vmatprep.subr.bf16.mxu0 0
      %4095 = vmatpush1.bf16.msra.mxu0 0
      %4096 = vmatprep.subr.bf16.mxu0 0
      %4097 = vmatpush1.bf16.msra.mxu0 0
      %4098 = vmatprep.subr.bf16.mxu0 0
      %4099 = vmatpush1.bf16.msra.mxu0 0
      %4100 = vmatprep.subr.bf16.mxu0 0
      %4101 = vmatpush1.bf16.msra.mxu0 0
      %4102 = vmatprep.subr.bf16.mxu0 0
      %4103 = vmatpush1.bf16.msra.mxu0 0
      %4104 = vmatprep.subr.bf16.mxu0 0
      %4105 = vmatpush1.bf16.msra.mxu0 0
      %4106 = vmatprep.mubr.bf16.mxu0 0
      %4107 = vmatmul.mubr.bf16.gmra.mrb[0].mxu0 %v4072
      %v4108 = vpop.f32.mrb[0].mxu0
      %v4109 = vadd.f32 0.0, %v4108
      %v4110 = vpop.f32.mrb[0].mxu0
      %v4111 = vpop.f32.mrb[0].mxu0
      %v4112 = vadd.f32 0.0, %v4111
      %v4113 = vpop.f32.mrb[0].mxu0
      %4114 = vdwg.mxu0
      %v4115 = vcombine.low %v3801, %v3889
      %v4116 = vcombine.high %v3801, %v3889
      %v4118 = vunpack.c.l.s4 1983009808
      %v4119 = vunpack.c.0.s8 %v4118
      %v4120 = vlaneseq
      %v4121 = vshrl.u32 %v4120, 7
      %v4122 = vsub.s32 %v4119, %v4121
      %v4123 = vrot.slane %v4115, %v4122
      %v4125 = vunpack.c.l.s4 1983009808
      %v4126 = vunpack.c.0.s8 %v4125
      %v4127 = vlaneseq
      %v4128 = vshrl.u32 %v4127, 7
      %v4129 = vsub.s32 %v4126, %v4128
      %v4130 = vrot.slane %v4116, %v4129
      %v4131 = vcombine.low %v3845, %v3933
      %v4132 = vcombine.high %v3845, %v3933
      %v4134 = vunpack.c.l.s4 1983009808
      %v4135 = vunpack.c.0.s8 %v4134
      %v4136 = vlaneseq
      %v4137 = vshrl.u32 %v4136, 7
      %v4138 = vsub.s32 %v4135, %v4137
      %v4139 = vrot.slane %v4131, %v4138
      %v4141 = vunpack.c.l.s4 1983009808
      %v4142 = vunpack.c.0.s8 %v4141
      %v4143 = vlaneseq
      %v4144 = vshrl.u32 %v4143, 7
      %v4145 = vsub.s32 %v4142, %v4144
      %v4146 = vrot.slane %v4132, %v4145
      %v4147 = vcombine.low %v3977, %v4065
      %v4148 = vcombine.high %v3977, %v4065
      %v4150 = vunpack.c.l.s4 1983009808
      %v4151 = vunpack.c.0.s8 %v4150
      %v4152 = vlaneseq
      %v4153 = vshrl.u32 %v4152, 7
      %v4154 = vsub.s32 %v4151, %v4153
      %v4155 = vrot.slane %v4147, %v4154
      %v4157 = vunpack.c.l.s4 1983009808
      %v4158 = vunpack.c.0.s8 %v4157
      %v4159 = vlaneseq
      %v4160 = vshrl.u32 %v4159, 7
      %v4161 = vsub.s32 %v4158, %v4160
      %v4162 = vrot.slane %v4148, %v4161
      %v4163 = vcombine.low %v4021, %v4109
      %v4164 = vcombine.high %v4021, %v4109
      %v4166 = vunpack.c.l.s4 1983009808
      %v4167 = vunpack.c.0.s8 %v4166
      %v4168 = vlaneseq
      %v4169 = vshrl.u32 %v4168, 7
      %v4170 = vsub.s32 %v4167, %v4169
      %v4171 = vrot.slane %v4163, %v4170
      %v4173 = vunpack.c.l.s4 1983009808
      %v4174 = vunpack.c.0.s8 %v4173
      %v4175 = vlaneseq
      %v4176 = vshrl.u32 %v4175, 7
      %v4177 = vsub.s32 %v4174, %v4176
      %v4178 = vrot.slane %v4164, %v4177
      %v4179 = vcombine.low %v4123, %v4139
      %v4180 = vcombine.high %v4123, %v4139
      %v4182 = vunpack.c.l.s4 1934713408
      %v4183 = vunpack.c.0.s8 %v4182
      %v4184 = vlaneseq
      %v4185 = vshrl.u32 %v4184, 7
      %v4186 = vsub.s32 %v4183, %v4185
      %v4187 = vrot.slane %v4179, %v4186
      %v4189 = vunpack.c.l.s4 1934713408
      %v4190 = vunpack.c.0.s8 %v4189
      %v4191 = vlaneseq
      %v4192 = vshrl.u32 %v4191, 7
      %v4193 = vsub.s32 %v4190, %v4192
      %v4194 = vrot.slane %v4180, %v4193
      %v4195 = vcombine.low %v4130, %v4146
      %v4196 = vcombine.high %v4130, %v4146
      %v4198 = vunpack.c.l.s4 1934713408
      %v4199 = vunpack.c.0.s8 %v4198
      %v4200 = vlaneseq
      %v4201 = vshrl.u32 %v4200, 7
      %v4202 = vsub.s32 %v4199, %v4201
      %v4203 = vrot.slane %v4195, %v4202
      %v4205 = vunpack.c.l.s4 1934713408
      %v4206 = vunpack.c.0.s8 %v4205
      %v4207 = vlaneseq
      %v4208 = vshrl.u32 %v4207, 7
      %v4209 = vsub.s32 %v4206, %v4208
      %v4210 = vrot.slane %v4196, %v4209
      %v4211 = vcombine.low %v4155, %v4171
      %v4212 = vcombine.high %v4155, %v4171
      %v4214 = vunpack.c.l.s4 1934713408
      %v4215 = vunpack.c.0.s8 %v4214
      %v4216 = vlaneseq
      %v4217 = vshrl.u32 %v4216, 7
      %v4218 = vsub.s32 %v4215, %v4217
      %v4219 = vrot.slane %v4211, %v4218
      %v4221 = vunpack.c.l.s4 1934713408
      %v4222 = vunpack.c.0.s8 %v4221
      %v4223 = vlaneseq
      %v4224 = vshrl.u32 %v4223, 7
      %v4225 = vsub.s32 %v4222, %v4224
      %v4226 = vrot.slane %v4212, %v4225
      %v4227 = vcombine.low %v4162, %v4178
      %v4228 = vcombine.high %v4162, %v4178
      %v4230 = vunpack.c.l.s4 1934713408
      %v4231 = vunpack.c.0.s8 %v4230
      %v4232 = vlaneseq
      %v4233 = vshrl.u32 %v4232, 7
      %v4234 = vsub.s32 %v4231, %v4233
      %v4235 = vrot.slane %v4227, %v4234
      %v4237 = vunpack.c.l.s4 1934713408
      %v4238 = vunpack.c.0.s8 %v4237
      %v4239 = vlaneseq
      %v4240 = vshrl.u32 %v4239, 7
      %v4241 = vsub.s32 %v4238, %v4240
      %v4242 = vrot.slane %v4228, %v4241
      %v4243 = vcombine.low %v4187, %v4219
      %v4244 = vcombine.high %v4187, %v4219
      %v4245 = vcombine.low %v4194, %v4226
      %v4246 = vcombine.high %v4194, %v4226
      %v4247 = vcombine.low %v4203, %v4235
      %v4248 = vcombine.high %v4203, %v4235
      %v4249 = vcombine.low %v4210, %v4242
      %v4250 = vcombine.high %v4210, %v4242
      %v4251 = vcombine.low %v3804, %v3892
      %v4252 = vcombine.high %v3804, %v3892
      %v4254 = vunpack.c.l.s4 1983009808
      %v4255 = vunpack.c.0.s8 %v4254
      %v4256 = vlaneseq
      %v4257 = vshrl.u32 %v4256, 7
      %v4258 = vsub.s32 %v4255, %v4257
      %v4259 = vrot.slane %v4251, %v4258
      %v4261 = vunpack.c.l.s4 1983009808
      %v4262 = vunpack.c.0.s8 %v4261
      %v4263 = vlaneseq
      %v4264 = vshrl.u32 %v4263, 7
      %v4265 = vsub.s32 %v4262, %v4264
      %v4266 = vrot.slane %v4252, %v4265
      %v4267 = vcombine.low %v3848, %v3936
      %v4268 = vcombine.high %v3848, %v3936
      %v4270 = vunpack.c.l.s4 1983009808
      %v4271 = vunpack.c.0.s8 %v4270
      %v4272 = vlaneseq
      %v4273 = vshrl.u32 %v4272, 7
      %v4274 = vsub.s32 %v4271, %v4273
      %v4275 = vrot.slane %v4267, %v4274
      %v4277 = vunpack.c.l.s4 1983009808
      %v4278 = vunpack.c.0.s8 %v4277
      %v4279 = vlaneseq
      %v4280 = vshrl.u32 %v4279, 7
      %v4281 = vsub.s32 %v4278, %v4280
      %v4282 = vrot.slane %v4268, %v4281
      %v4283 = vcombine.low %v3980, %v4068
      %v4284 = vcombine.high %v3980, %v4068
      %v4286 = vunpack.c.l.s4 1983009808
      %v4287 = vunpack.c.0.s8 %v4286
      %v4288 = vlaneseq
      %v4289 = vshrl.u32 %v4288, 7
      %v4290 = vsub.s32 %v4287, %v4289
      %v4291 = vrot.slane %v4283, %v4290
      %v4293 = vunpack.c.l.s4 1983009808
      %v4294 = vunpack.c.0.s8 %v4293
      %v4295 = vlaneseq
      %v4296 = vshrl.u32 %v4295, 7
      %v4297 = vsub.s32 %v4294, %v4296
      %v4298 = vrot.slane %v4284, %v4297
      %v4299 = vcombine.low %v4024, %v4112
      %v4300 = vcombine.high %v4024, %v4112
      %v4302 = vunpack.c.l.s4 1983009808
      %v4303 = vunpack.c.0.s8 %v4302
      %v4304 = vlaneseq
      %v4305 = vshrl.u32 %v4304, 7
      %v4306 = vsub.s32 %v4303, %v4305
      %v4307 = vrot.slane %v4299, %v4306
      %v4309 = vunpack.c.l.s4 1983009808
      %v4310 = vunpack.c.0.s8 %v4309
      %v4311 = vlaneseq
      %v4312 = vshrl.u32 %v4311, 7
      %v4313 = vsub.s32 %v4310, %v4312
      %v4314 = vrot.slane %v4300, %v4313
      %v4315 = vcombine.low %v4259, %v4275
      %v4316 = vcombine.high %v4259, %v4275
      %v4318 = vunpack.c.l.s4 1934713408
      %v4319 = vunpack.c.0.s8 %v4318
      %v4320 = vlaneseq
      %v4321 = vshrl.u32 %v4320, 7
      %v4322 = vsub.s32 %v4319, %v4321
      %v4323 = vrot.slane %v4315, %v4322
      %v4325 = vunpack.c.l.s4 1934713408
      %v4326 = vunpack.c.0.s8 %v4325
      %v4327 = vlaneseq
      %v4328 = vshrl.u32 %v4327, 7
      %v4329 = vsub.s32 %v4326, %v4328
      %v4330 = vrot.slane %v4316, %v4329
      %v4331 = vcombine.low %v4266, %v4282
      %v4332 = vcombine.high %v4266, %v4282
      %v4334 = vunpack.c.l.s4 1934713408
      %v4335 = vunpack.c.0.s8 %v4334
      %v4336 = vlaneseq
      %v4337 = vshrl.u32 %v4336, 7
      %v4338 = vsub.s32 %v4335, %v4337
      %v4339 = vrot.slane %v4331, %v4338
      %v4341 = vunpack.c.l.s4 1934713408
      %v4342 = vunpack.c.0.s8 %v4341
      %v4343 = vlaneseq
      %v4344 = vshrl.u32 %v4343, 7
      %v4345 = vsub.s32 %v4342, %v4344
      %v4346 = vrot.slane %v4332, %v4345
      %v4347 = vcombine.low %v4291, %v4307
      %v4348 = vcombine.high %v4291, %v4307
      %v4350 = vunpack.c.l.s4 1934713408
      %v4351 = vunpack.c.0.s8 %v4350
      %v4352 = vlaneseq
      %v4353 = vshrl.u32 %v4352, 7
      %v4354 = vsub.s32 %v4351, %v4353
      %v4355 = vrot.slane %v4347, %v4354
      %v4357 = vunpack.c.l.s4 1934713408
      %v4358 = vunpack.c.0.s8 %v4357
      %v4359 = vlaneseq
      %v4360 = vshrl.u32 %v4359, 7
      %v4361 = vsub.s32 %v4358, %v4360
      %v4362 = vrot.slane %v4348, %v4361
      %v4363 = vcombine.low %v4298, %v4314
      %v4364 = vcombine.high %v4298, %v4314
      %v4366 = vunpack.c.l.s4 1934713408
      %v4367 = vunpack.c.0.s8 %v4366
      %v4368 = vlaneseq
      %v4369 = vshrl.u32 %v4368, 7
      %v4370 = vsub.s32 %v4367, %v4369
      %v4371 = vrot.slane %v4363, %v4370
      %v4373 = vunpack.c.l.s4 1934713408
      %v4374 = vunpack.c.0.s8 %v4373
      %v4375 = vlaneseq
      %v4376 = vshrl.u32 %v4375, 7
      %v4377 = vsub.s32 %v4374, %v4376
      %v4378 = vrot.slane %v4364, %v4377
      %v4379 = vcombine.low %v4323, %v4355
      %v4380 = vcombine.high %v4323, %v4355
      %v4381 = vcombine.low %v4330, %v4362
      %v4382 = vcombine.high %v4330, %v4362
      %v4383 = vcombine.low %v4339, %v4371
      %v4384 = vcombine.high %v4339, %v4371
      %v4385 = vcombine.low %v4346, %v4378
      %v4386 = vcombine.high %v4346, %v4378
      %v4387 = vcombine.low %v4243, %v4245
      %v4388 = vcombine.high %v4243, %v4245
      %v4390 = vunpack.c.l.s4 1983009808
      %v4391 = vunpack.c.0.s8 %v4390
      %v4392 = vlaneseq
      %v4393 = vshrl.u32 %v4392, 7
      %v4394 = vsub.s32 %v4391, %v4393
      %v4395 = vrot.slane %v4387, %v4394
      %v4397 = vunpack.c.l.s4 1983009808
      %v4398 = vunpack.c.0.s8 %v4397
      %v4399 = vlaneseq
      %v4400 = vshrl.u32 %v4399, 7
      %v4401 = vsub.s32 %v4398, %v4400
      %v4402 = vrot.slane %v4388, %v4401
      %v4403 = vcombine.low %v4244, %v4246
      %v4404 = vcombine.high %v4244, %v4246
      %v4406 = vunpack.c.l.s4 1983009808
      %v4407 = vunpack.c.0.s8 %v4406
      %v4408 = vlaneseq
      %v4409 = vshrl.u32 %v4408, 7
      %v4410 = vsub.s32 %v4407, %v4409
      %v4411 = vrot.slane %v4403, %v4410
      %v4413 = vunpack.c.l.s4 1983009808
      %v4414 = vunpack.c.0.s8 %v4413
      %v4415 = vlaneseq
      %v4416 = vshrl.u32 %v4415, 7
      %v4417 = vsub.s32 %v4414, %v4416
      %v4418 = vrot.slane %v4404, %v4417
      %v4419 = vcombine.low %v4247, %v4249
      %v4420 = vcombine.high %v4247, %v4249
      %v4422 = vunpack.c.l.s4 1983009808
      %v4423 = vunpack.c.0.s8 %v4422
      %v4424 = vlaneseq
      %v4425 = vshrl.u32 %v4424, 7
      %v4426 = vsub.s32 %v4423, %v4425
      %v4427 = vrot.slane %v4419, %v4426
      %v4429 = vunpack.c.l.s4 1983009808
      %v4430 = vunpack.c.0.s8 %v4429
      %v4431 = vlaneseq
      %v4432 = vshrl.u32 %v4431, 7
      %v4433 = vsub.s32 %v4430, %v4432
      %v4434 = vrot.slane %v4420, %v4433
      %v4435 = vcombine.low %v4248, %v4250
      %v4436 = vcombine.high %v4248, %v4250
      %v4438 = vunpack.c.l.s4 1983009808
      %v4439 = vunpack.c.0.s8 %v4438
      %v4440 = vlaneseq
      %v4441 = vshrl.u32 %v4440, 7
      %v4442 = vsub.s32 %v4439, %v4441
      %v4443 = vrot.slane %v4435, %v4442
      %v4445 = vunpack.c.l.s4 1983009808
      %v4446 = vunpack.c.0.s8 %v4445
      %v4447 = vlaneseq
      %v4448 = vshrl.u32 %v4447, 7
      %v4449 = vsub.s32 %v4446, %v4448
      %v4450 = vrot.slane %v4436, %v4449
      %v4451 = vcombine.low %v4395, %v4411
      %v4452 = vcombine.high %v4395, %v4411
      %v4454 = vunpack.c.l.s4 1934713408
      %v4455 = vunpack.c.0.s8 %v4454
      %v4456 = vlaneseq
      %v4457 = vshrl.u32 %v4456, 7
      %v4458 = vsub.s32 %v4455, %v4457
      %v4459 = vrot.slane %v4451, %v4458
      %v4461 = vunpack.c.l.s4 1934713408
      %v4462 = vunpack.c.0.s8 %v4461
      %v4463 = vlaneseq
      %v4464 = vshrl.u32 %v4463, 7
      %v4465 = vsub.s32 %v4462, %v4464
      %v4466 = vrot.slane %v4452, %v4465
      %v4467 = vcombine.low %v4402, %v4418
      %v4468 = vcombine.high %v4402, %v4418
      %v4470 = vunpack.c.l.s4 1934713408
      %v4471 = vunpack.c.0.s8 %v4470
      %v4472 = vlaneseq
      %v4473 = vshrl.u32 %v4472, 7
      %v4474 = vsub.s32 %v4471, %v4473
      %v4475 = vrot.slane %v4467, %v4474
      %v4477 = vunpack.c.l.s4 1934713408
      %v4478 = vunpack.c.0.s8 %v4477
      %v4479 = vlaneseq
      %v4480 = vshrl.u32 %v4479, 7
      %v4481 = vsub.s32 %v4478, %v4480
      %v4482 = vrot.slane %v4468, %v4481
      %v4483 = vcombine.low %v4427, %v4443
      %v4484 = vcombine.high %v4427, %v4443
      %v4486 = vunpack.c.l.s4 1934713408
      %v4487 = vunpack.c.0.s8 %v4486
      %v4488 = vlaneseq
      %v4489 = vshrl.u32 %v4488, 7
      %v4490 = vsub.s32 %v4487, %v4489
      %v4491 = vrot.slane %v4483, %v4490
      %v4493 = vunpack.c.l.s4 1934713408
      %v4494 = vunpack.c.0.s8 %v4493
      %v4495 = vlaneseq
      %v4496 = vshrl.u32 %v4495, 7
      %v4497 = vsub.s32 %v4494, %v4496
      %v4498 = vrot.slane %v4484, %v4497
      %v4499 = vcombine.low %v4434, %v4450
      %v4500 = vcombine.high %v4434, %v4450
      %v4502 = vunpack.c.l.s4 1934713408
      %v4503 = vunpack.c.0.s8 %v4502
      %v4504 = vlaneseq
      %v4505 = vshrl.u32 %v4504, 7
      %v4506 = vsub.s32 %v4503, %v4505
      %v4507 = vrot.slane %v4499, %v4506
      %v4509 = vunpack.c.l.s4 1934713408
      %v4510 = vunpack.c.0.s8 %v4509
      %v4511 = vlaneseq
      %v4512 = vshrl.u32 %v4511, 7
      %v4513 = vsub.s32 %v4510, %v4512
      %v4514 = vrot.slane %v4500, %v4513
      %v4515 = vcombine.low %v4459, %v4491
      %v4516 = vcombine.high %v4459, %v4491
      %v4517 = vcombine.low %v4466, %v4498
      %v4518 = vcombine.high %v4466, %v4498
      %v4519 = vcombine.low %v4475, %v4507
      %v4520 = vcombine.high %v4475, %v4507
      %v4521 = vcombine.low %v4482, %v4514
      %v4522 = vcombine.high %v4482, %v4514
      %v4523 = vcombine.low %v4379, %v4381
      %v4524 = vcombine.high %v4379, %v4381
      %v4526 = vunpack.c.l.s4 1983009808
      %v4527 = vunpack.c.0.s8 %v4526
      %v4528 = vlaneseq
      %v4529 = vshrl.u32 %v4528, 7
      %v4530 = vsub.s32 %v4527, %v4529
      %v4531 = vrot.slane %v4523, %v4530
      %v4533 = vunpack.c.l.s4 1983009808
      %v4534 = vunpack.c.0.s8 %v4533
      %v4535 = vlaneseq
      %v4536 = vshrl.u32 %v4535, 7
      %v4537 = vsub.s32 %v4534, %v4536
      %v4538 = vrot.slane %v4524, %v4537
      %v4539 = vcombine.low %v4380, %v4382
      %v4540 = vcombine.high %v4380, %v4382
      %v4542 = vunpack.c.l.s4 1983009808
      %v4543 = vunpack.c.0.s8 %v4542
      %v4544 = vlaneseq
      %v4545 = vshrl.u32 %v4544, 7
      %v4546 = vsub.s32 %v4543, %v4545
      %v4547 = vrot.slane %v4539, %v4546
      %v4549 = vunpack.c.l.s4 1983009808
      %v4550 = vunpack.c.0.s8 %v4549
      %v4551 = vlaneseq
      %v4552 = vshrl.u32 %v4551, 7
      %v4553 = vsub.s32 %v4550, %v4552
      %v4554 = vrot.slane %v4540, %v4553
      %v4555 = vcombine.low %v4383, %v4385
      %v4556 = vcombine.high %v4383, %v4385
      %v4558 = vunpack.c.l.s4 1983009808
      %v4559 = vunpack.c.0.s8 %v4558
      %v4560 = vlaneseq
      %v4561 = vshrl.u32 %v4560, 7
      %v4562 = vsub.s32 %v4559, %v4561
      %v4563 = vrot.slane %v4555, %v4562
      %v4565 = vunpack.c.l.s4 1983009808
      %v4566 = vunpack.c.0.s8 %v4565
      %v4567 = vlaneseq
      %v4568 = vshrl.u32 %v4567, 7
      %v4569 = vsub.s32 %v4566, %v4568
      %v4570 = vrot.slane %v4556, %v4569
      %v4571 = vcombine.low %v4384, %v4386
      %v4572 = vcombine.high %v4384, %v4386
      %v4574 = vunpack.c.l.s4 1983009808
      %v4575 = vunpack.c.0.s8 %v4574
      %v4576 = vlaneseq
      %v4577 = vshrl.u32 %v4576, 7
      %v4578 = vsub.s32 %v4575, %v4577
      %v4579 = vrot.slane %v4571, %v4578
      %v4581 = vunpack.c.l.s4 1983009808
      %v4582 = vunpack.c.0.s8 %v4581
      %v4583 = vlaneseq
      %v4584 = vshrl.u32 %v4583, 7
      %v4585 = vsub.s32 %v4582, %v4584
      %v4586 = vrot.slane %v4572, %v4585
      %v4587 = vcombine.low %v4531, %v4547
      %v4588 = vcombine.high %v4531, %v4547
      %v4590 = vunpack.c.l.s4 1934713408
      %v4591 = vunpack.c.0.s8 %v4590
      %v4592 = vlaneseq
      %v4593 = vshrl.u32 %v4592, 7
      %v4594 = vsub.s32 %v4591, %v4593
      %v4595 = vrot.slane %v4587, %v4594
      %v4597 = vunpack.c.l.s4 1934713408
      %v4598 = vunpack.c.0.s8 %v4597
      %v4599 = vlaneseq
      %v4600 = vshrl.u32 %v4599, 7
      %v4601 = vsub.s32 %v4598, %v4600
      %v4602 = vrot.slane %v4588, %v4601
      %v4603 = vcombine.low %v4538, %v4554
      %v4604 = vcombine.high %v4538, %v4554
      %v4606 = vunpack.c.l.s4 1934713408
      %v4607 = vunpack.c.0.s8 %v4606
      %v4608 = vlaneseq
      %v4609 = vshrl.u32 %v4608, 7
      %v4610 = vsub.s32 %v4607, %v4609
      %v4611 = vrot.slane %v4603, %v4610
      %v4613 = vunpack.c.l.s4 1934713408
      %v4614 = vunpack.c.0.s8 %v4613
      %v4615 = vlaneseq
      %v4616 = vshrl.u32 %v4615, 7
      %v4617 = vsub.s32 %v4614, %v4616
      %v4618 = vrot.slane %v4604, %v4617
      %v4619 = vcombine.low %v4563, %v4579
      %v4620 = vcombine.high %v4563, %v4579
      %v4622 = vunpack.c.l.s4 1934713408
      %v4623 = vunpack.c.0.s8 %v4622
      %v4624 = vlaneseq
      %v4625 = vshrl.u32 %v4624, 7
      %v4626 = vsub.s32 %v4623, %v4625
      %v4627 = vrot.slane %v4619, %v4626
      %v4629 = vunpack.c.l.s4 1934713408
      %v4630 = vunpack.c.0.s8 %v4629
      %v4631 = vlaneseq
      %v4632 = vshrl.u32 %v4631, 7
      %v4633 = vsub.s32 %v4630, %v4632
      %v4634 = vrot.slane %v4620, %v4633
      %v4635 = vcombine.low %v4570, %v4586
      %v4636 = vcombine.high %v4570, %v4586
      %v4638 = vunpack.c.l.s4 1934713408
      %v4639 = vunpack.c.0.s8 %v4638
      %v4640 = vlaneseq
      %v4641 = vshrl.u32 %v4640, 7
      %v4642 = vsub.s32 %v4639, %v4641
      %v4643 = vrot.slane %v4635, %v4642
      %v4645 = vunpack.c.l.s4 1934713408
      %v4646 = vunpack.c.0.s8 %v4645
      %v4647 = vlaneseq
      %v4648 = vshrl.u32 %v4647, 7
      %v4649 = vsub.s32 %v4646, %v4648
      %v4650 = vrot.slane %v4636, %v4649
      %v4651 = vcombine.low %v4595, %v4627
      %v4652 = vcombine.high %v4595, %v4627
      %v4653 = vcombine.low %v4602, %v4634
      %v4654 = vcombine.high %v4602, %v4634
      %v4655 = vcombine.low %v4611, %v4643
      %v4656 = vcombine.high %v4611, %v4643
      %v4657 = vcombine.low %v4618, %v4650
      %v4658 = vcombine.high %v4618, %v4650
      %4661 = vrot.lane.b32.xlu0 %v4516, 4
      %v4662 = vpop.permute.xlu0 %4661
      %4663 = vrot.lane.b32.xlu0 %v4652, 4
      %v4664 = vpop.permute.xlu0 %4663
      %4669 = vrot.lane.b32.xlu0 %v4517, 8
      %v4670 = vpop.permute.xlu0 %4669
      %4671 = vrot.lane.b32.xlu0 %v4653, 8
      %v4672 = vpop.permute.xlu0 %4671
      %4677 = vrot.lane.b32.xlu0 %v4518, 12
      %v4678 = vpop.permute.xlu0 %4677
      %4679 = vrot.lane.b32.xlu0 %v4654, 12
      %v4680 = vpop.permute.xlu0 %4679
      %4685 = vrot.lane.b32.xlu0 %v4519, 16
      %v4686 = vpop.permute.xlu0 %4685
      %4687 = vrot.lane.b32.xlu0 %v4655, 16
      %v4688 = vpop.permute.xlu0 %4687
      %4693 = vrot.lane.b32.xlu0 %v4520, 20
      %v4694 = vpop.permute.xlu0 %4693
      %4695 = vrot.lane.b32.xlu0 %v4656, 20
      %v4696 = vpop.permute.xlu0 %4695
      %4701 = vrot.lane.b32.xlu0 %v4521, 24
      %v4702 = vpop.permute.xlu0 %4701
      %4703 = vrot.lane.b32.xlu0 %v4657, 24
      %v4704 = vpop.permute.xlu0 %4703
      %4709 = vrot.lane.b32.xlu0 %v4522, 28
      %v4710 = vpop.permute.xlu0 %4709
      %4711 = vrot.lane.b32.xlu0 %v4658, 28
      %v4712 = vpop.permute.xlu0 %4711
      %v4715 = vsel %vm794, %v4515, %v4662
      %v4716 = vsel %vm794, %v4651, %v4664
      %vm4717 = vcmask 64512
      %v4718 = vsel %vm4717, %v4715, %v4670
      %v4719 = vsel %vm4717, %v4716, %v4672
      %vm4720 = vcmask 97280
      %v4721 = vsel %vm4720, %v4718, %v4678
      %v4722 = vsel %vm4720, %v4719, %v4680
      %v4723 = vsel %vm3578, %v4721, %v4686
      %v4724 = vsel %vm3578, %v4722, %v4688
      %vm4725 = vcmask 162816
      %v4726 = vsel %vm4725, %v4723, %v4694
      %v4727 = vsel %vm4725, %v4724, %v4696
      %vm4728 = vcmask 195584
      %v4729 = vsel %vm4728, %v4726, %v4702
      %v4730 = vsel %vm4728, %v4727, %v4704
      %vm4731 = vcmask 228352
      %v4732 = vsel %vm4731, %v4729, %v4710
      %v4733 = vsel %vm4731, %v4730, %v4712
      %v4734 = vpack.c.bf16 %v4733, %v4732
      %v4735 = vld [vmem:[%s13] sm:$0xf]
      %v4736 = vld [vmem:[%s13 + $0x4] sm:$0xf]
      %v4737 = vld [vmem:[%s13 + $0x8] sm:$0xf]
      %v4738 = vld [vmem:[%s13 + $0xc] sm:$0xf]
      %v4739 = vld [vmem:[%s14] sm:$0x1]
      %v4741 = vlaneseq
      %v4742 = vshrl.u32 %v4741, 7
      %v4743 = vsub.s32 0, %v4742
      %v4744 = vrot.slane %v4739, %v4743
      %v4750 = vunpack.c.l.b16 %v4735
      %v4751 = vunpack.c.l.b16 %v4736
      %v4752 = vunpack.c.l.b16 %v4737
      %v4753 = vunpack.c.l.b16 %v4738
      %v4754 = vpack.c.b16 %v4751, %v4750
      %v4755 = vpack.c.b16 %v4753, %v4752
      %v4759 = vsel %vm988, %v4734, 0
      %4761 = vmatprep.subr.bf16.mxu0 0
      %4762 = vmatpush1.bf16.msra.mxu0 %v4754
      %4763 = vmatprep.subr.bf16.mxu0 0
      %4764 = vmatpush1.bf16.msra.mxu0 %v4755
      %4765 = vmatprep.subr.bf16.mxu0 0
      %4766 = vmatpush1.bf16.msra.mxu0 0
      %4767 = vmatprep.subr.bf16.mxu0 0
      %4768 = vmatpush1.bf16.msra.mxu0 0
      %4769 = vmatprep.subr.bf16.mxu0 0
      %4770 = vmatpush1.bf16.msra.mxu0 0
      %4771 = vmatprep.subr.bf16.mxu0 0
      %4772 = vmatpush1.bf16.msra.mxu0 0
      %4773 = vmatprep.subr.bf16.mxu0 0
      %4774 = vmatpush1.bf16.msra.mxu0 0
      %4775 = vmatprep.subr.bf16.mxu0 0
      %4776 = vmatpush1.bf16.msra.mxu0 0
      %4777 = vmatprep.subr.bf16.mxu0 0
      %4778 = vmatpush1.bf16.msra.mxu0 0
      %4779 = vmatprep.subr.bf16.mxu0 0
      %4780 = vmatpush1.bf16.msra.mxu0 0
      %4781 = vmatprep.subr.bf16.mxu0 0
      %4782 = vmatpush1.bf16.msra.mxu0 0
      %4783 = vmatprep.subr.bf16.mxu0 0
      %4784 = vmatpush1.bf16.msra.mxu0 0
      %4785 = vmatprep.subr.bf16.mxu0 0
      %4786 = vmatpush1.bf16.msra.mxu0 0
      %4787 = vmatprep.subr.bf16.mxu0 0
      %4788 = vmatpush1.bf16.msra.mxu0 0
      %4789 = vmatprep.subr.bf16.mxu0 0
      %4790 = vmatpush1.bf16.msra.mxu0 0
      %4791 = vmatprep.subr.bf16.mxu0 0
      %4792 = vmatpush1.bf16.msra.mxu0 0
      %4793 = vmatprep.mubr.bf16.mxu0 0
      %4794 = vmatmul.mubr.bf16.gmra.mrb[0].mxu0 %v4759
      %v4795 = vpop.f32.mrb[0].mxu0
      %v4796 = vadd.f32 %v4744, %v4795
      %v4797 = vpop.f32.mrb[0].mxu0
      %v4798 = vpop.f32.mrb[0].mxu0
      %v4799 = vadd.f32 %v4744, %v4798
      %v4800 = vpop.f32.mrb[0].mxu0
      %4801 = vdwg.mxu0
      %v4802 = vadd.f32 %v1214, %v4796
      %v4803 = vadd.f32 %v1215, %v4799
      %v4804 = vrot.slane %v4802, 7
      %v4805 = vrot.slane %v4803, 7
      %v4806 = vsel %vm775, %v4804, %v4805
      %v4807 = vsel %vm775, %v4805, %v4804
      %v4808 = vsel %vm771, 0.0, %v4807
      %v4809 = vsel %vm772, 0.0, %v4806
      %v4810 = vrot.slane %v4802, 1
      %v4811 = vrot.slane %v4803, 1
      %v4812 = vsel %vm784, %v4810, %v4811
      %v4813 = vsel %vm784, %v4811, %v4810
      %v4814 = vsel %vm780, 0.0, %v4812
      %v4815 = vsel %vm781, 0.0, %v4813
      %v4816 = vpack.c.bf16 %v4809, %v4808
      %v4817 = vld [vmem:[%s15] sm:$0xff]
      %v4818 = vld [vmem:[%s15 + $0x8] sm:$0xff]
      %v4819 = vld [vmem:[%s15 + $0x10] sm:$0xff]
      %v4820 = vld [vmem:[%s15 + $0x18] sm:$0xff]
      %v4821 = vpack.c.bf16 %v4803, %v4802
      %s4822 = scalar_lea.vmem %s15, 32
      %v4823 = vld [vmem:[%s4822] sm:$0xff]
      %v4824 = vld [vmem:[%s4822 + $0x8] sm:$0xff]
      %v4825 = vld [vmem:[%s4822 + $0x10] sm:$0xff]
      %v4826 = vld [vmem:[%s4822 + $0x18] sm:$0xff]
      %v4831 = vunpack.c.l.b16 %v4823
      %v4832 = vunpack.c.h.b16 %v4823
      %v4833 = vunpack.c.l.b16 %v4824
      %v4834 = vunpack.c.h.b16 %v4824
      %v4835 = vunpack.c.l.b16 %v4825
      %v4836 = vunpack.c.h.b16 %v4825
      %v4837 = vunpack.c.l.b16 %v4826
      %v4838 = vunpack.c.h.b16 %v4826
      %v4839 = vpack.c.b16 %v4833, %v4831
      %v4840 = vpack.c.b16 %v4834, %v4832
      %v4841 = vpack.c.b16 %v4837, %v4835
      %v4842 = vpack.c.b16 %v4838, %v4836
      %v4848 = vsel %vm988, %v4821, 0
      %4850 = vmatprep.subr.bf16.mxu0 %v4840
      %4851 = vmatpush1.bf16.msra.mxu0 %v4839
      %4852 = vmatprep.subr.bf16.mxu0 %v4842
      %4853 = vmatpush1.bf16.msra.mxu0 %v4841
      %4854 = vmatprep.subr.bf16.mxu0 0
      %4855 = vmatpush1.bf16.msra.mxu0 0
      %4856 = vmatprep.subr.bf16.mxu0 0
      %4857 = vmatpush1.bf16.msra.mxu0 0
      %4858 = vmatprep.subr.bf16.mxu0 0
      %4859 = vmatpush1.bf16.msra.mxu0 0
      %4860 = vmatprep.subr.bf16.mxu0 0
      %4861 = vmatpush1.bf16.msra.mxu0 0
      %4862 = vmatprep.subr.bf16.mxu0 0
      %4863 = vmatpush1.bf16.msra.mxu0 0
      %4864 = vmatprep.subr.bf16.mxu0 0
      %4865 = vmatpush1.bf16.msra.mxu0 0
      %4866 = vmatprep.subr.bf16.mxu0 0
      %4867 = vmatpush1.bf16.msra.mxu0 0
      %4868 = vmatprep.subr.bf16.mxu0 0
      %4869 = vmatpush1.bf16.msra.mxu0 0
      %4870 = vmatprep.subr.bf16.mxu0 0
      %4871 = vmatpush1.bf16.msra.mxu0 0
      %4872 = vmatprep.subr.bf16.mxu0 0
      %4873 = vmatpush1.bf16.msra.mxu0 0
      %4874 = vmatprep.subr.bf16.mxu0 0
      %4875 = vmatpush1.bf16.msra.mxu0 0
      %4876 = vmatprep.subr.bf16.mxu0 0
      %4877 = vmatpush1.bf16.msra.mxu0 0
      %4878 = vmatprep.subr.bf16.mxu0 0
      %4879 = vmatpush1.bf16.msra.mxu0 0
      %4880 = vmatprep.subr.bf16.mxu0 0
      %4881 = vmatpush1.bf16.msra.mxu0 0
      %4882 = vmatprep.mubr.bf16.mxu0 0
      %4883 = vmatmul.mubr.bf16.gmra.mrb[0].mxu0 %v4848
      %v4884 = vpop.f32.mrb[0].mxu0
      %v4885 = vadd.f32 0.0, %v4884
      %v4886 = vpop.f32.mrb[0].mxu0
      %v4887 = vadd.f32 0.0, %v4886
      %v4888 = vpop.f32.mrb[0].mxu0
      %v4889 = vadd.f32 0.0, %v4888
      %v4890 = vpop.f32.mrb[0].mxu0
      %v4891 = vadd.f32 0.0, %v4890
      %4892 = vdwg.mxu0
      %v4897 = vunpack.c.l.b16 %v4817
      %v4898 = vunpack.c.h.b16 %v4817
      %v4899 = vunpack.c.l.b16 %v4818
      %v4900 = vunpack.c.h.b16 %v4818
      %v4901 = vunpack.c.l.b16 %v4819
      %v4902 = vunpack.c.h.b16 %v4819
      %v4903 = vunpack.c.l.b16 %v4820
      %v4904 = vunpack.c.h.b16 %v4820
      %v4905 = vpack.c.b16 %v4899, %v4897
      %v4906 = vpack.c.b16 %v4900, %v4898
      %v4907 = vpack.c.b16 %v4903, %v4901
      %v4908 = vpack.c.b16 %v4904, %v4902
      %v4914 = vsel %vm988, %v4816, 0
      %4916 = vmatprep.subr.bf16.mxu0 %v4906
      %4917 = vmatpush1.bf16.msra.mxu0 %v4905
      %4918 = vmatprep.subr.bf16.mxu0 %v4908
      %4919 = vmatpush1.bf16.msra.mxu0 %v4907
      %4920 = vmatprep.subr.bf16.mxu0 0
      %4921 = vmatpush1.bf16.msra.mxu0 0
      %4922 = vmatprep.subr.bf16.mxu0 0
      %4923 = vmatpush1.bf16.msra.mxu0 0
      %4924 = vmatprep.subr.bf16.mxu0 0
      %4925 = vmatpush1.bf16.msra.mxu0 0
      %4926 = vmatprep.subr.bf16.mxu0 0
      %4927 = vmatpush1.bf16.msra.mxu0 0
      %4928 = vmatprep.subr.bf16.mxu0 0
      %4929 = vmatpush1.bf16.msra.mxu0 0
      %4930 = vmatprep.subr.bf16.mxu0 0
      %4931 = vmatpush1.bf16.msra.mxu0 0
      %4932 = vmatprep.subr.bf16.mxu0 0
      %4933 = vmatpush1.bf16.msra.mxu0 0
      %4934 = vmatprep.subr.bf16.mxu0 0
      %4935 = vmatpush1.bf16.msra.mxu0 0
      %4936 = vmatprep.subr.bf16.mxu0 0
      %4937 = vmatpush1.bf16.msra.mxu0 0
      %4938 = vmatprep.subr.bf16.mxu0 0
      %4939 = vmatpush1.bf16.msra.mxu0 0
      %4940 = vmatprep.subr.bf16.mxu0 0
      %4941 = vmatpush1.bf16.msra.mxu0 0
      %4942 = vmatprep.subr.bf16.mxu0 0
      %4943 = vmatpush1.bf16.msra.mxu0 0
      %4944 = vmatprep.subr.bf16.mxu0 0
      %4945 = vmatpush1.bf16.msra.mxu0 0
      %4946 = vmatprep.subr.bf16.mxu0 0
      %4947 = vmatpush1.bf16.msra.mxu0 0
      %4948 = vmatprep.mubr.bf16.mxu0 0
      %4949 = vmatmul.mubr.bf16.gmra.mrb[0].mxu0 %v4914
      %v4950 = vpop.f32.mrb[0].mxu0
      %v4951 = vadd.f32 %v4885, %v4950
      %v4952 = vpop.f32.mrb[0].mxu0
      %v4953 = vadd.f32 %v4887, %v4952
      %v4954 = vpop.f32.mrb[0].mxu0
      %v4955 = vadd.f32 %v4889, %v4954
      %v4956 = vpop.f32.mrb[0].mxu0
      %v4957 = vadd.f32 %v4891, %v4956
      %4958 = vdwg.mxu0
      %v4959 = vpack.c.bf16 %v4815, %v4814
      %s4960 = scalar_lea.vmem %s15, 64
      %v4961 = vld [vmem:[%s4960] sm:$0xff]
      %v4962 = vld [vmem:[%s4960 + $0x8] sm:$0xff]
      %v4963 = vld [vmem:[%s4960 + $0x10] sm:$0xff]
      %v4964 = vld [vmem:[%s4960 + $0x18] sm:$0xff]
      %v4969 = vunpack.c.l.b16 %v4961
      %v4970 = vunpack.c.h.b16 %v4961
      %v4971 = vunpack.c.l.b16 %v4962
      %v4972 = vunpack.c.h.b16 %v4962
      %v4973 = vunpack.c.l.b16 %v4963
      %v4974 = vunpack.c.h.b16 %v4963
      %v4975 = vunpack.c.l.b16 %v4964
      %v4976 = vunpack.c.h.b16 %v4964
      %v4977 = vpack.c.b16 %v4971, %v4969
      %v4978 = vpack.c.b16 %v4972, %v4970
      %v4979 = vpack.c.b16 %v4975, %v4973
      %v4980 = vpack.c.b16 %v4976, %v4974
      %v4986 = vsel %vm988, %v4959, 0
      %4988 = vmatprep.subr.bf16.mxu0 %v4978
      %4989 = vmatpush1.bf16.msra.mxu0 %v4977
      %4990 = vmatprep.subr.bf16.mxu0 %v4980
      %4991 = vmatpush1.bf16.msra.mxu0 %v4979
      %4992 = vmatprep.subr.bf16.mxu0 0
      %4993 = vmatpush1.bf16.msra.mxu0 0
      %4994 = vmatprep.subr.bf16.mxu0 0
      %4995 = vmatpush1.bf16.msra.mxu0 0
      %4996 = vmatprep.subr.bf16.mxu0 0
      %4997 = vmatpush1.bf16.msra.mxu0 0
      %4998 = vmatprep.subr.bf16.mxu0 0
      %4999 = vmatpush1.bf16.msra.mxu0 0
      %5000 = vmatprep.subr.bf16.mxu0 0
      %5001 = vmatpush1.bf16.msra.mxu0 0
      %5002 = vmatprep.subr.bf16.mxu0 0
      %5003 = vmatpush1.bf16.msra.mxu0 0
      %5004 = vmatprep.subr.bf16.mxu0 0
      %5005 = vmatpush1.bf16.msra.mxu0 0
      %5006 = vmatprep.subr.bf16.mxu0 0
      %5007 = vmatpush1.bf16.msra.mxu0 0
      %5008 = vmatprep.subr.bf16.mxu0 0
      %5009 = vmatpush1.bf16.msra.mxu0 0
      %5010 = vmatprep.subr.bf16.mxu0 0
      %5011 = vmatpush1.bf16.msra.mxu0 0
      %5012 = vmatprep.subr.bf16.mxu0 0
      %5013 = vmatpush1.bf16.msra.mxu0 0
      %5014 = vmatprep.subr.bf16.mxu0 0
      %5015 = vmatpush1.bf16.msra.mxu0 0
      %5016 = vmatprep.subr.bf16.mxu0 0
      %5017 = vmatpush1.bf16.msra.mxu0 0
      %5018 = vmatprep.subr.bf16.mxu0 0
      %5019 = vmatpush1.bf16.msra.mxu0 0
      %5020 = vmatprep.mubr.bf16.mxu0 0
      %5021 = vmatmul.mubr.bf16.gmra.mrb[0].mxu0 %v4986
      %v5022 = vpop.f32.mrb[0].mxu0
      %v5023 = vadd.f32 0.0, %v5022
      %v5024 = vpop.f32.mrb[0].mxu0
      %v5025 = vadd.f32 0.0, %v5024
      %v5026 = vpop.f32.mrb[0].mxu0
      %v5027 = vadd.f32 0.0, %v5026
      %v5028 = vpop.f32.mrb[0].mxu0
      %v5029 = vadd.f32 0.0, %v5028
      %5030 = vdwg.mxu0
      %v5031 = vadd.f32 %v4951, %v5023
      %v5032 = vadd.f32 %v4953, %v5025
      %v5033 = vadd.f32 %v4955, %v5027
      %v5034 = vadd.f32 %v4957, %v5029
      %v5035 = vld [vmem:[%s16] sm:$0x3]
      %v5037 = vlaneseq
      %v5038 = vshrl.u32 %v5037, 7
      %v5039 = vsub.s32 0, %v5038
      %v5040 = vrot.slane %v5035, %v5039
      %v5041 = vlaneseq
      %v5042 = vshrl.u32 %v5041, 7
      %v5043 = vsub.s32 1, %v5042
      %v5044 = vrot.slane %v5035, %v5043
      %v5047 = vadd.f32 %v5031, %v5040
      %v5048 = vadd.f32 %v5032, %v5044
      %v5049 = vadd.f32 %v5033, %v5040
      %v5050 = vadd.f32 %v5034, %v5044
      %v5051 = vmax.f32 %v5047, 0.0
      %v5052 = vmax.f32 %v5048, 0.0
      %v5053 = vmax.f32 %v5049, 0.0
      %v5054 = vmax.f32 %v5050, 0.0
      %v5055 = vrot.slane %v5051, 7
      %v5056 = vrot.slane %v5052, 7
      %v5057 = vrot.slane %v5053, 7
      %v5058 = vrot.slane %v5054, 7
      %v5059 = vsel %vm775, %v5055, %v5057
      %v5060 = vsel %vm775, %v5056, %v5058
      %v5061 = vsel %vm775, %v5057, %v5055
      %v5062 = vsel %vm775, %v5058, %v5056
      %v5063 = vsel %vm771, 0.0, %v5061
      %v5064 = vsel %vm771, 0.0, %v5062
      %v5065 = vsel %vm772, 0.0, %v5059
      %v5066 = vsel %vm772, 0.0, %v5060
      %v5067 = vrot.slane %v5051, 1
      %v5068 = vrot.slane %v5052, 1
      %v5069 = vrot.slane %v5053, 1
      %v5070 = vrot.slane %v5054, 1
      %v5071 = vsel %vm784, %v5067, %v5069
      %v5072 = vsel %vm784, %v5068, %v5070
      %v5073 = vsel %vm784, %v5069, %v5067
      %v5074 = vsel %vm784, %v5070, %v5068
      %v5075 = vsel %vm780, 0.0, %v5071
      %v5076 = vsel %vm780, 0.0, %v5072
      %v5077 = vsel %vm781, 0.0, %v5073
      %v5078 = vsel %vm781, 0.0, %v5074
      %v5079 = vpack.c.bf16 %v5065, %v5063
      %v5080 = vpack.c.bf16 %v5066, %v5064
      %v5081 = vld [vmem:[%s17] sm:$0xf]
      %v5082 = vld [vmem:[%s17 + $0x4] sm:$0xf]
      %v5083 = vld [vmem:[%s17 + $0x8] sm:$0xf]
      %v5084 = vld [vmem:[%s17 + $0xc] sm:$0xf]
      %v5085 = vld [vmem:[%s17 + $0x10] sm:$0xf]
      %v5086 = vld [vmem:[%s17 + $0x14] sm:$0xf]
      %v5087 = vld [vmem:[%s17 + $0x18] sm:$0xf]
      %v5088 = vld [vmem:[%s17 + $0x1c] sm:$0xf]
      %v5089 = vld [vmem:[%s17 + $0x20] sm:$0xf]
      %v5090 = vld [vmem:[%s17 + $0x24] sm:$0xf]
      %v5091 = vld [vmem:[%s17 + $0x28] sm:$0xf]
      %v5092 = vld [vmem:[%s17 + $0x2c] sm:$0xf]
      %v5093 = vld [vmem:[%s17 + $0x30] sm:$0xf]
      %v5094 = vld [vmem:[%s17 + $0x34] sm:$0xf]
      %v5095 = vld [vmem:[%s17 + $0x38] sm:$0xf]
      %v5096 = vld [vmem:[%s17 + $0x3c] sm:$0xf]
      %v5097 = vld [vmem:[%s17 + $0x40] sm:$0xf]
      %v5098 = vld [vmem:[%s17 + $0x44] sm:$0xf]
      %v5099 = vld [vmem:[%s17 + $0x48] sm:$0xf]
      %v5100 = vld [vmem:[%s17 + $0x4c] sm:$0xf]
      %v5101 = vld [vmem:[%s17 + $0x50] sm:$0xf]
      %v5102 = vld [vmem:[%s17 + $0x54] sm:$0xf]
      %v5103 = vld [vmem:[%s17 + $0x58] sm:$0xf]
      %v5104 = vld [vmem:[%s17 + $0x5c] sm:$0xf]
      %v5105 = vld [vmem:[%s17 + $0x60] sm:$0xf]
      %v5106 = vld [vmem:[%s17 + $0x64] sm:$0xf]
      %v5107 = vld [vmem:[%s17 + $0x68] sm:$0xf]
      %v5108 = vld [vmem:[%s17 + $0x6c] sm:$0xf]
      %v5109 = vld [vmem:[%s17 + $0x70] sm:$0xf]
      %v5110 = vld [vmem:[%s17 + $0x74] sm:$0xf]
      %v5111 = vld [vmem:[%s17 + $0x78] sm:$0xf]
      %v5112 = vld [vmem:[%s17 + $0x7c] sm:$0xf]
      %v5113 = vpack.c.bf16 %v5053, %v5051
      %v5114 = vpack.c.bf16 %v5054, %v5052
      %s5115 = scalar_lea.vmem %s17, 128
      %v5116 = vld [vmem:[%s5115] sm:$0xf]
      %v5117 = vld [vmem:[%s5115 + $0x4] sm:$0xf]
      %v5118 = vld [vmem:[%s5115 + $0x8] sm:$0xf]
      %v5119 = vld [vmem:[%s5115 + $0xc] sm:$0xf]
      %v5120 = vld [vmem:[%s5115 + $0x10] sm:$0xf]
      %v5121 = vld [vmem:[%s5115 + $0x14] sm:$0xf]
      %v5122 = vld [vmem:[%s5115 + $0x18] sm:$0xf]
      %v5123 = vld [vmem:[%s5115 + $0x1c] sm:$0xf]
      %v5124 = vld [vmem:[%s5115 + $0x20] sm:$0xf]
      %v5125 = vld [vmem:[%s5115 + $0x24] sm:$0xf]
      %v5126 = vld [vmem:[%s5115 + $0x28] sm:$0xf]
      %v5127 = vld [vmem:[%s5115 + $0x2c] sm:$0xf]
      %v5128 = vld [vmem:[%s5115 + $0x30] sm:$0xf]
      %v5129 = vld [vmem:[%s5115 + $0x34] sm:$0xf]
      %v5130 = vld [vmem:[%s5115 + $0x38] sm:$0xf]
      %v5131 = vld [vmem:[%s5115 + $0x3c] sm:$0xf]
      %v5132 = vld [vmem:[%s5115 + $0x40] sm:$0xf]
      %v5133 = vld [vmem:[%s5115 + $0x44] sm:$0xf]
      %v5134 = vld [vmem:[%s5115 + $0x48] sm:$0xf]
      %v5135 = vld [vmem:[%s5115 + $0x4c] sm:$0xf]
      %v5136 = vld [vmem:[%s5115 + $0x50] sm:$0xf]
      %v5137 = vld [vmem:[%s5115 + $0x54] sm:$0xf]
      %v5138 = vld [vmem:[%s5115 + $0x58] sm:$0xf]
      %v5139 = vld [vmem:[%s5115 + $0x5c] sm:$0xf]
      %v5140 = vld [vmem:[%s5115 + $0x60] sm:$0xf]
      %v5141 = vld [vmem:[%s5115 + $0x64] sm:$0xf]
      %v5142 = vld [vmem:[%s5115 + $0x68] sm:$0xf]
      %v5143 = vld [vmem:[%s5115 + $0x6c] sm:$0xf]
      %v5144 = vld [vmem:[%s5115 + $0x70] sm:$0xf]
      %v5145 = vld [vmem:[%s5115 + $0x74] sm:$0xf]
      %v5146 = vld [vmem:[%s5115 + $0x78] sm:$0xf]
      %v5147 = vld [vmem:[%s5115 + $0x7c] sm:$0xf]
      %v5180 = vunpack.c.l.b16 %v5116
      %v5181 = vunpack.c.l.b16 %v5117
      %v5182 = vunpack.c.l.b16 %v5118
      %v5183 = vunpack.c.l.b16 %v5119
      %v5184 = vunpack.c.l.b16 %v5120
      %v5185 = vunpack.c.l.b16 %v5121
      %v5186 = vunpack.c.l.b16 %v5122
      %v5187 = vunpack.c.l.b16 %v5123
      %v5188 = vunpack.c.l.b16 %v5124
      %v5189 = vunpack.c.l.b16 %v5125
      %v5190 = vunpack.c.l.b16 %v5126
      %v5191 = vunpack.c.l.b16 %v5127
      %v5192 = vunpack.c.l.b16 %v5128
      %v5193 = vunpack.c.l.b16 %v5129
      %v5194 = vunpack.c.l.b16 %v5130
      %v5195 = vunpack.c.l.b16 %v5131
      %v5196 = vunpack.c.l.b16 %v5132
      %v5197 = vunpack.c.l.b16 %v5133
      %v5198 = vunpack.c.l.b16 %v5134
      %v5199 = vunpack.c.l.b16 %v5135
      %v5200 = vunpack.c.l.b16 %v5136
      %v5201 = vunpack.c.l.b16 %v5137
      %v5202 = vunpack.c.l.b16 %v5138
      %v5203 = vunpack.c.l.b16 %v5139
      %v5204 = vunpack.c.l.b16 %v5140
      %v5205 = vunpack.c.l.b16 %v5141
      %v5206 = vunpack.c.l.b16 %v5142
      %v5207 = vunpack.c.l.b16 %v5143
      %v5208 = vunpack.c.l.b16 %v5144
      %v5209 = vunpack.c.l.b16 %v5145
      %v5210 = vunpack.c.l.b16 %v5146
      %v5211 = vunpack.c.l.b16 %v5147
      %v5212 = vpack.c.b16 %v5181, %v5180
      %v5213 = vpack.c.b16 %v5183, %v5182
      %v5214 = vpack.c.b16 %v5185, %v5184
      %v5215 = vpack.c.b16 %v5187, %v5186
      %v5216 = vpack.c.b16 %v5189, %v5188
      %v5217 = vpack.c.b16 %v5191, %v5190
      %v5218 = vpack.c.b16 %v5193, %v5192
      %v5219 = vpack.c.b16 %v5195, %v5194
      %v5220 = vpack.c.b16 %v5197, %v5196
      %v5221 = vpack.c.b16 %v5199, %v5198
      %v5222 = vpack.c.b16 %v5201, %v5200
      %v5223 = vpack.c.b16 %v5203, %v5202
      %v5224 = vpack.c.b16 %v5205, %v5204
      %v5225 = vpack.c.b16 %v5207, %v5206
      %v5226 = vpack.c.b16 %v5209, %v5208
      %v5227 = vpack.c.b16 %v5211, %v5210
      %5244 = vmatprep.subr.bf16.mxu0 0
      %5245 = vmatpush1.bf16.msra.mxu0 %v5212
      %5246 = vmatprep.subr.bf16.mxu0 0
      %5247 = vmatpush1.bf16.msra.mxu0 %v5213
      %5248 = vmatprep.subr.bf16.mxu0 0
      %5249 = vmatpush1.bf16.msra.mxu0 %v5214
      %5250 = vmatprep.subr.bf16.mxu0 0
      %5251 = vmatpush1.bf16.msra.mxu0 %v5215
      %5252 = vmatprep.subr.bf16.mxu0 0
      %5253 = vmatpush1.bf16.msra.mxu0 %v5216
      %5254 = vmatprep.subr.bf16.mxu0 0
      %5255 = vmatpush1.bf16.msra.mxu0 %v5217
      %5256 = vmatprep.subr.bf16.mxu0 0
      %5257 = vmatpush1.bf16.msra.mxu0 %v5218
      %5258 = vmatprep.subr.bf16.mxu0 0
      %5259 = vmatpush1.bf16.msra.mxu0 %v5219
      %5260 = vmatprep.subr.bf16.mxu0 0
      %5261 = vmatpush1.bf16.msra.mxu0 %v5220
      %5262 = vmatprep.subr.bf16.mxu0 0
      %5263 = vmatpush1.bf16.msra.mxu0 %v5221
      %5264 = vmatprep.subr.bf16.mxu0 0
      %5265 = vmatpush1.bf16.msra.mxu0 %v5222
      %5266 = vmatprep.subr.bf16.mxu0 0
      %5267 = vmatpush1.bf16.msra.mxu0 %v5223
      %5268 = vmatprep.subr.bf16.mxu0 0
      %5269 = vmatpush1.bf16.msra.mxu0 %v5224
      %5270 = vmatprep.subr.bf16.mxu0 0
      %5271 = vmatpush1.bf16.msra.mxu0 %v5225
      %5272 = vmatprep.subr.bf16.mxu0 0
      %5273 = vmatpush1.bf16.msra.mxu0 %v5226
      %5274 = vmatprep.subr.bf16.mxu0 0
      %5275 = vmatpush1.bf16.msra.mxu0 %v5227
      %5276 = vmatprep.mubr.bf16.mxu0 %v5114
      %5277 = vmatmul.mubr.bf16.gmra.mrb[0].mxu0 %v5113
      %v5278 = vpop.f32.mrb[0].mxu0
      %v5279 = vadd.f32 0.0, %v5278
      %v5280 = vpop.f32.mrb[0].mxu0
      %v5281 = vpop.f32.mrb[0].mxu0
      %v5282 = vadd.f32 0.0, %v5281
      %v5283 = vpop.f32.mrb[0].mxu0
      %5284 = vdwg.mxu0
      %v5317 = vunpack.c.l.b16 %v5081
      %v5318 = vunpack.c.l.b16 %v5082
      %v5319 = vunpack.c.l.b16 %v5083
      %v5320 = vunpack.c.l.b16 %v5084
      %v5321 = vunpack.c.l.b16 %v5085
      %v5322 = vunpack.c.l.b16 %v5086
      %v5323 = vunpack.c.l.b16 %v5087
      %v5324 = vunpack.c.l.b16 %v5088
      %v5325 = vunpack.c.l.b16 %v5089
      %v5326 = vunpack.c.l.b16 %v5090
      %v5327 = vunpack.c.l.b16 %v5091
      %v5328 = vunpack.c.l.b16 %v5092
      %v5329 = vunpack.c.l.b16 %v5093
      %v5330 = vunpack.c.l.b16 %v5094
      %v5331 = vunpack.c.l.b16 %v5095
      %v5332 = vunpack.c.l.b16 %v5096
      %v5333 = vunpack.c.l.b16 %v5097
      %v5334 = vunpack.c.l.b16 %v5098
      %v5335 = vunpack.c.l.b16 %v5099
      %v5336 = vunpack.c.l.b16 %v5100
      %v5337 = vunpack.c.l.b16 %v5101
      %v5338 = vunpack.c.l.b16 %v5102
      %v5339 = vunpack.c.l.b16 %v5103
      %v5340 = vunpack.c.l.b16 %v5104
      %v5341 = vunpack.c.l.b16 %v5105
      %v5342 = vunpack.c.l.b16 %v5106
      %v5343 = vunpack.c.l.b16 %v5107
      %v5344 = vunpack.c.l.b16 %v5108
      %v5345 = vunpack.c.l.b16 %v5109
      %v5346 = vunpack.c.l.b16 %v5110
      %v5347 = vunpack.c.l.b16 %v5111
      %v5348 = vunpack.c.l.b16 %v5112
      %v5349 = vpack.c.b16 %v5318, %v5317
      %v5350 = vpack.c.b16 %v5320, %v5319
      %v5351 = vpack.c.b16 %v5322, %v5321
      %v5352 = vpack.c.b16 %v5324, %v5323
      %v5353 = vpack.c.b16 %v5326, %v5325
      %v5354 = vpack.c.b16 %v5328, %v5327
      %v5355 = vpack.c.b16 %v5330, %v5329
      %v5356 = vpack.c.b16 %v5332, %v5331
      %v5357 = vpack.c.b16 %v5334, %v5333
      %v5358 = vpack.c.b16 %v5336, %v5335
      %v5359 = vpack.c.b16 %v5338, %v5337
      %v5360 = vpack.c.b16 %v5340, %v5339
      %v5361 = vpack.c.b16 %v5342, %v5341
      %v5362 = vpack.c.b16 %v5344, %v5343
      %v5363 = vpack.c.b16 %v5346, %v5345
      %v5364 = vpack.c.b16 %v5348, %v5347
      %5381 = vmatprep.subr.bf16.mxu0 0
      %5382 = vmatpush1.bf16.msra.mxu0 %v5349
      %5383 = vmatprep.subr.bf16.mxu0 0
      %5384 = vmatpush1.bf16.msra.mxu0 %v5350
      %5385 = vmatprep.subr.bf16.mxu0 0
      %5386 = vmatpush1.bf16.msra.mxu0 %v5351
      %5387 = vmatprep.subr.bf16.mxu0 0
      %5388 = vmatpush1.bf16.msra.mxu0 %v5352
      %5389 = vmatprep.subr.bf16.mxu0 0
      %5390 = vmatpush1.bf16.msra.mxu0 %v5353
      %5391 = vmatprep.subr.bf16.mxu0 0
      %5392 = vmatpush1.bf16.msra.mxu0 %v5354
      %5393 = vmatprep.subr.bf16.mxu0 0
      %5394 = vmatpush1.bf16.msra.mxu0 %v5355
      %5395 = vmatprep.subr.bf16.mxu0 0
      %5396 = vmatpush1.bf16.msra.mxu0 %v5356
      %5397 = vmatprep.subr.bf16.mxu0 0
      %5398 = vmatpush1.bf16.msra.mxu0 %v5357
      %5399 = vmatprep.subr.bf16.mxu0 0
      %5400 = vmatpush1.bf16.msra.mxu0 %v5358
      %5401 = vmatprep.subr.bf16.mxu0 0
      %5402 = vmatpush1.bf16.msra.mxu0 %v5359
      %5403 = vmatprep.subr.bf16.mxu0 0
      %5404 = vmatpush1.bf16.msra.mxu0 %v5360
      %5405 = vmatprep.subr.bf16.mxu0 0
      %5406 = vmatpush1.bf16.msra.mxu0 %v5361
      %5407 = vmatprep.subr.bf16.mxu0 0
      %5408 = vmatpush1.bf16.msra.mxu0 %v5362
      %5409 = vmatprep.subr.bf16.mxu0 0
      %5410 = vmatpush1.bf16.msra.mxu0 %v5363
      %5411 = vmatprep.subr.bf16.mxu0 0
      %5412 = vmatpush1.bf16.msra.mxu0 %v5364
      %5413 = vmatprep.mubr.bf16.mxu0 %v5080
      %5414 = vmatmul.mubr.bf16.gmra.mrb[0].mxu0 %v5079
      %v5415 = vpop.f32.mrb[0].mxu0
      %v5416 = vadd.f32 %v5279, %v5415
      %v5417 = vpop.f32.mrb[0].mxu0
      %v5418 = vpop.f32.mrb[0].mxu0
      %v5419 = vadd.f32 %v5282, %v5418
      %v5420 = vpop.f32.mrb[0].mxu0
      %5421 = vdwg.mxu0
      %v5422 = vpack.c.bf16 %v5077, %v5075
      %v5423 = vpack.c.bf16 %v5078, %v5076
      %s5424 = scalar_lea.vmem %s17, 256
      %v5425 = vld [vmem:[%s5424] sm:$0xf]
      %v5426 = vld [vmem:[%s5424 + $0x4] sm:$0xf]
      %v5427 = vld [vmem:[%s5424 + $0x8] sm:$0xf]
      %v5428 = vld [vmem:[%s5424 + $0xc] sm:$0xf]
      %v5429 = vld [vmem:[%s5424 + $0x10] sm:$0xf]
      %v5430 = vld [vmem:[%s5424 + $0x14] sm:$0xf]
      %v5431 = vld [vmem:[%s5424 + $0x18] sm:$0xf]
      %v5432 = vld [vmem:[%s5424 + $0x1c] sm:$0xf]
      %v5433 = vld [vmem:[%s5424 + $0x20] sm:$0xf]
      %v5434 = vld [vmem:[%s5424 + $0x24] sm:$0xf]
      %v5435 = vld [vmem:[%s5424 + $0x28] sm:$0xf]
      %v5436 = vld [vmem:[%s5424 + $0x2c] sm:$0xf]
      %v5437 = vld [vmem:[%s5424 + $0x30] sm:$0xf]
      %v5438 = vld [vmem:[%s5424 + $0x34] sm:$0xf]
      %v5439 = vld [vmem:[%s5424 + $0x38] sm:$0xf]
      %v5440 = vld [vmem:[%s5424 + $0x3c] sm:$0xf]
      %v5441 = vld [vmem:[%s5424 + $0x40] sm:$0xf]
      %v5442 = vld [vmem:[%s5424 + $0x44] sm:$0xf]
      %v5443 = vld [vmem:[%s5424 + $0x48] sm:$0xf]
      %v5444 = vld [vmem:[%s5424 + $0x4c] sm:$0xf]
      %v5445 = vld [vmem:[%s5424 + $0x50] sm:$0xf]
      %v5446 = vld [vmem:[%s5424 + $0x54] sm:$0xf]
      %v5447 = vld [vmem:[%s5424 + $0x58] sm:$0xf]
      %v5448 = vld [vmem:[%s5424 + $0x5c] sm:$0xf]
      %v5449 = vld [vmem:[%s5424 + $0x60] sm:$0xf]
      %v5450 = vld [vmem:[%s5424 + $0x64] sm:$0xf]
      %v5451 = vld [vmem:[%s5424 + $0x68] sm:$0xf]
      %v5452 = vld [vmem:[%s5424 + $0x6c] sm:$0xf]
      %v5453 = vld [vmem:[%s5424 + $0x70] sm:$0xf]
      %v5454 = vld [vmem:[%s5424 + $0x74] sm:$0xf]
      %v5455 = vld [vmem:[%s5424 + $0x78] sm:$0xf]
      %v5456 = vld [vmem:[%s5424 + $0x7c] sm:$0xf]
      %v5489 = vunpack.c.l.b16 %v5425
      %v5490 = vunpack.c.l.b16 %v5426
      %v5491 = vunpack.c.l.b16 %v5427
      %v5492 = vunpack.c.l.b16 %v5428
      %v5493 = vunpack.c.l.b16 %v5429
      %v5494 = vunpack.c.l.b16 %v5430
      %v5495 = vunpack.c.l.b16 %v5431
      %v5496 = vunpack.c.l.b16 %v5432
      %v5497 = vunpack.c.l.b16 %v5433
      %v5498 = vunpack.c.l.b16 %v5434
      %v5499 = vunpack.c.l.b16 %v5435
      %v5500 = vunpack.c.l.b16 %v5436
      %v5501 = vunpack.c.l.b16 %v5437
      %v5502 = vunpack.c.l.b16 %v5438
      %v5503 = vunpack.c.l.b16 %v5439
      %v5504 = vunpack.c.l.b16 %v5440
      %v5505 = vunpack.c.l.b16 %v5441
      %v5506 = vunpack.c.l.b16 %v5442
      %v5507 = vunpack.c.l.b16 %v5443
      %v5508 = vunpack.c.l.b16 %v5444
      %v5509 = vunpack.c.l.b16 %v5445
      %v5510 = vunpack.c.l.b16 %v5446
      %v5511 = vunpack.c.l.b16 %v5447
      %v5512 = vunpack.c.l.b16 %v5448
      %v5513 = vunpack.c.l.b16 %v5449
      %v5514 = vunpack.c.l.b16 %v5450
      %v5515 = vunpack.c.l.b16 %v5451
      %v5516 = vunpack.c.l.b16 %v5452
      %v5517 = vunpack.c.l.b16 %v5453
      %v5518 = vunpack.c.l.b16 %v5454
      %v5519 = vunpack.c.l.b16 %v5455
      %v5520 = vunpack.c.l.b16 %v5456
      %v5521 = vpack.c.b16 %v5490, %v5489
      %v5522 = vpack.c.b16 %v5492, %v5491
      %v5523 = vpack.c.b16 %v5494, %v5493
      %v5524 = vpack.c.b16 %v5496, %v5495
      %v5525 = vpack.c.b16 %v5498, %v5497
      %v5526 = vpack.c.b16 %v5500, %v5499
      %v5527 = vpack.c.b16 %v5502, %v5501
      %v5528 = vpack.c.b16 %v5504, %v5503
      %v5529 = vpack.c.b16 %v5506, %v5505
      %v5530 = vpack.c.b16 %v5508, %v5507
      %v5531 = vpack.c.b16 %v5510, %v5509
      %v5532 = vpack.c.b16 %v5512, %v5511
      %v5533 = vpack.c.b16 %v5514, %v5513
      %v5534 = vpack.c.b16 %v5516, %v5515
      %v5535 = vpack.c.b16 %v5518, %v5517
      %v5536 = vpack.c.b16 %v5520, %v5519
      %5553 = vmatprep.subr.bf16.mxu0 0
      %5554 = vmatpush1.bf16.msra.mxu0 %v5521
      %5555 = vmatprep.subr.bf16.mxu0 0
      %5556 = vmatpush1.bf16.msra.mxu0 %v5522
      %5557 = vmatprep.subr.bf16.mxu0 0
      %5558 = vmatpush1.bf16.msra.mxu0 %v5523
      %5559 = vmatprep.subr.bf16.mxu0 0
      %5560 = vmatpush1.bf16.msra.mxu0 %v5524
      %5561 = vmatprep.subr.bf16.mxu0 0
      %5562 = vmatpush1.bf16.msra.mxu0 %v5525
      %5563 = vmatprep.subr.bf16.mxu0 0
      %5564 = vmatpush1.bf16.msra.mxu0 %v5526
      %5565 = vmatprep.subr.bf16.mxu0 0
      %5566 = vmatpush1.bf16.msra.mxu0 %v5527
      %5567 = vmatprep.subr.bf16.mxu0 0
      %5568 = vmatpush1.bf16.msra.mxu0 %v5528
      %5569 = vmatprep.subr.bf16.mxu0 0
      %5570 = vmatpush1.bf16.msra.mxu0 %v5529
      %5571 = vmatprep.subr.bf16.mxu0 0
      %5572 = vmatpush1.bf16.msra.mxu0 %v5530
      %5573 = vmatprep.subr.bf16.mxu0 0
      %5574 = vmatpush1.bf16.msra.mxu0 %v5531
      %5575 = vmatprep.subr.bf16.mxu0 0
      %5576 = vmatpush1.bf16.msra.mxu0 %v5532
      %5577 = vmatprep.subr.bf16.mxu0 0
      %5578 = vmatpush1.bf16.msra.mxu0 %v5533
      %5579 = vmatprep.subr.bf16.mxu0 0
      %5580 = vmatpush1.bf16.msra.mxu0 %v5534
      %5581 = vmatprep.subr.bf16.mxu0 0
      %5582 = vmatpush1.bf16.msra.mxu0 %v5535
      %5583 = vmatprep.subr.bf16.mxu0 0
      %5584 = vmatpush1.bf16.msra.mxu0 %v5536
      %5585 = vmatprep.mubr.bf16.mxu0 %v5423
      %5586 = vmatmul.mubr.bf16.gmra.mrb[0].mxu0 %v5422
      %v5587 = vpop.f32.mrb[0].mxu0
      %v5588 = vadd.f32 0.0, %v5587
      %v5589 = vpop.f32.mrb[0].mxu0
      %v5590 = vpop.f32.mrb[0].mxu0
      %v5591 = vadd.f32 0.0, %v5590
      %v5592 = vpop.f32.mrb[0].mxu0
      %5593 = vdwg.mxu0
      %v5594 = vadd.f32 %v5416, %v5588
      %v5595 = vadd.f32 %v5419, %v5591
      %v5596 = vld [vmem:[%s18] sm:$0x1]
      %v5598 = vlaneseq
      %v5599 = vshrl.u32 %v5598, 7
      %v5600 = vsub.s32 0, %v5599
      %v5601 = vrot.slane %v5596, %v5600
      %v5603 = vadd.f32 %v5594, %v5601
      %v5604 = vadd.f32 %v5595, %v5601
      %v5605 = vadd.f32 %v4802, %v5603
      %v5606 = vadd.f32 %v4803, %v5604
      %v5607 = vrot.slane %v5605, 7
      %v5608 = vrot.slane %v5606, 7
      %v5609 = vsel %vm775, %v5607, %v5608
      %v5610 = vsel %vm775, %v5608, %v5607
      %v5611 = vsel %vm771, 0.0, %v5610
      %v5612 = vsel %vm772, 0.0, %v5609
      %v5613 = vrot.slane %v5605, 1
      %v5614 = vrot.slane %v5606, 1
      %v5615 = vsel %vm784, %v5613, %v5614
      %v5616 = vsel %vm784, %v5614, %v5613
      %v5617 = vsel %vm780, 0.0, %v5615
      %v5618 = vsel %vm781, 0.0, %v5616
      %v5619 = vpack.c.bf16 %v5612, %v5611
      %v5620 = vld [vmem:[%s19] sm:$0xf]
      %v5621 = vld [vmem:[%s19 + $0x4] sm:$0xf]
      %v5622 = vld [vmem:[%s19 + $0x8] sm:$0xf]
      %v5623 = vld [vmem:[%s19 + $0xc] sm:$0xf]
      %v5624 = vpack.c.bf16 %v5606, %v5605
      %s5625 = scalar_lea.vmem %s19, 16
      %v5626 = vld [vmem:[%s5625] sm:$0xf]
      %v5627 = vld [vmem:[%s5625 + $0x4] sm:$0xf]
      %v5628 = vld [vmem:[%s5625 + $0x8] sm:$0xf]
      %v5629 = vld [vmem:[%s5625 + $0xc] sm:$0xf]
      %v5634 = vunpack.c.l.b16 %v5626
      %v5635 = vunpack.c.l.b16 %v5627
      %v5636 = vunpack.c.l.b16 %v5628
      %v5637 = vunpack.c.l.b16 %v5629
      %v5638 = vpack.c.b16 %v5635, %v5634
      %v5639 = vpack.c.b16 %v5637, %v5636
      %v5643 = vsel %vm988, %v5624, 0
      %5645 = vmatprep.subr.bf16.mxu0 0
      %5646 = vmatpush1.bf16.msra.mxu0 %v5638
      %5647 = vmatprep.subr.bf16.mxu0 0
      %5648 = vmatpush1.bf16.msra.mxu0 %v5639
      %5649 = vmatprep.subr.bf16.mxu0 0
      %5650 = vmatpush1.bf16.msra.mxu0 0
      %5651 = vmatprep.subr.bf16.mxu0 0
      %5652 = vmatpush1.bf16.msra.mxu0 0
      %5653 = vmatprep.subr.bf16.mxu0 0
      %5654 = vmatpush1.bf16.msra.mxu0 0
      %5655 = vmatprep.subr.bf16.mxu0 0
      %5656 = vmatpush1.bf16.msra.mxu0 0
      %5657 = vmatprep.subr.bf16.mxu0 0
      %5658 = vmatpush1.bf16.msra.mxu0 0
      %5659 = vmatprep.subr.bf16.mxu0 0
      %5660 = vmatpush1.bf16.msra.mxu0 0
      %5661 = vmatprep.subr.bf16.mxu0 0
      %5662 = vmatpush1.bf16.msra.mxu0 0
      %5663 = vmatprep.subr.bf16.mxu0 0
      %5664 = vmatpush1.bf16.msra.mxu0 0
      %5665 = vmatprep.subr.bf16.mxu0 0
      %5666 = vmatpush1.bf16.msra.mxu0 0
      %5667 = vmatprep.subr.bf16.mxu0 0
      %5668 = vmatpush1.bf16.msra.mxu0 0
      %5669 = vmatprep.subr.bf16.mxu0 0
      %5670 = vmatpush1.bf16.msra.mxu0 0
      %5671 = vmatprep.subr.bf16.mxu0 0
      %5672 = vmatpush1.bf16.msra.mxu0 0
      %5673 = vmatprep.subr.bf16.mxu0 0
      %5674 = vmatpush1.bf16.msra.mxu0 0
      %5675 = vmatprep.subr.bf16.mxu0 0
      %5676 = vmatpush1.bf16.msra.mxu0 0
      %5677 = vmatprep.mubr.bf16.mxu0 0
      %5678 = vmatmul.mubr.bf16.gmra.mrb[0].mxu0 %v5643
      %v5679 = vpop.f32.mrb[0].mxu0
      %v5680 = vadd.f32 0.0, %v5679
      %v5681 = vpop.f32.mrb[0].mxu0
      %v5682 = vpop.f32.mrb[0].mxu0
      %v5683 = vadd.f32 0.0, %v5682
      %v5684 = vpop.f32.mrb[0].mxu0
      %5685 = vdwg.mxu0
      %v5690 = vunpack.c.l.b16 %v5620
      %v5691 = vunpack.c.l.b16 %v5621
      %v5692 = vunpack.c.l.b16 %v5622
      %v5693 = vunpack.c.l.b16 %v5623
      %v5694 = vpack.c.b16 %v5691, %v5690
      %v5695 = vpack.c.b16 %v5693, %v5692
      %v5699 = vsel %vm988, %v5619, 0
      %5701 = vmatprep.subr.bf16.mxu0 0
      %5702 = vmatpush1.bf16.msra.mxu0 %v5694
      %5703 = vmatprep.subr.bf16.mxu0 0
      %5704 = vmatpush1.bf16.msra.mxu0 %v5695
      %5705 = vmatprep.subr.bf16.mxu0 0
      %5706 = vmatpush1.bf16.msra.mxu0 0
      %5707 = vmatprep.subr.bf16.mxu0 0
      %5708 = vmatpush1.bf16.msra.mxu0 0
      %5709 = vmatprep.subr.bf16.mxu0 0
      %5710 = vmatpush1.bf16.msra.mxu0 0
      %5711 = vmatprep.subr.bf16.mxu0 0
      %5712 = vmatpush1.bf16.msra.mxu0 0
      %5713 = vmatprep.subr.bf16.mxu0 0
      %5714 = vmatpush1.bf16.msra.mxu0 0
      %5715 = vmatprep.subr.bf16.mxu0 0
      %5716 = vmatpush1.bf16.msra.mxu0 0
      %5717 = vmatprep.subr.bf16.mxu0 0
      %5718 = vmatpush1.bf16.msra.mxu0 0
      %5719 = vmatprep.subr.bf16.mxu0 0
      %5720 = vmatpush1.bf16.msra.mxu0 0
      %5721 = vmatprep.subr.bf16.mxu0 0
      %5722 = vmatpush1.bf16.msra.mxu0 0
      %5723 = vmatprep.subr.bf16.mxu0 0
      %5724 = vmatpush1.bf16.msra.mxu0 0
      %5725 = vmatprep.subr.bf16.mxu0 0
      %5726 = vmatpush1.bf16.msra.mxu0 0
      %5727 = vmatprep.subr.bf16.mxu0 0
      %5728 = vmatpush1.bf16.msra.mxu0 0
      %5729 = vmatprep.subr.bf16.mxu0 0
      %5730 = vmatpush1.bf16.msra.mxu0 0
      %5731 = vmatprep.subr.bf16.mxu0 0
      %5732 = vmatpush1.bf16.msra.mxu0 0
      %5733 = vmatprep.mubr.bf16.mxu0 0
      %5734 = vmatmul.mubr.bf16.gmra.mrb[0].mxu0 %v5699
      %v5735 = vpop.f32.mrb[0].mxu0
      %v5736 = vadd.f32 %v5680, %v5735
      %v5737 = vpop.f32.mrb[0].mxu0
      %v5738 = vpop.f32.mrb[0].mxu0
      %v5739 = vadd.f32 %v5683, %v5738
      %v5740 = vpop.f32.mrb[0].mxu0
      %5741 = vdwg.mxu0
      %v5742 = vpack.c.bf16 %v5618, %v5617
      %s5743 = scalar_lea.vmem %s19, 32
      %v5744 = vld [vmem:[%s5743] sm:$0xf]
      %v5745 = vld [vmem:[%s5743 + $0x4] sm:$0xf]
      %v5746 = vld [vmem:[%s5743 + $0x8] sm:$0xf]
      %v5747 = vld [vmem:[%s5743 + $0xc] sm:$0xf]
      %v5752 = vunpack.c.l.b16 %v5744
      %v5753 = vunpack.c.l.b16 %v5745
      %v5754 = vunpack.c.l.b16 %v5746
      %v5755 = vunpack.c.l.b16 %v5747
      %v5756 = vpack.c.b16 %v5753, %v5752
      %v5757 = vpack.c.b16 %v5755, %v5754
      %v5761 = vsel %vm988, %v5742, 0
      %5763 = vmatprep.subr.bf16.mxu0 0
      %5764 = vmatpush1.bf16.msra.mxu0 %v5756
      %5765 = vmatprep.subr.bf16.mxu0 0
      %5766 = vmatpush1.bf16.msra.mxu0 %v5757
      %5767 = vmatprep.subr.bf16.mxu0 0
      %5768 = vmatpush1.bf16.msra.mxu0 0
      %5769 = vmatprep.subr.bf16.mxu0 0
      %5770 = vmatpush1.bf16.msra.mxu0 0
      %5771 = vmatprep.subr.bf16.mxu0 0
      %5772 = vmatpush1.bf16.msra.mxu0 0
      %5773 = vmatprep.subr.bf16.mxu0 0
      %5774 = vmatpush1.bf16.msra.mxu0 0
      %5775 = vmatprep.subr.bf16.mxu0 0
      %5776 = vmatpush1.bf16.msra.mxu0 0
      %5777 = vmatprep.subr.bf16.mxu0 0
      %5778 = vmatpush1.bf16.msra.mxu0 0
      %5779 = vmatprep.subr.bf16.mxu0 0
      %5780 = vmatpush1.bf16.msra.mxu0 0
      %5781 = vmatprep.subr.bf16.mxu0 0
      %5782 = vmatpush1.bf16.msra.mxu0 0
      %5783 = vmatprep.subr.bf16.mxu0 0
      %5784 = vmatpush1.bf16.msra.mxu0 0
      %5785 = vmatprep.subr.bf16.mxu0 0
      %5786 = vmatpush1.bf16.msra.mxu0 0
      %5787 = vmatprep.subr.bf16.mxu0 0
      %5788 = vmatpush1.bf16.msra.mxu0 0
      %5789 = vmatprep.subr.bf16.mxu0 0
      %5790 = vmatpush1.bf16.msra.mxu0 0
      %5791 = vmatprep.subr.bf16.mxu0 0
      %5792 = vmatpush1.bf16.msra.mxu0 0
      %5793 = vmatprep.subr.bf16.mxu0 0
      %5794 = vmatpush1.bf16.msra.mxu0 0
      %5795 = vmatprep.mubr.bf16.mxu0 0
      %5796 = vmatmul.mubr.bf16.gmra.mrb[0].mxu0 %v5761
      %v5797 = vpop.f32.mrb[0].mxu0
      %v5798 = vadd.f32 0.0, %v5797
      %v5799 = vpop.f32.mrb[0].mxu0
      %v5800 = vpop.f32.mrb[0].mxu0
      %v5801 = vadd.f32 0.0, %v5800
      %v5802 = vpop.f32.mrb[0].mxu0
      %5803 = vdwg.mxu0
      %v5804 = vadd.f32 %v5736, %v5798
      %v5805 = vadd.f32 %v5739, %v5801
      %v5806 = vld [vmem:[%s20] sm:$0x1]
      %v5808 = vlaneseq
      %v5809 = vshrl.u32 %v5808, 7
      %v5810 = vsub.s32 0, %v5809
      %v5811 = vrot.slane %v5806, %v5810
      %v5813 = vadd.f32 %v5804, %v5811
      %v5814 = vadd.f32 %v5805, %v5811
      %v5815 = vmax.f32 %v5813, 0.0
      %v5816 = vmax.f32 %v5814, 0.0
      %v5817 = vrot.slane %v5815, 7
      %v5818 = vrot.slane %v5816, 7
      %v5819 = vsel %vm775, %v5817, %v5818
      %v5820 = vsel %vm775, %v5818, %v5817
      %v5821 = vsel %vm771, 0.0, %v5820
      %v5822 = vsel %vm772, 0.0, %v5819
      %v5823 = vrot.slane %v5815, 1
      %v5824 = vrot.slane %v5816, 1
      %v5825 = vsel %vm784, %v5823, %v5824
      %v5826 = vsel %vm784, %v5824, %v5823
      %v5827 = vsel %vm780, 0.0, %v5825
      %v5828 = vsel %vm781, 0.0, %v5826
      %v5829 = vpack.c.bf16 %v5822, %v5821
      %v5830 = vld [vmem:[%s21] sm:$0x3]
      %v5831 = vpack.c.bf16 %v5816, %v5815
      %s5832 = scalar_lea.vmem %s21, 2
      %v5833 = vld [vmem:[%s5832] sm:$0x3]
      %v5835 = vsel %vm794, %v5831, 0
      %v5838 = vsel %vm798, %v5833, 0
      %5840 = vmatprep.subr.bf16.mxu0 0
      %5841 = vmatpush1.bf16.msra.mxu0 %v5838
      %5842 = vmatprep.subr.bf16.mxu0 0
      %5843 = vmatpush1.bf16.msra.mxu0 0
      %5844 = vmatprep.subr.bf16.mxu0 0
      %5845 = vmatpush1.bf16.msra.mxu0 0
      %5846 = vmatprep.subr.bf16.mxu0 0
      %5847 = vmatpush1.bf16.msra.mxu0 0
      %5848 = vmatprep.subr.bf16.mxu0 0
      %5849 = vmatpush1.bf16.msra.mxu0 0
      %5850 = vmatprep.subr.bf16.mxu0 0
      %5851 = vmatpush1.bf16.msra.mxu0 0
      %5852 = vmatprep.subr.bf16.mxu0 0
      %5853 = vmatpush1.bf16.msra.mxu0 0
      %5854 = vmatprep.subr.bf16.mxu0 0
      %5855 = vmatpush1.bf16.msra.mxu0 0
      %5856 = vmatprep.subr.bf16.mxu0 0
      %5857 = vmatpush1.bf16.msra.mxu0 0
      %5858 = vmatprep.subr.bf16.mxu0 0
      %5859 = vmatpush1.bf16.msra.mxu0 0
      %5860 = vmatprep.subr.bf16.mxu0 0
      %5861 = vmatpush1.bf16.msra.mxu0 0
      %5862 = vmatprep.subr.bf16.mxu0 0
      %5863 = vmatpush1.bf16.msra.mxu0 0
      %5864 = vmatprep.subr.bf16.mxu0 0
      %5865 = vmatpush1.bf16.msra.mxu0 0
      %5866 = vmatprep.subr.bf16.mxu0 0
      %5867 = vmatpush1.bf16.msra.mxu0 0
      %5868 = vmatprep.subr.bf16.mxu0 0
      %5869 = vmatpush1.bf16.msra.mxu0 0
      %5870 = vmatprep.subr.bf16.mxu0 0
      %5871 = vmatpush1.bf16.msra.mxu0 0
      %5872 = vmatprep.mubr.bf16.mxu0 0
      %5873 = vmatmul.mubr.bf16.gmra.mrb[0].mxu0 %v5835
      %v5874 = vpop.f32.mrb[0].mxu0
      %v5875 = vadd.f32 0.0, %v5874
      %v5876 = vpop.f32.mrb[0].mxu0
      %v5877 = vpop.f32.mrb[0].mxu0
      %v5878 = vadd.f32 0.0, %v5877
      %v5879 = vpop.f32.mrb[0].mxu0
      %5880 = vdwg.mxu0
      %v5882 = vsel %vm794, %v5829, 0
      %v5885 = vsel %vm798, %v5830, 0
      %5887 = vmatprep.subr.bf16.mxu0 0
      %5888 = vmatpush1.bf16.msra.mxu0 %v5885
      %5889 = vmatprep.subr.bf16.mxu0 0
      %5890 = vmatpush1.bf16.msra.mxu0 0
      %5891 = vmatprep.subr.bf16.mxu0 0
      %5892 = vmatpush1.bf16.msra.mxu0 0
      %5893 = vmatprep.subr.bf16.mxu0 0
      %5894 = vmatpush1.bf16.msra.mxu0 0
      %5895 = vmatprep.subr.bf16.mxu0 0
      %5896 = vmatpush1.bf16.msra.mxu0 0
      %5897 = vmatprep.subr.bf16.mxu0 0
      %5898 = vmatpush1.bf16.msra.mxu0 0
      %5899 = vmatprep.subr.bf16.mxu0 0
      %5900 = vmatpush1.bf16.msra.mxu0 0
      %5901 = vmatprep.subr.bf16.mxu0 0
      %5902 = vmatpush1.bf16.msra.mxu0 0
      %5903 = vmatprep.subr.bf16.mxu0 0
      %5904 = vmatpush1.bf16.msra.mxu0 0
      %5905 = vmatprep.subr.bf16.mxu0 0
      %5906 = vmatpush1.bf16.msra.mxu0 0
      %5907 = vmatprep.subr.bf16.mxu0 0
      %5908 = vmatpush1.bf16.msra.mxu0 0
      %5909 = vmatprep.subr.bf16.mxu0 0
      %5910 = vmatpush1.bf16.msra.mxu0 0
      %5911 = vmatprep.subr.bf16.mxu0 0
      %5912 = vmatpush1.bf16.msra.mxu0 0
      %5913 = vmatprep.subr.bf16.mxu0 0
      %5914 = vmatpush1.bf16.msra.mxu0 0
      %5915 = vmatprep.subr.bf16.mxu0 0
      %5916 = vmatpush1.bf16.msra.mxu0 0
      %5917 = vmatprep.subr.bf16.mxu0 0
      %5918 = vmatpush1.bf16.msra.mxu0 0
      %5919 = vmatprep.mubr.bf16.mxu0 0
      %5920 = vmatmul.mubr.bf16.gmra.mrb[0].mxu0 %v5882
      %v5921 = vpop.f32.mrb[0].mxu0
      %v5922 = vadd.f32 %v5875, %v5921
      %v5923 = vpop.f32.mrb[0].mxu0
      %v5924 = vpop.f32.mrb[0].mxu0
      %v5925 = vadd.f32 %v5878, %v5924
      %v5926 = vpop.f32.mrb[0].mxu0
      %5927 = vdwg.mxu0
      %v5928 = vpack.c.bf16 %v5828, %v5827
      %s5929 = scalar_lea.vmem %s21, 4
      %v5930 = vld [vmem:[%s5929] sm:$0x3]
      %v5932 = vsel %vm794, %v5928, 0
      %v5935 = vsel %vm798, %v5930, 0
      %5937 = vmatprep.subr.bf16.mxu0 0
      %5938 = vmatpush1.bf16.msra.mxu0 %v5935
      %5939 = vmatprep.subr.bf16.mxu0 0
      %5940 = vmatpush1.bf16.msra.mxu0 0
      %5941 = vmatprep.subr.bf16.mxu0 0
      %5942 = vmatpush1.bf16.msra.mxu0 0
      %5943 = vmatprep.subr.bf16.mxu0 0
      %5944 = vmatpush1.bf16.msra.mxu0 0
      %5945 = vmatprep.subr.bf16.mxu0 0
      %5946 = vmatpush1.bf16.msra.mxu0 0
      %5947 = vmatprep.subr.bf16.mxu0 0
      %5948 = vmatpush1.bf16.msra.mxu0 0
      %5949 = vmatprep.subr.bf16.mxu0 0
      %5950 = vmatpush1.bf16.msra.mxu0 0
      %5951 = vmatprep.subr.bf16.mxu0 0
      %5952 = vmatpush1.bf16.msra.mxu0 0
      %5953 = vmatprep.subr.bf16.mxu0 0
      %5954 = vmatpush1.bf16.msra.mxu0 0
      %5955 = vmatprep.subr.bf16.mxu0 0
      %5956 = vmatpush1.bf16.msra.mxu0 0
      %5957 = vmatprep.subr.bf16.mxu0 0
      %5958 = vmatpush1.bf16.msra.mxu0 0
      %5959 = vmatprep.subr.bf16.mxu0 0
      %5960 = vmatpush1.bf16.msra.mxu0 0
      %5961 = vmatprep.subr.bf16.mxu0 0
      %5962 = vmatpush1.bf16.msra.mxu0 0
      %5963 = vmatprep.subr.bf16.mxu0 0
      %5964 = vmatpush1.bf16.msra.mxu0 0
      %5965 = vmatprep.subr.bf16.mxu0 0
      %5966 = vmatpush1.bf16.msra.mxu0 0
      %5967 = vmatprep.subr.bf16.mxu0 0
      %5968 = vmatpush1.bf16.msra.mxu0 0
      %5969 = vmatprep.mubr.bf16.mxu0 0
      %5970 = vmatmul.mubr.bf16.gmra.mrb[0].mxu0 %v5932
      %v5971 = vpop.f32.mrb[0].mxu0
      %v5972 = vadd.f32 0.0, %v5971
      %v5973 = vpop.f32.mrb[0].mxu0
      %v5974 = vpop.f32.mrb[0].mxu0
      %v5975 = vadd.f32 0.0, %v5974
      %v5976 = vpop.f32.mrb[0].mxu0
      %5977 = vdwg.mxu0
      %v5978 = vadd.f32 %v5922, %v5972
      %v5979 = vadd.f32 %v5925, %v5975
      %v5980 = vld [vmem:[%s22] sm:$0x1]
      %v5982 = vlaneseq
      %v5983 = vshrl.u32 %v5982, 7
      %v5984 = vsub.s32 0, %v5983
      %v5985 = vrot.slane %v5980, %v5984
      %v5987 = vadd.f32 %v5978, %v5985
      %v5988 = vadd.f32 %v5979, %v5985
      %v5989 = vld [vmem:[%s23] sm:$0xf]
      %v5990 = vld [vmem:[%s23 + $0x4] sm:$0xf]
      %v5991 = vld [vmem:[%s23 + $0x8] sm:$0xf]
      %v5992 = vld [vmem:[%s23 + $0xc] sm:$0xf]
      %v5993 = vld [vmem:[%s24] sm:$0x1]
      %v5995 = vlaneseq
      %v5996 = vshrl.u32 %v5995, 7
      %v5997 = vsub.s32 0, %v5996
      %v5998 = vrot.slane %v5993, %v5997
      %v6004 = vunpack.c.l.b16 %v5989
      %v6005 = vunpack.c.l.b16 %v5990
      %v6006 = vunpack.c.l.b16 %v5991
      %v6007 = vunpack.c.l.b16 %v5992
      %v6008 = vpack.c.b16 %v6005, %v6004
      %v6009 = vpack.c.b16 %v6007, %v6006
      %6012 = vmatprep.subr.bf16.mxu0 0
      %6013 = vmatpush1.bf16.msra.mxu0 %v6008
      %6014 = vmatprep.subr.bf16.mxu0 0
      %6015 = vmatpush1.bf16.msra.mxu0 %v6009
      %6016 = vmatprep.subr.bf16.mxu0 0
      %6017 = vmatpush1.bf16.msra.mxu0 0
      %6018 = vmatprep.subr.bf16.mxu0 0
      %6019 = vmatpush1.bf16.msra.mxu0 0
      %6020 = vmatprep.subr.bf16.mxu0 0
      %6021 = vmatpush1.bf16.msra.mxu0 0
      %6022 = vmatprep.subr.bf16.mxu0 0
      %6023 = vmatpush1.bf16.msra.mxu0 0
      %6024 = vmatprep.subr.bf16.mxu0 0
      %6025 = vmatpush1.bf16.msra.mxu0 0
      %6026 = vmatprep.subr.bf16.mxu0 0
      %6027 = vmatpush1.bf16.msra.mxu0 0
      %6028 = vmatprep.subr.bf16.mxu0 0
      %6029 = vmatpush1.bf16.msra.mxu0 0
      %6030 = vmatprep.subr.bf16.mxu0 0
      %6031 = vmatpush1.bf16.msra.mxu0 0
      %6032 = vmatprep.subr.bf16.mxu0 0
      %6033 = vmatpush1.bf16.msra.mxu0 0
      %6034 = vmatprep.subr.bf16.mxu0 0
      %6035 = vmatpush1.bf16.msra.mxu0 0
      %6036 = vmatprep.subr.bf16.mxu0 0
      %6037 = vmatpush1.bf16.msra.mxu0 0
      %6038 = vmatprep.subr.bf16.mxu0 0
      %6039 = vmatpush1.bf16.msra.mxu0 0
      %6040 = vmatprep.subr.bf16.mxu0 0
      %6041 = vmatpush1.bf16.msra.mxu0 0
      %6042 = vmatprep.subr.bf16.mxu0 0
      %6043 = vmatpush1.bf16.msra.mxu0 0
      %6044 = vmatprep.mubr.bf16.mxu0 0
      %6045 = vmatmul.mubr.bf16.gmra.mrb[0].mxu0 %v5643
      %v6046 = vpop.f32.mrb[0].mxu0
      %v6047 = vadd.f32 %v5998, %v6046
      %v6048 = vpop.f32.mrb[0].mxu0
      %v6049 = vpop.f32.mrb[0].mxu0
      %v6050 = vadd.f32 %v5998, %v6049
      %v6051 = vpop.f32.mrb[0].mxu0
      %6052 = vdwg.mxu0
      %v6053 = vadd.f32 %v5987, %v6047
      %v6054 = vadd.f32 %v5988, %v6050
      %6055 = vst.msk [vmem:[%s764] sm:$0xff] %vm794, %v6053
      %6056 = vst.msk [vmem:[%s764 + $0x8] sm:$0xff] %vm794, %v6054
      %p6057 = scmp.lt.s32.totalorder %s36, 1
      %s6058 = scalar_select %p6057, %s36, 1
      %s6059 = smul.addr %s6058, 2
      %s6060 = smul.addr %s6059, 8
      %s6061 = scalar_lea.vmem %s25, %s6060
      // Predicated region
      $region121: #{conv_block_forward.1} parent=119 // pred_check
        %p6062 = pneg %p584
      $region122: #{conv_block_forward.1} parent=119 // pred_check_branch
        %6064 = sbr.rel (%p6062) target = $region124
      $region123: #{conv_block_forward.1} parent=119 // pred_region
        _
      $region124: #{conv_block_forward.1} parent=119 // pred_fallthru
        _
    $region120: #{conv_block_forward.1} parent=5 // pred_fallthru
      _
    %p6065 = scmp.le.s32.totalorder 2, %s31
    // Predicated region
    $region125: #{conv_block_forward.1} parent=5 // pred_check
      %p6066 = pneg %p6065
    $region126: #{conv_block_forward.1} parent=5 // pred_check_branch
      %6068 = sbr.rel (%p6066) target = $region128
    $region127: #{conv_block_forward.1} parent=5 // pred_region
      %s6069 = ssub.s32 %s31, 2
      // Predicated region
      $region129: #{conv_block_forward.1} parent=127 // pred_check
        %p6070 = pneg %p590
      $region130: #{conv_block_forward.1} parent=127 // pred_check_branch
        %6072 = sbr.rel (%p6070) target = $region132
      $region131: #{conv_block_forward.1} parent=127 // pred_region
        %p6073 = scmp.lt.s32.totalorder %s37, 1
        %s6074 = scalar_select %p6073, %s37, 1
        %s6075 = smul.addr %s6074, 2
        %s6076 = smul.addr %s6075, 8
        %s6077 = scalar_lea.vmem %s25, %s6076
      $region132: #{conv_block_forward.1} parent=127 // pred_fallthru
        _
    $region128: #{conv_block_forward.1} parent=5 // pred_fallthru
      _
  $region6: #{conv_block_forward.1} parent=0 // loop_footer
    %s35 = sadd.s32 1, %s31
  $region7: #{conv_block_forward.1} parent=0 // loop_footer_branch
    %30 = sbr.rel target = $region3
  $region8: #{conv_block_forward.1} parent=0 // loop_exit
    _

</llo_original>
